<compile_context>
chip_gen: v6e
topology: v6e:2x2x1
jax: 0.10.0
libtpu: 0.0.40
codegen_flags: <defaults>
</compile_context>

<pallas_src>
import functools

import jax
import jax.numpy as jnp
from jax.experimental import pallas as pl
from jax.experimental.pallas import tpu as pltpu

IN_FEATURES = 784
HIDDEN = 1000
HIDDEN_PAD = 1024      # 1000 padded to a multiple of 128 (lane-dense)
NUM_CLASSES = 10
CLASSES_PAD = 128      # 10 padded to one full lane group (unmasked vst)


def _round_up(x, m):
    return (x + m - 1) // m * m


# ---------------- fused Pallas kernel ----------------

def _fc_fused_kernel(x_ref, w1_ref, b1_ref, w2_ref, b2_ref, w3_ref, b3_ref,
                     o_ref, h1_ref, h2_ref, *, num_classes):
    # ---- fc1 + relu (bf16 MXU, f32 accumulate) ----
    x = x_ref[...].astype(jnp.bfloat16)
    h1 = jnp.dot(x, w1_ref[...], preferred_element_type=jnp.float32)
    h1 = jnp.maximum(h1 + b1_ref[...], 0.0)
    h1_ref[...] = h1.astype(jnp.bfloat16)

    # ---- fc2 + relu ----
    h2 = jnp.dot(h1_ref[...], w2_ref[...], preferred_element_type=jnp.float32)
    h2 = jnp.maximum(h2 + b2_ref[...], 0.0)
    h2_ref[...] = h2.astype(jnp.bfloat16)

    # ---- fc3 + relu (the reference module applies the activation to fc3 as well) ----
    y = jnp.dot(h2_ref[...], w3_ref[...], preferred_element_type=jnp.float32)
    y = jnp.maximum(y + b3_ref[...], 0.0)

    # mask lane-padded (>= num_classes) logits out of the softmax
    lane = jax.lax.broadcasted_iota(jnp.int32, y.shape, dimension=1)
    y = jnp.where(lane < num_classes, y, -1e30)

    # ---- numerically stable log_softmax over the class lanes ----
    m = jnp.max(y, axis=-1, keepdims=True)
    s = y - m
    lse = jnp.log(jnp.sum(jnp.exp(s), axis=-1, keepdims=True))
    o_ref[...] = (s - lse).astype(o_ref.dtype)


# ---------------- wrapper ----------------

def _fused_fc(x_pad, params, tm):
    n_pad = x_pad.shape[0]
    (w1, b1), (w2, b2), (w3, b3) = params
    grid = (n_pad // tm,)

    flops = 2 * n_pad * (IN_FEATURES * HIDDEN_PAD
                         + HIDDEN_PAD * HIDDEN_PAD
                         + HIDDEN_PAD * CLASSES_PAD)
    bytes_accessed = (x_pad.size * 4
                      + (w1.size + w2.size + w3.size) * 2
                      + (b1.size + b2.size + b3.size) * 4
                      + n_pad * CLASSES_PAD * 4)

    kernel = functools.partial(_fc_fused_kernel, num_classes=NUM_CLASSES)

    return pl.pallas_call(
        kernel,
        out_shape=jax.ShapeDtypeStruct((n_pad, CLASSES_PAD), jnp.float32),
        grid_spec=pltpu.PrefetchScalarGridSpec(
            num_scalar_prefetch=0,
            grid=grid,
            in_specs=[
                pl.BlockSpec((tm, IN_FEATURES), lambda i: (i, 0)),          # x tile
                pl.BlockSpec((IN_FEATURES, HIDDEN_PAD), lambda i: (0, 0)),  # W1 (resident)
                pl.BlockSpec((1, HIDDEN_PAD), lambda i: (0, 0)),            # b1
                pl.BlockSpec((HIDDEN_PAD, HIDDEN_PAD), lambda i: (0, 0)),   # W2
                pl.BlockSpec((1, HIDDEN_PAD), lambda i: (0, 0)),            # b2
                pl.BlockSpec((HIDDEN_PAD, CLASSES_PAD), lambda i: (0, 0)),  # W3
                pl.BlockSpec((1, CLASSES_PAD), lambda i: (0, 0)),           # b3
            ],
            out_specs=pl.BlockSpec((tm, CLASSES_PAD), lambda i: (i, 0)),
            scratch_shapes=[
                pltpu.VMEM((tm, HIDDEN_PAD), jnp.bfloat16),  # h1
                pltpu.VMEM((tm, HIDDEN_PAD), jnp.bfloat16),  # h2
            ],
        ),
        compiler_params=pltpu.CompilerParams(
            dimension_semantics=("parallel",),
        ),
        cost_estimate=pl.CostEstimate(
            flops=flops,
            transcendentals=n_pad * (CLASSES_PAD + 1),
            bytes_accessed=bytes_accessed,
        ),
    )(x_pad, w1, b1, w2, b2, w3, b3)


def init_fc_params(key):
    """torch.nn.Linear-style init (uniform +-1/sqrt(fan_in)); weights stored
    transposed as (in, out), zero-padded to lane-dense shapes and cast to bf16."""
    dims = [(IN_FEATURES, HIDDEN), (HIDDEN, HIDDEN), (HIDDEN, NUM_CLASSES)]
    pads = [(IN_FEATURES, HIDDEN_PAD), (HIDDEN_PAD, HIDDEN_PAD), (HIDDEN_PAD, CLASSES_PAD)]
    params = []
    for (fan_in, fan_out), (pin, pout) in zip(dims, pads):
        key, kw, kb = jax.random.split(key, 3)
        bound = 1.0 / jnp.sqrt(jnp.float32(fan_in))
        w = jax.random.uniform(kw, (fan_in, fan_out), jnp.float32, -bound, bound)
        b = jax.random.uniform(kb, (fan_out,), jnp.float32, -bound, bound)
        w_pad = jnp.zeros((pin, pout), jnp.float32).at[:fan_in, :fan_out].set(w)
        b_pad = jnp.zeros((1, pout), jnp.float32).at[0, :fan_out].set(b)
        params.append((w_pad.astype(jnp.bfloat16), b_pad))
    return params


@jax.jit
def fc_forward(x, params):
    """x: any shape (N, ...) with prod(...) == 784 (e.g. NCHW (N, 1, 28, 28))."""
    n = x.shape[0]
    x = x.reshape(n, -1).astype(jnp.float32)   # x.view(-1, num_flat_features(x))
    # TODO(synk): dropout branches (drop_rate != 0) are training-mode stochastic ops;
    # default module config (drop_rate=0) skips them, so they are omitted here.
    tm = min(256, _round_up(n, 8))             # batch tile (multiple of 8 sublanes)
    n_pad = _round_up(n, tm)
    x_pad = jnp.zeros((n_pad, IN_FEATURES), jnp.float32).at[:n, :].set(x)
    out = _fused_fc(x_pad, params, tm)
    return out[:n, :NUM_CLASSES]


if __name__ == "__main__":
    key = jax.random.PRNGKey(0)
    kp, kx = jax.random.split(key)
    params = init_fc_params(kp)

    # small deterministic input: batch=2, MNIST-like NCHW (2, 1, 28, 28) -> 784 features
    x = jax.random.normal(kx, (2, 1, 28, 28), jnp.float32)

    out = jax.block_until_ready(fc_forward(x, params))

    assert out.shape == (2, NUM_CLASSES), out.shape
    # log_softmax rows should sum (in prob space) to ~1
    assert jnp.allclose(jnp.sum(jnp.exp(out), axis=1), 1.0, atol=1e-4)

    # pure-JAX reference with the same bf16 weight / activation casts
    def ref_forward(x, params):
        n = x.shape[0]
        h = x.reshape(n, -1).astype(jnp.float32)
        for (w, b) in params:
            h = jnp.dot(h.astype(jnp.bfloat16), w,
                        preferred_element_type=jnp.float32) + b
            h = jnp.maximum(h, 0.0)
        logits = h[:, :NUM_CLASSES]
        return jax.nn.log_softmax(logits, axis=1)

    ref = ref_forward(x, params)
    assert jnp.allclose(out, ref, atol=2e-2, rtol=2e-2), float(jnp.max(jnp.abs(out - ref)))
    print("KERNEL_OK")
</pallas_src>

<mosaic_0001>
module attributes {stable_mosaic.version = 11 : i64} {
  func.func @_fc_fused_kernel(%arg0: i32, %arg1: memref<8x784xf32, #tpu.memory_space<vmem>>, %arg2: memref<784x1024xbf16, #tpu.memory_space<vmem>>, %arg3: memref<1x1024xf32, #tpu.memory_space<vmem>>, %arg4: memref<1024x1024xbf16, #tpu.memory_space<vmem>>, %arg5: memref<1x1024xf32, #tpu.memory_space<vmem>>, %arg6: memref<1024x128xbf16, #tpu.memory_space<vmem>>, %arg7: memref<1x128xf32, #tpu.memory_space<vmem>>, %arg8: memref<8x128xf32, #tpu.memory_space<vmem>>, %arg9: memref<8x1024xbf16, #tpu.memory_space<vmem>>, %arg10: memref<8x1024xbf16, #tpu.memory_space<vmem>>) attributes {dimension_semantics = [#tpu.dimension_semantics<parallel>], iteration_bounds = array<i64: 1>, scalar_prefetch = 0 : i64, scratch_operands = 2 : i64, tpu.core_type = #tpu.core_type<tc>, window_params = [{transform_indices = @transform_0, window_bounds = array<i64: 8, 784>}, {pipeline_mode = #tpu.pipeline_mode<synchronous>, transform_indices = @transform_1, window_bounds = array<i64: 784, 1024>}, {pipeline_mode = #tpu.pipeline_mode<synchronous>, transform_indices = @transform_2, window_bounds = array<i64: 1, 1024>}, {pipeline_mode = #tpu.pipeline_mode<synchronous>, transform_indices = @transform_3, window_bounds = array<i64: 1024, 1024>}, {pipeline_mode = #tpu.pipeline_mode<synchronous>, transform_indices = @transform_4, window_bounds = array<i64: 1, 1024>}, {pipeline_mode = #tpu.pipeline_mode<synchronous>, transform_indices = @transform_5, window_bounds = array<i64: 1024, 128>}, {pipeline_mode = #tpu.pipeline_mode<synchronous>, transform_indices = @transform_6, window_bounds = array<i64: 1, 128>}, {transform_indices = @transform_7, window_bounds = array<i64: 8, 128>}]} {
    %c0 = arith.constant 0 : index
    %c0_0 = arith.constant 0 : index
    %0 = vector.load %arg1[%c0, %c0_0] : memref<8x784xf32, #tpu.memory_space<vmem>>, vector<8x784xf32>
    %1 = arith.truncf %0 : vector<8x784xf32> to vector<8x784xbf16>
    %c0_1 = arith.constant 0 : index
    %c0_2 = arith.constant 0 : index
    %2 = vector.load %arg2[%c0_1, %c0_2] : memref<784x1024xbf16, #tpu.memory_space<vmem>>, vector<784x1024xbf16>
    %cst = arith.constant dense<0.000000e+00> : vector<8x1024xf32>
    %3 = tpu.matmul %1, %2, %cst {dimension_numbers = #tpu.dot_dimension_numbers<[1], [0], [0], [1], [0, 0, 1, 1], [], []>} : vector<8x784xbf16>, vector<784x1024xbf16>, vector<8x1024xf32> -> vector<8x1024xf32>
    %c0_3 = arith.constant 0 : index
    %c0_4 = arith.constant 0 : index
    %4 = vector.load %arg3[%c0_3, %c0_4] : memref<1x1024xf32, #tpu.memory_space<vmem>>, vector<1x1024xf32>
    %5 = vector.broadcast %4 : vector<1x1024xf32> to vector<8x1024xf32>
    %6 = arith.addf %3, %5 : vector<8x1024xf32>
    %cst_5 = arith.constant 0.000000e+00 : f32
    %7 = vector.broadcast %cst_5 : f32 to vector<8x1024xf32>
    %8 = arith.maximumf %6, %7 : vector<8x1024xf32>
    %9 = arith.truncf %8 : vector<8x1024xf32> to vector<8x1024xbf16>
    %c0_6 = arith.constant 0 : index
    %c0_7 = arith.constant 0 : index
    %10 = vector.load %arg9[%c0_6, %c0_7] : memref<8x1024xbf16, #tpu.memory_space<vmem>>, vector<8x1024xbf16>
    tpu.vector_store %arg9[%c0_6, %c0_7], %9 {strides = array<i32>} : memref<8x1024xbf16, #tpu.memory_space<vmem>>, vector<8x1024xbf16>,
    %c0_8 = arith.constant 0 : index
    %c0_9 = arith.constant 0 : index
    %11 = vector.load %arg9[%c0_8, %c0_9] : memref<8x1024xbf16, #tpu.memory_space<vmem>>, vector<8x1024xbf16>
    %c0_10 = arith.constant 0 : index
    %c0_11 = arith.constant 0 : index
    %12 = vector.load %arg4[%c0_10, %c0_11] : memref<1024x1024xbf16, #tpu.memory_space<vmem>>, vector<1024x1024xbf16>
    %cst_12 = arith.constant dense<0.000000e+00> : vector<8x1024xf32>
    %13 = tpu.matmul %11, %12, %cst_12 {dimension_numbers = #tpu.dot_dimension_numbers<[1], [0], [0], [1], [0, 0, 1, 1], [], []>} : vector<8x1024xbf16>, vector<1024x1024xbf16>, vector<8x1024xf32> -> vector<8x1024xf32>
    %c0_13 = arith.constant 0 : index
    %c0_14 = arith.constant 0 : index
    %14 = vector.load %arg5[%c0_13, %c0_14] : memref<1x1024xf32, #tpu.memory_space<vmem>>, vector<1x1024xf32>
    %15 = vector.broadcast %14 : vector<1x1024xf32> to vector<8x1024xf32>
    %16 = arith.addf %13, %15 : vector<8x1024xf32>
    %cst_15 = arith.constant 0.000000e+00 : f32
    %17 = vector.broadcast %cst_15 : f32 to vector<8x1024xf32>
    %18 = arith.maximumf %16, %17 : vector<8x1024xf32>
    %19 = arith.truncf %18 : vector<8x1024xf32> to vector<8x1024xbf16>
    %c0_16 = arith.constant 0 : index
    %c0_17 = arith.constant 0 : index
    %20 = vector.load %arg10[%c0_16, %c0_17] : memref<8x1024xbf16, #tpu.memory_space<vmem>>, vector<8x1024xbf16>
    tpu.vector_store %arg10[%c0_16, %c0_17], %19 {strides = array<i32>} : memref<8x1024xbf16, #tpu.memory_space<vmem>>, vector<8x1024xbf16>,
    %c0_18 = arith.constant 0 : index
    %c0_19 = arith.constant 0 : index
    %21 = vector.load %arg10[%c0_18, %c0_19] : memref<8x1024xbf16, #tpu.memory_space<vmem>>, vector<8x1024xbf16>
    %c0_20 = arith.constant 0 : index
    %c0_21 = arith.constant 0 : index
    %22 = vector.load %arg6[%c0_20, %c0_21] : memref<1024x128xbf16, #tpu.memory_space<vmem>>, vector<1024x128xbf16>
    %cst_22 = arith.constant dense<0.000000e+00> : vector<8x128xf32>
    %23 = tpu.matmul %21, %22, %cst_22 {dimension_numbers = #tpu.dot_dimension_numbers<[1], [0], [0], [1], [0, 0, 1, 1], [], []>} : vector<8x1024xbf16>, vector<1024x128xbf16>, vector<8x128xf32> -> vector<8x128xf32>
    %c0_23 = arith.constant 0 : index
    %c0_24 = arith.constant 0 : index
    %24 = vector.load %arg7[%c0_23, %c0_24] : memref<1x128xf32, #tpu.memory_space<vmem>>, vector<1x128xf32>
    %25 = vector.broadcast %24 : vector<1x128xf32> to vector<8x128xf32>
    %26 = arith.addf %23, %25 : vector<8x128xf32>
    %cst_25 = arith.constant 0.000000e+00 : f32
    %27 = vector.broadcast %cst_25 : f32 to vector<8x128xf32>
    %28 = arith.maximumf %26, %27 : vector<8x128xf32>
    %29 = tpu.iota {dimensions = array<i32: 1>} : vector<8x128xi32>
    %c10_i32 = arith.constant 10 : i32
    %30 = vector.broadcast %c10_i32 : i32 to vector<8x128xi32>
    %31 = arith.cmpi slt, %29, %30 : vector<8x128xi32>
    %cst_26 = arith.constant -1.000000e+30 : f32
    %32 = vector.broadcast %cst_26 : f32 to vector<8x128xf32>
    %33 = arith.select %31, %28, %32 : vector<8x128xi1>, vector<8x128xf32>
    %cst_27 = arith.constant dense<0xFF800000> : vector<8xf32>
    %34 = vector.multi_reduction <maximumf>, %33, %cst_27 [1] : vector<8x128xf32> to vector<8xf32>
    %35 = vector.shape_cast %34 : vector<8xf32> to vector<8x1xf32>
    %36 = vector.broadcast %35 : vector<8x1xf32> to vector<8x128xf32>
    %37 = arith.subf %33, %36 : vector<8x128xf32>
    %38 = math.exp %37 : vector<8x128xf32>
    %cst_28 = arith.constant dense<0.000000e+00> : vector<8xf32>
    %39 = vector.multi_reduction <add>, %38, %cst_28 [1] : vector<8x128xf32> to vector<8xf32>
    %40 = vector.shape_cast %39 : vector<8xf32> to vector<8x1xf32>
    %41 = math.log %40 : vector<8x1xf32>
    %42 = vector.broadcast %41 : vector<8x1xf32> to vector<8x128xf32>
    %43 = arith.subf %37, %42 : vector<8x128xf32>
    %c0_29 = arith.constant 0 : index
    %c0_30 = arith.constant 0 : index
    %44 = vector.load %arg8[%c0_29, %c0_30] : memref<8x128xf32, #tpu.memory_space<vmem>>, vector<8x128xf32>
    tpu.vector_store %arg8[%c0_29, %c0_30], %43 {strides = array<i32>} : memref<8x128xf32, #tpu.memory_space<vmem>>, vector<8x128xf32>,
    return
  }
  func.func @transform_0(%arg0: i32) -> (i32, i32) {
    %c0_i32 = arith.constant 0 : i32
    %c0_i32_0 = arith.constant 0 : i32
    return %arg0, %c0_i32 : i32, i32
  }
  func.func @transform_1(%arg0: i32) -> (i32, i32) {
    %c0_i32 = arith.constant 0 : i32
    %c0_i32_0 = arith.constant 0 : i32
    %c0_i32_1 = arith.constant 0 : i32
    return %c0_i32, %c0_i32_0 : i32, i32
  }
  func.func @transform_2(%arg0: i32) -> (i32, i32) {
    %c0_i32 = arith.constant 0 : i32
    %c0_i32_0 = arith.constant 0 : i32
    %c0_i32_1 = arith.constant 0 : i32
    return %c0_i32, %c0_i32_0 : i32, i32
  }
  func.func @transform_3(%arg0: i32) -> (i32, i32) {
    %c0_i32 = arith.constant 0 : i32
    %c0_i32_0 = arith.constant 0 : i32
    %c0_i32_1 = arith.constant 0 : i32
    return %c0_i32, %c0_i32_0 : i32, i32
  }
  func.func @transform_4(%arg0: i32) -> (i32, i32) {
    %c0_i32 = arith.constant 0 : i32
    %c0_i32_0 = arith.constant 0 : i32
    %c0_i32_1 = arith.constant 0 : i32
    return %c0_i32, %c0_i32_0 : i32, i32
  }
  func.func @transform_5(%arg0: i32) -> (i32, i32) {
    %c0_i32 = arith.constant 0 : i32
    %c0_i32_0 = arith.constant 0 : i32
    %c0_i32_1 = arith.constant 0 : i32
    return %c0_i32, %c0_i32_0 : i32, i32
  }
  func.func @transform_6(%arg0: i32) -> (i32, i32) {
    %c0_i32 = arith.constant 0 : i32
    %c0_i32_0 = arith.constant 0 : i32
    %c0_i32_1 = arith.constant 0 : i32
    return %c0_i32, %c0_i32_0 : i32, i32
  }
  func.func @transform_7(%arg0: i32) -> (i32, i32) {
    %c0_i32 = arith.constant 0 : i32
    %c0_i32_0 = arith.constant 0 : i32
    return %arg0, %c0_i32 : i32, i32
  }
}

</mosaic_0001>

<llo_original>
// kernel: fc_forward.1
$region0: #{fc_forward.1}
  #allocation0 [shape = 'u32[]', space=smem, size = 0x4, offset = 0x4, fixed_abs, tag = 'smem constant byte address 0x4 - core index']
  #allocation1 [shape = 'u32[144,128]{1,0:T(1,128)}', space=vmem, size = 0x12000, scoped, tag = 'internal scratch']
  #allocation2 [shape = 'bf16[8,1024]{1,0:T(8,128)(2,1)}', space=vmem, size = 0x4000, scoped, tag = 'scratch operand']
  #allocation3 [shape = 'bf16[8,1024]{1,0:T(8,128)(2,1)}', space=vmem, size = 0x4000, scoped, tag = 'scratch operand']
  %s0 = inlined_call_operand.vmem [shape: f32[8,784], index: 0, kind: input, shape index: {}]
  %s1 = inlined_call_operand.hbm [shape: bf16[784,1024], index: 1, kind: input, shape index: {}]
  %s2 = inlined_call_operand.hbm [shape: f32[1,1024], index: 2, kind: input, shape index: {}]
  %s3 = inlined_call_operand.hbm [shape: bf16[1024,1024], index: 3, kind: input, shape index: {}]
  %s4 = inlined_call_operand.hbm [shape: f32[1,1024], index: 4, kind: input, shape index: {}]
  %s5 = inlined_call_operand.hbm [shape: bf16[1024,128], index: 5, kind: input, shape index: {}]
  %s6 = inlined_call_operand.hbm [shape: f32[1,128], index: 6, kind: input, shape index: {}]
  %s7 = inlined_call_operand.vmem [shape: f32[8,128], index: 7, kind: output, shape index: {}]
  %s8 = sld [smem:[#allocation0]]
  $region62: #{fc_forward.1} parent=0
    _
  %s10 = ssub.s32 1, %s8
  %s11 = scalar_select 0, %s10, %s8
  $region1: #{fc_forward.1} parent=0
    #allocation4 [shape = 'u8[1605632]{0}', space=vmem, size = 0x188000, scoped, tag = 'input window, operand 1, single buffered']
    #allocation5 [shape = 's32[1]{0}', space=sflag, size = 0x4, scoped, tag = 'scoped memory for fc_forward.1']
    #allocation6 [shape = 'u8[4096]{0}', space=vmem, size = 0x1000, scoped, tag = 'input window, operand 2, single buffered']
    #allocation7 [shape = 's32[1]{0}', space=sflag, size = 0x4, scoped, tag = 'scoped memory for fc_forward.1']
    #allocation8 [shape = 'u8[2097152]{0}', space=vmem, size = 0x200000, scoped, tag = 'input window, operand 3, single buffered']
    #allocation9 [shape = 'u8[4096]{0}', space=vmem, size = 0x1000, scoped, tag = 'input window, operand 4, single buffered']
    #allocation10 [shape = 's32[1]{0}', space=sflag, size = 0x4, scoped, tag = 'scoped memory for fc_forward.1']
    #allocation11 [shape = 'u8[262144]{0}', space=vmem, size = 0x40000, scoped, tag = 'input window, operand 5, single buffered']
    #allocation12 [shape = 'u8[512]{0}', space=vmem, size = 0x400, scoped, tag = 'input window, operand 6, single buffered']
    #allocation13 [shape = 's32[1]{0}', space=sflag, size = 0x4, scoped, tag = 'scoped memory for fc_forward.1']
    %12 = vsyncpa [#allocation5], 0
    %13 = vsyncpa [#allocation7], 0
    %14 = vsyncpa [#allocation10], 0
    %15 = vsyncpa [#allocation13], 0
    // Predicated region
    $region2: #{fc_forward.1} parent=1 // pred_check
      _
    $region3: #{fc_forward.1} parent=1 // pred_check_branch
      %17 = sbr.rel (0) target = $region5
    $region4: #{fc_forward.1} parent=1 // pred_region
      _
    $region5: #{fc_forward.1} parent=1 // pred_fallthru
      _
    // Predicated region
    $region6: #{fc_forward.1} parent=1 // pred_check
      _
    $region7: #{fc_forward.1} parent=1 // pred_check_branch
      %19 = sbr.rel (0) target = $region9
    $region8: #{fc_forward.1} parent=1 // pred_region
      %s21 = ssub.s32 50176, 50176
      %22 = vsyncadd [#allocation5], %s21
      %s23 = sshll.u32 [#allocation4], 4
      %s24 = int_to_ptr.vmem [resolvable:$true] %s23
      %29 = dma.hbm_to_vmem [thread:$0]  %s1, 50176, %s24, [#allocation5], 512, 512, 32
    $region9: #{fc_forward.1} parent=1 // pred_fallthru
      _
    // Predicated region
    $region10: #{fc_forward.1} parent=1 // pred_check
      _
    $region11: #{fc_forward.1} parent=1 // pred_check_branch
      %31 = sbr.rel (0) target = $region13
    $region12: #{fc_forward.1} parent=1 // pred_region
      %s33 = ssub.s32 128, 128
      %34 = vsyncadd [#allocation7], %s33
      %s36 = sshll.u32 [#allocation6], 4
      %s37 = int_to_ptr.vmem [resolvable:$true] %s36
      %39 = dma.hbm_to_vmem [thread:$0]  %s2, 128, %s37, [#allocation7]
    $region13: #{fc_forward.1} parent=1 // pred_fallthru
      _
    // Predicated region
    $region14: #{fc_forward.1} parent=1 // pred_check
      _
    $region15: #{fc_forward.1} parent=1 // pred_check_branch
      %41 = sbr.rel (0) target = $region17
    $region16: #{fc_forward.1} parent=1 // pred_region
      %s43 = ssub.s32 65536, 65536
      %44 = vsyncadd [#allocation7], %s43
      %s45 = sshll.u32 [#allocation8], 4
      %s46 = int_to_ptr.vmem [resolvable:$true] %s45
      %51 = dma.hbm_to_vmem [thread:$0]  %s3, 65536, %s46, [#allocation7], 512, 512, 32
    $region17: #{fc_forward.1} parent=1 // pred_fallthru
      _
    // Predicated region
    $region18: #{fc_forward.1} parent=1 // pred_check
      _
    $region19: #{fc_forward.1} parent=1 // pred_check_branch
      %53 = sbr.rel (0) target = $region21
    $region20: #{fc_forward.1} parent=1 // pred_region
      %s55 = ssub.s32 128, 128
      %56 = vsyncadd [#allocation10], %s55
      %s58 = sshll.u32 [#allocation9], 4
      %s59 = int_to_ptr.vmem [resolvable:$true] %s58
      %61 = dma.hbm_to_vmem [thread:$0]  %s4, 128, %s59, [#allocation10]
    $region21: #{fc_forward.1} parent=1 // pred_fallthru
      _
    // Predicated region
    $region22: #{fc_forward.1} parent=1 // pred_check
      _
    $region23: #{fc_forward.1} parent=1 // pred_check_branch
      %63 = sbr.rel (0) target = $region25
    $region24: #{fc_forward.1} parent=1 // pred_region
      %s65 = ssub.s32 8192, 8192
      %66 = vsyncadd [#allocation10], %s65
      %s67 = sshll.u32 [#allocation11], 4
      %s68 = int_to_ptr.vmem [resolvable:$true] %s67
      %73 = dma.hbm_to_vmem [thread:$0]  %s5, 8192, %s68, [#allocation10], 64, 64, 4
    $region25: #{fc_forward.1} parent=1 // pred_fallthru
      _
    // Predicated region
    $region26: #{fc_forward.1} parent=1 // pred_check
      _
    $region27: #{fc_forward.1} parent=1 // pred_check_branch
      %75 = sbr.rel (0) target = $region29
    $region28: #{fc_forward.1} parent=1 // pred_region
      %s77 = ssub.s32 16, 16
      %78 = vsyncadd [#allocation13], %s77
      %s80 = sshll.u32 [#allocation12], 4
      %s81 = int_to_ptr.vmem [resolvable:$true] %s80
      %83 = dma.hbm_to_vmem [thread:$0]  %s6, 16, %s81, [#allocation13]
    $region29: #{fc_forward.1} parent=1 // pred_fallthru
      _
    // Predicated region
    $region30: #{fc_forward.1} parent=1 // pred_check
      _
    $region31: #{fc_forward.1} parent=1 // pred_check_branch
      %85 = sbr.rel (0) target = $region33
    $region32: #{fc_forward.1} parent=1 // pred_region
      %86 = dma.done [#allocation5], 50176
    $region33: #{fc_forward.1} parent=1 // pred_fallthru
      _
    // Predicated region
    $region34: #{fc_forward.1} parent=1 // pred_check
      _
    $region35: #{fc_forward.1} parent=1 // pred_check_branch
      %88 = sbr.rel (0) target = $region37
    $region36: #{fc_forward.1} parent=1 // pred_region
      %89 = dma.done [#allocation7], 128
    $region37: #{fc_forward.1} parent=1 // pred_fallthru
      _
    // Predicated region
    $region38: #{fc_forward.1} parent=1 // pred_check
      _
    $region39: #{fc_forward.1} parent=1 // pred_check_branch
      %91 = sbr.rel (0) target = $region41
    $region40: #{fc_forward.1} parent=1 // pred_region
      %92 = dma.done [#allocation7], 65536
    $region41: #{fc_forward.1} parent=1 // pred_fallthru
      _
    // Predicated region
    $region42: #{fc_forward.1} parent=1 // pred_check
      _
    $region43: #{fc_forward.1} parent=1 // pred_check_branch
      %94 = sbr.rel (0) target = $region45
    $region44: #{fc_forward.1} parent=1 // pred_region
      %95 = dma.done [#allocation10], 128
    $region45: #{fc_forward.1} parent=1 // pred_fallthru
      _
    // Predicated region
    $region46: #{fc_forward.1} parent=1 // pred_check
      _
    $region47: #{fc_forward.1} parent=1 // pred_check_branch
      %97 = sbr.rel (0) target = $region49
    $region48: #{fc_forward.1} parent=1 // pred_region
      %98 = dma.done [#allocation10], 8192
    $region49: #{fc_forward.1} parent=1 // pred_fallthru
      _
    // Predicated region
    $region50: #{fc_forward.1} parent=1 // pred_check
      _
    $region51: #{fc_forward.1} parent=1 // pred_check_branch
      %100 = sbr.rel (0) target = $region53
    $region52: #{fc_forward.1} parent=1 // pred_region
      %101 = dma.done [#allocation13], 16
    $region53: #{fc_forward.1} parent=1 // pred_fallthru
      _
    %v103 = vld [vmem:[%s0] sm:$0xff]
    %v104 = vld [vmem:[%s0 + $0x8] sm:$0xff]
    %v105 = vld [vmem:[%s0 + $0x10] sm:$0xff]
    %v106 = vld [vmem:[%s0 + $0x18] sm:$0xff]
    %v107 = vld [vmem:[%s0 + $0x20] sm:$0xff]
    %v108 = vld [vmem:[%s0 + $0x28] sm:$0xff]
    %v109 = vld [vmem:[%s0 + $0x30] sm:$0xff]
    %v110 = vpack.c.bf16 %v103, %v103
    %v111 = vpack.c.bf16 %v104, %v104
    %v112 = vpack.c.bf16 %v105, %v105
    %v113 = vpack.c.bf16 %v106, %v106
    %v114 = vpack.c.bf16 %v107, %v107
    %v115 = vpack.c.bf16 %v108, %v108
    %v116 = vpack.c.bf16 %v109, %v109
    %v117 = vld [vmem:[#allocation4] sm:$0xff]
    %v118 = vld [vmem:[#allocation4 + $0x8] sm:$0xff]
    %v119 = vld [vmem:[#allocation4 + $0x10] sm:$0xff]
    %v120 = vld [vmem:[#allocation4 + $0x18] sm:$0xff]
    %v121 = vld [vmem:[#allocation4 + $0x20] sm:$0xff]
    %v122 = vld [vmem:[#allocation4 + $0x28] sm:$0xff]
    %v123 = vld [vmem:[#allocation4 + $0x30] sm:$0xff]
    %v124 = vld [vmem:[#allocation4 + $0x38] sm:$0xff]
    %v125 = vld [vmem:[#allocation4 + $0x40] sm:$0xff]
    %v126 = vld [vmem:[#allocation4 + $0x48] sm:$0xff]
    %v127 = vld [vmem:[#allocation4 + $0x50] sm:$0xff]
    %v128 = vld [vmem:[#allocation4 + $0x58] sm:$0xff]
    %v129 = vld [vmem:[#allocation4 + $0x60] sm:$0xff]
    %v130 = vld [vmem:[#allocation4 + $0x68] sm:$0xff]
    %v131 = vld [vmem:[#allocation4 + $0x70] sm:$0xff]
    %v132 = vld [vmem:[#allocation4 + $0x78] sm:$0xff]
    %v133 = vld [vmem:[#allocation4 + $0x80] sm:$0xff]
    %v134 = vld [vmem:[#allocation4 + $0x88] sm:$0xff]
    %v135 = vld [vmem:[#allocation4 + $0x90] sm:$0xff]
    %v136 = vld [vmem:[#allocation4 + $0x98] sm:$0xff]
    %v137 = vld [vmem:[#allocation4 + $0xa0] sm:$0xff]
    %v138 = vld [vmem:[#allocation4 + $0xa8] sm:$0xff]
    %v139 = vld [vmem:[#allocation4 + $0xb0] sm:$0xff]
    %v140 = vld [vmem:[#allocation4 + $0xb8] sm:$0xff]
    %v141 = vld [vmem:[#allocation4 + $0xc0] sm:$0xff]
    %v142 = vld [vmem:[#allocation4 + $0xc8] sm:$0xff]
    %v143 = vld [vmem:[#allocation4 + $0xd0] sm:$0xff]
    %v144 = vld [vmem:[#allocation4 + $0xd8] sm:$0xff]
    %v145 = vld [vmem:[#allocation4 + $0xe0] sm:$0xff]
    %v146 = vld [vmem:[#allocation4 + $0xe8] sm:$0xff]
    %v147 = vld [vmem:[#allocation4 + $0xf0] sm:$0xff]
    %v148 = vld [vmem:[#allocation4 + $0xf8] sm:$0xff]
    %v149 = vld [vmem:[#allocation4 + $0x100] sm:$0xff]
    %v150 = vld [vmem:[#allocation4 + $0x108] sm:$0xff]
    %v151 = vld [vmem:[#allocation4 + $0x110] sm:$0xff]
    %v152 = vld [vmem:[#allocation4 + $0x118] sm:$0xff]
    %v153 = vld [vmem:[#allocation4 + $0x120] sm:$0xff]
    %v154 = vld [vmem:[#allocation4 + $0x128] sm:$0xff]
    %v155 = vld [vmem:[#allocation4 + $0x130] sm:$0xff]
    %v156 = vld [vmem:[#allocation4 + $0x138] sm:$0xff]
    %v157 = vld [vmem:[#allocation4 + $0x140] sm:$0xff]
    %v158 = vld [vmem:[#allocation4 + $0x148] sm:$0xff]
    %v159 = vld [vmem:[#allocation4 + $0x150] sm:$0xff]
    %v160 = vld [vmem:[#allocation4 + $0x158] sm:$0xff]
    %v161 = vld [vmem:[#allocation4 + $0x160] sm:$0xff]
    %v162 = vld [vmem:[#allocation4 + $0x168] sm:$0xff]
    %v163 = vld [vmem:[#allocation4 + $0x170] sm:$0xff]
    %v164 = vld [vmem:[#allocation4 + $0x178] sm:$0xff]
    %v165 = vld [vmem:[#allocation4 + $0x180] sm:$0xff]
    %v166 = vld [vmem:[#allocation4 + $0x188] sm:$0xff]
    %v167 = vld [vmem:[#allocation4 + $0x190] sm:$0xff]
    %v168 = vld [vmem:[#allocation4 + $0x198] sm:$0xff]
    %v169 = vld [vmem:[#allocation4 + $0x1a0] sm:$0xff]
    %v170 = vld [vmem:[#allocation4 + $0x1a8] sm:$0xff]
    %v171 = vld [vmem:[#allocation4 + $0x1b0] sm:$0xff]
    %v172 = vld [vmem:[#allocation4 + $0x1b8] sm:$0xff]
    %v173 = vld [vmem:[#allocation4 + $0x1c0] sm:$0xff]
    %v174 = vld [vmem:[#allocation4 + $0x1c8] sm:$0xff]
    %v175 = vld [vmem:[#allocation4 + $0x1d0] sm:$0xff]
    %v176 = vld [vmem:[#allocation4 + $0x1d8] sm:$0xff]
    %v177 = vld [vmem:[#allocation4 + $0x1e0] sm:$0xff]
    %v178 = vld [vmem:[#allocation4 + $0x1e8] sm:$0xff]
    %v179 = vld [vmem:[#allocation4 + $0x1f0] sm:$0xff]
    %v180 = vld [vmem:[#allocation4 + $0x1f8] sm:$0xff]
    %v181 = vld [vmem:[#allocation4 + $0x200] sm:$0xff]
    %v182 = vld [vmem:[#allocation4 + $0x208] sm:$0xff]
    %v183 = vld [vmem:[#allocation4 + $0x210] sm:$0xff]
    %v184 = vld [vmem:[#allocation4 + $0x218] sm:$0xff]
    %v185 = vld [vmem:[#allocation4 + $0x220] sm:$0xff]
    %v186 = vld [vmem:[#allocation4 + $0x228] sm:$0xff]
    %v187 = vld [vmem:[#allocation4 + $0x230] sm:$0xff]
    %v188 = vld [vmem:[#allocation4 + $0x238] sm:$0xff]
    %v189 = vld [vmem:[#allocation4 + $0x240] sm:$0xff]
    %v190 = vld [vmem:[#allocation4 + $0x248] sm:$0xff]
    %v191 = vld [vmem:[#allocation4 + $0x250] sm:$0xff]
    %v192 = vld [vmem:[#allocation4 + $0x258] sm:$0xff]
    %v193 = vld [vmem:[#allocation4 + $0x260] sm:$0xff]
    %v194 = vld [vmem:[#allocation4 + $0x268] sm:$0xff]
    %v195 = vld [vmem:[#allocation4 + $0x270] sm:$0xff]
    %v196 = vld [vmem:[#allocation4 + $0x278] sm:$0xff]
    %v197 = vld [vmem:[#allocation4 + $0x280] sm:$0xff]
    %v198 = vld [vmem:[#allocation4 + $0x288] sm:$0xff]
    %v199 = vld [vmem:[#allocation4 + $0x290] sm:$0xff]
    %v200 = vld [vmem:[#allocation4 + $0x298] sm:$0xff]
    %v201 = vld [vmem:[#allocation4 + $0x2a0] sm:$0xff]
    %v202 = vld [vmem:[#allocation4 + $0x2a8] sm:$0xff]
    %v203 = vld [vmem:[#allocation4 + $0x2b0] sm:$0xff]
    %v204 = vld [vmem:[#allocation4 + $0x2b8] sm:$0xff]
    %v205 = vld [vmem:[#allocation4 + $0x2c0] sm:$0xff]
    %v206 = vld [vmem:[#allocation4 + $0x2c8] sm:$0xff]
    %v207 = vld [vmem:[#allocation4 + $0x2d0] sm:$0xff]
    %v208 = vld [vmem:[#allocation4 + $0x2d8] sm:$0xff]
    %v209 = vld [vmem:[#allocation4 + $0x2e0] sm:$0xff]
    %v210 = vld [vmem:[#allocation4 + $0x2e8] sm:$0xff]
    %v211 = vld [vmem:[#allocation4 + $0x2f0] sm:$0xff]
    %v212 = vld [vmem:[#allocation4 + $0x2f8] sm:$0xff]
    %v213 = vld [vmem:[#allocation4 + $0x300] sm:$0xff]
    %v214 = vld [vmem:[#allocation4 + $0x308] sm:$0xff]
    %v215 = vld [vmem:[#allocation4 + $0x310] sm:$0xff]
    %v216 = vld [vmem:[#allocation4 + $0x318] sm:$0xff]
    %v217 = vld [vmem:[#allocation4 + $0x320] sm:$0xff]
    %v218 = vld [vmem:[#allocation4 + $0x328] sm:$0xff]
    %v219 = vld [vmem:[#allocation4 + $0x330] sm:$0xff]
    %v220 = vld [vmem:[#allocation4 + $0x338] sm:$0xff]
    %v221 = vld [vmem:[#allocation4 + $0x340] sm:$0xff]
    %v222 = vld [vmem:[#allocation4 + $0x348] sm:$0xff]
    %v223 = vld [vmem:[#allocation4 + $0x350] sm:$0xff]
    %v224 = vld [vmem:[#allocation4 + $0x358] sm:$0xff]
    %v225 = vld [vmem:[#allocation4 + $0x360] sm:$0xff]
    %v226 = vld [vmem:[#allocation4 + $0x368] sm:$0xff]
    %v227 = vld [vmem:[#allocation4 + $0x370] sm:$0xff]
    %v228 = vld [vmem:[#allocation4 + $0x378] sm:$0xff]
    %v229 = vld [vmem:[#allocation4 + $0x380] sm:$0xff]
    %v230 = vld [vmem:[#allocation4 + $0x388] sm:$0xff]
    %v231 = vld [vmem:[#allocation4 + $0x390] sm:$0xff]
    %v232 = vld [vmem:[#allocation4 + $0x398] sm:$0xff]
    %v233 = vld [vmem:[#allocation4 + $0x3a0] sm:$0xff]
    %v234 = vld [vmem:[#allocation4 + $0x3a8] sm:$0xff]
    %v235 = vld [vmem:[#allocation4 + $0x3b0] sm:$0xff]
    %v236 = vld [vmem:[#allocation4 + $0x3b8] sm:$0xff]
    %v237 = vld [vmem:[#allocation4 + $0x3c0] sm:$0xff]
    %v238 = vld [vmem:[#allocation4 + $0x3c8] sm:$0xff]
    %v239 = vld [vmem:[#allocation4 + $0x3d0] sm:$0xff]
    %v240 = vld [vmem:[#allocation4 + $0x3d8] sm:$0xff]
    %v241 = vld [vmem:[#allocation4 + $0x3e0] sm:$0xff]
    %v242 = vld [vmem:[#allocation4 + $0x3e8] sm:$0xff]
    %v243 = vld [vmem:[#allocation4 + $0x3f0] sm:$0xff]
    %v244 = vld [vmem:[#allocation4 + $0x3f8] sm:$0xff]
    %v245 = vld [vmem:[#allocation4 + $0x400] sm:$0xff]
    %v246 = vld [vmem:[#allocation4 + $0x408] sm:$0xff]
    %v247 = vld [vmem:[#allocation4 + $0x410] sm:$0xff]
    %v248 = vld [vmem:[#allocation4 + $0x418] sm:$0xff]
    %v249 = vld [vmem:[#allocation4 + $0x420] sm:$0xff]
    %v250 = vld [vmem:[#allocation4 + $0x428] sm:$0xff]
    %v251 = vld [vmem:[#allocation4 + $0x430] sm:$0xff]
    %v252 = vld [vmem:[#allocation4 + $0x438] sm:$0xff]
    %v253 = vld [vmem:[#allocation4 + $0x440] sm:$0xff]
    %v254 = vld [vmem:[#allocation4 + $0x448] sm:$0xff]
    %v255 = vld [vmem:[#allocation4 + $0x450] sm:$0xff]
    %v256 = vld [vmem:[#allocation4 + $0x458] sm:$0xff]
    %v257 = vld [vmem:[#allocation4 + $0x460] sm:$0xff]
    %v258 = vld [vmem:[#allocation4 + $0x468] sm:$0xff]
    %v259 = vld [vmem:[#allocation4 + $0x470] sm:$0xff]
    %v260 = vld [vmem:[#allocation4 + $0x478] sm:$0xff]
    %v261 = vld [vmem:[#allocation4 + $0x480] sm:$0xff]
    %v262 = vld [vmem:[#allocation4 + $0x488] sm:$0xff]
    %v263 = vld [vmem:[#allocation4 + $0x490] sm:$0xff]
    %v264 = vld [vmem:[#allocation4 + $0x498] sm:$0xff]
    %v265 = vld [vmem:[#allocation4 + $0x4a0] sm:$0xff]
    %v266 = vld [vmem:[#allocation4 + $0x4a8] sm:$0xff]
    %v267 = vld [vmem:[#allocation4 + $0x4b0] sm:$0xff]
    %v268 = vld [vmem:[#allocation4 + $0x4b8] sm:$0xff]
    %v269 = vld [vmem:[#allocation4 + $0x4c0] sm:$0xff]
    %v270 = vld [vmem:[#allocation4 + $0x4c8] sm:$0xff]
    %v271 = vld [vmem:[#allocation4 + $0x4d0] sm:$0xff]
    %v272 = vld [vmem:[#allocation4 + $0x4d8] sm:$0xff]
    %v273 = vld [vmem:[#allocation4 + $0x4e0] sm:$0xff]
    %v274 = vld [vmem:[#allocation4 + $0x4e8] sm:$0xff]
    %v275 = vld [vmem:[#allocation4 + $0x4f0] sm:$0xff]
    %v276 = vld [vmem:[#allocation4 + $0x4f8] sm:$0xff]
    %v277 = vld [vmem:[#allocation4 + $0x500] sm:$0xff]
    %v278 = vld [vmem:[#allocation4 + $0x508] sm:$0xff]
    %v279 = vld [vmem:[#allocation4 + $0x510] sm:$0xff]
    %v280 = vld [vmem:[#allocation4 + $0x518] sm:$0xff]
    %v281 = vld [vmem:[#allocation4 + $0x520] sm:$0xff]
    %v282 = vld [vmem:[#allocation4 + $0x528] sm:$0xff]
    %v283 = vld [vmem:[#allocation4 + $0x530] sm:$0xff]
    %v284 = vld [vmem:[#allocation4 + $0x538] sm:$0xff]
    %v285 = vld [vmem:[#allocation4 + $0x540] sm:$0xff]
    %v286 = vld [vmem:[#allocation4 + $0x548] sm:$0xff]
    %v287 = vld [vmem:[#allocation4 + $0x550] sm:$0xff]
    %v288 = vld [vmem:[#allocation4 + $0x558] sm:$0xff]
    %v289 = vld [vmem:[#allocation4 + $0x560] sm:$0xff]
    %v290 = vld [vmem:[#allocation4 + $0x568] sm:$0xff]
    %v291 = vld [vmem:[#allocation4 + $0x570] sm:$0xff]
    %v292 = vld [vmem:[#allocation4 + $0x578] sm:$0xff]
    %v293 = vld [vmem:[#allocation4 + $0x580] sm:$0xff]
    %v294 = vld [vmem:[#allocation4 + $0x588] sm:$0xff]
    %v295 = vld [vmem:[#allocation4 + $0x590] sm:$0xff]
    %v296 = vld [vmem:[#allocation4 + $0x598] sm:$0xff]
    %v297 = vld [vmem:[#allocation4 + $0x5a0] sm:$0xff]
    %v298 = vld [vmem:[#allocation4 + $0x5a8] sm:$0xff]
    %v299 = vld [vmem:[#allocation4 + $0x5b0] sm:$0xff]
    %v300 = vld [vmem:[#allocation4 + $0x5b8] sm:$0xff]
    %v301 = vld [vmem:[#allocation4 + $0x5c0] sm:$0xff]
    %v302 = vld [vmem:[#allocation4 + $0x5c8] sm:$0xff]
    %v303 = vld [vmem:[#allocation4 + $0x5d0] sm:$0xff]
    %v304 = vld [vmem:[#allocation4 + $0x5d8] sm:$0xff]
    %v305 = vld [vmem:[#allocation4 + $0x5e0] sm:$0xff]
    %v306 = vld [vmem:[#allocation4 + $0x5e8] sm:$0xff]
    %v307 = vld [vmem:[#allocation4 + $0x5f0] sm:$0xff]
    %v308 = vld [vmem:[#allocation4 + $0x5f8] sm:$0xff]
    %v309 = vld [vmem:[#allocation4 + $0x600] sm:$0xff]
    %v310 = vld [vmem:[#allocation4 + $0x608] sm:$0xff]
    %v311 = vld [vmem:[#allocation4 + $0x610] sm:$0xff]
    %v312 = vld [vmem:[#allocation4 + $0x618] sm:$0xff]
    %v313 = vld [vmem:[#allocation4 + $0x620] sm:$0xff]
    %v314 = vld [vmem:[#allocation4 + $0x628] sm:$0xff]
    %v315 = vld [vmem:[#allocation4 + $0x630] sm:$0xff]
    %v316 = vld [vmem:[#allocation4 + $0x638] sm:$0xff]
    %v317 = vld [vmem:[#allocation4 + $0x640] sm:$0xff]
    %v318 = vld [vmem:[#allocation4 + $0x648] sm:$0xff]
    %v319 = vld [vmem:[#allocation4 + $0x650] sm:$0xff]
    %v320 = vld [vmem:[#allocation4 + $0x658] sm:$0xff]
    %v321 = vld [vmem:[#allocation4 + $0x660] sm:$0xff]
    %v322 = vld [vmem:[#allocation4 + $0x668] sm:$0xff]
    %v323 = vld [vmem:[#allocation4 + $0x670] sm:$0xff]
    %v324 = vld [vmem:[#allocation4 + $0x678] sm:$0xff]
    %v325 = vld [vmem:[#allocation4 + $0x680] sm:$0xff]
    %v326 = vld [vmem:[#allocation4 + $0x688] sm:$0xff]
    %v327 = vld [vmem:[#allocation4 + $0x690] sm:$0xff]
    %v328 = vld [vmem:[#allocation4 + $0x698] sm:$0xff]
    %v329 = vld [vmem:[#allocation4 + $0x6a0] sm:$0xff]
    %v330 = vld [vmem:[#allocation4 + $0x6a8] sm:$0xff]
    %v331 = vld [vmem:[#allocation4 + $0x6b0] sm:$0xff]
    %v332 = vld [vmem:[#allocation4 + $0x6b8] sm:$0xff]
    %v333 = vld [vmem:[#allocation4 + $0x6c0] sm:$0xff]
    %v334 = vld [vmem:[#allocation4 + $0x6c8] sm:$0xff]
    %v335 = vld [vmem:[#allocation4 + $0x6d0] sm:$0xff]
    %v336 = vld [vmem:[#allocation4 + $0x6d8] sm:$0xff]
    %v337 = vld [vmem:[#allocation4 + $0x6e0] sm:$0xff]
    %v338 = vld [vmem:[#allocation4 + $0x6e8] sm:$0xff]
    %v339 = vld [vmem:[#allocation4 + $0x6f0] sm:$0xff]
    %v340 = vld [vmem:[#allocation4 + $0x6f8] sm:$0xff]
    %v341 = vld [vmem:[#allocation4 + $0x700] sm:$0xff]
    %v342 = vld [vmem:[#allocation4 + $0x708] sm:$0xff]
    %v343 = vld [vmem:[#allocation4 + $0x710] sm:$0xff]
    %v344 = vld [vmem:[#allocation4 + $0x718] sm:$0xff]
    %v345 = vld [vmem:[#allocation4 + $0x720] sm:$0xff]
    %v346 = vld [vmem:[#allocation4 + $0x728] sm:$0xff]
    %v347 = vld [vmem:[#allocation4 + $0x730] sm:$0xff]
    %v348 = vld [vmem:[#allocation4 + $0x738] sm:$0xff]
    %v349 = vld [vmem:[#allocation4 + $0x740] sm:$0xff]
    %v350 = vld [vmem:[#allocation4 + $0x748] sm:$0xff]
    %v351 = vld [vmem:[#allocation4 + $0x750] sm:$0xff]
    %v352 = vld [vmem:[#allocation4 + $0x758] sm:$0xff]
    %v353 = vld [vmem:[#allocation4 + $0x760] sm:$0xff]
    %v354 = vld [vmem:[#allocation4 + $0x768] sm:$0xff]
    %v355 = vld [vmem:[#allocation4 + $0x770] sm:$0xff]
    %v356 = vld [vmem:[#allocation4 + $0x778] sm:$0xff]
    %v357 = vld [vmem:[#allocation4 + $0x780] sm:$0xff]
    %v358 = vld [vmem:[#allocation4 + $0x788] sm:$0xff]
    %v359 = vld [vmem:[#allocation4 + $0x790] sm:$0xff]
    %v360 = vld [vmem:[#allocation4 + $0x798] sm:$0xff]
    %v361 = vld [vmem:[#allocation4 + $0x7a0] sm:$0xff]
    %v362 = vld [vmem:[#allocation4 + $0x7a8] sm:$0xff]
    %v363 = vld [vmem:[#allocation4 + $0x7b0] sm:$0xff]
    %v364 = vld [vmem:[#allocation4 + $0x7b8] sm:$0xff]
    %v365 = vld [vmem:[#allocation4 + $0x7c0] sm:$0xff]
    %v366 = vld [vmem:[#allocation4 + $0x7c8] sm:$0xff]
    %v367 = vld [vmem:[#allocation4 + $0x7d0] sm:$0xff]
    %v368 = vld [vmem:[#allocation4 + $0x7d8] sm:$0xff]
    %v369 = vld [vmem:[#allocation4 + $0x7e0] sm:$0xff]
    %v370 = vld [vmem:[#allocation4 + $0x7e8] sm:$0xff]
    %v371 = vld [vmem:[#allocation4 + $0x7f0] sm:$0xff]
    %v372 = vld [vmem:[#allocation4 + $0x7f8] sm:$0xff]
    %v373 = vld [vmem:[#allocation4 + $0x800] sm:$0xff]
    %v374 = vld [vmem:[#allocation4 + $0x808] sm:$0xff]
    %v375 = vld [vmem:[#allocation4 + $0x810] sm:$0xff]
    %v376 = vld [vmem:[#allocation4 + $0x818] sm:$0xff]
    %v377 = vld [vmem:[#allocation4 + $0x820] sm:$0xff]
    %v378 = vld [vmem:[#allocation4 + $0x828] sm:$0xff]
    %v379 = vld [vmem:[#allocation4 + $0x830] sm:$0xff]
    %v380 = vld [vmem:[#allocation4 + $0x838] sm:$0xff]
    %v381 = vld [vmem:[#allocation4 + $0x840] sm:$0xff]
    %v382 = vld [vmem:[#allocation4 + $0x848] sm:$0xff]
    %v383 = vld [vmem:[#allocation4 + $0x850] sm:$0xff]
    %v384 = vld [vmem:[#allocation4 + $0x858] sm:$0xff]
    %v385 = vld [vmem:[#allocation4 + $0x860] sm:$0xff]
    %v386 = vld [vmem:[#allocation4 + $0x868] sm:$0xff]
    %v387 = vld [vmem:[#allocation4 + $0x870] sm:$0xff]
    %v388 = vld [vmem:[#allocation4 + $0x878] sm:$0xff]
    %v389 = vld [vmem:[#allocation4 + $0x880] sm:$0xff]
    %v390 = vld [vmem:[#allocation4 + $0x888] sm:$0xff]
    %v391 = vld [vmem:[#allocation4 + $0x890] sm:$0xff]
    %v392 = vld [vmem:[#allocation4 + $0x898] sm:$0xff]
    %v393 = vld [vmem:[#allocation4 + $0x8a0] sm:$0xff]
    %v394 = vld [vmem:[#allocation4 + $0x8a8] sm:$0xff]
    %v395 = vld [vmem:[#allocation4 + $0x8b0] sm:$0xff]
    %v396 = vld [vmem:[#allocation4 + $0x8b8] sm:$0xff]
    %v397 = vld [vmem:[#allocation4 + $0x8c0] sm:$0xff]
    %v398 = vld [vmem:[#allocation4 + $0x8c8] sm:$0xff]
    %v399 = vld [vmem:[#allocation4 + $0x8d0] sm:$0xff]
    %v400 = vld [vmem:[#allocation4 + $0x8d8] sm:$0xff]
    %v401 = vld [vmem:[#allocation4 + $0x8e0] sm:$0xff]
    %v402 = vld [vmem:[#allocation4 + $0x8e8] sm:$0xff]
    %v403 = vld [vmem:[#allocation4 + $0x8f0] sm:$0xff]
    %v404 = vld [vmem:[#allocation4 + $0x8f8] sm:$0xff]
    %v405 = vld [vmem:[#allocation4 + $0x900] sm:$0xff]
    %v406 = vld [vmem:[#allocation4 + $0x908] sm:$0xff]
    %v407 = vld [vmem:[#allocation4 + $0x910] sm:$0xff]
    %v408 = vld [vmem:[#allocation4 + $0x918] sm:$0xff]
    %v409 = vld [vmem:[#allocation4 + $0x920] sm:$0xff]
    %v410 = vld [vmem:[#allocation4 + $0x928] sm:$0xff]
    %v411 = vld [vmem:[#allocation4 + $0x930] sm:$0xff]
    %v412 = vld [vmem:[#allocation4 + $0x938] sm:$0xff]
    %v413 = vld [vmem:[#allocation4 + $0x940] sm:$0xff]
    %v414 = vld [vmem:[#allocation4 + $0x948] sm:$0xff]
    %v415 = vld [vmem:[#allocation4 + $0x950] sm:$0xff]
    %v416 = vld [vmem:[#allocation4 + $0x958] sm:$0xff]
    %v417 = vld [vmem:[#allocation4 + $0x960] sm:$0xff]
    %v418 = vld [vmem:[#allocation4 + $0x968] sm:$0xff]
    %v419 = vld [vmem:[#allocation4 + $0x970] sm:$0xff]
    %v420 = vld [vmem:[#allocation4 + $0x978] sm:$0xff]
    %v421 = vld [vmem:[#allocation4 + $0x980] sm:$0xff]
    %v422 = vld [vmem:[#allocation4 + $0x988] sm:$0xff]
    %v423 = vld [vmem:[#allocation4 + $0x990] sm:$0xff]
    %v424 = vld [vmem:[#allocation4 + $0x998] sm:$0xff]
    %v425 = vld [vmem:[#allocation4 + $0x9a0] sm:$0xff]
    %v426 = vld [vmem:[#allocation4 + $0x9a8] sm:$0xff]
    %v427 = vld [vmem:[#allocation4 + $0x9b0] sm:$0xff]
    %v428 = vld [vmem:[#allocation4 + $0x9b8] sm:$0xff]
    %v429 = vld [vmem:[#allocation4 + $0x9c0] sm:$0xff]
    %v430 = vld [vmem:[#allocation4 + $0x9c8] sm:$0xff]
    %v431 = vld [vmem:[#allocation4 + $0x9d0] sm:$0xff]
    %v432 = vld [vmem:[#allocation4 + $0x9d8] sm:$0xff]
    %v433 = vld [vmem:[#allocation4 + $0x9e0] sm:$0xff]
    %v434 = vld [vmem:[#allocation4 + $0x9e8] sm:$0xff]
    %v435 = vld [vmem:[#allocation4 + $0x9f0] sm:$0xff]
    %v436 = vld [vmem:[#allocation4 + $0x9f8] sm:$0xff]
    %v437 = vld [vmem:[#allocation4 + $0xa00] sm:$0xff]
    %v438 = vld [vmem:[#allocation4 + $0xa08] sm:$0xff]
    %v439 = vld [vmem:[#allocation4 + $0xa10] sm:$0xff]
    %v440 = vld [vmem:[#allocation4 + $0xa18] sm:$0xff]
    %v441 = vld [vmem:[#allocation4 + $0xa20] sm:$0xff]
    %v442 = vld [vmem:[#allocation4 + $0xa28] sm:$0xff]
    %v443 = vld [vmem:[#allocation4 + $0xa30] sm:$0xff]
    %v444 = vld [vmem:[#allocation4 + $0xa38] sm:$0xff]
    %v445 = vld [vmem:[#allocation4 + $0xa40] sm:$0xff]
    %v446 = vld [vmem:[#allocation4 + $0xa48] sm:$0xff]
    %v447 = vld [vmem:[#allocation4 + $0xa50] sm:$0xff]
    %v448 = vld [vmem:[#allocation4 + $0xa58] sm:$0xff]
    %v449 = vld [vmem:[#allocation4 + $0xa60] sm:$0xff]
    %v450 = vld [vmem:[#allocation4 + $0xa68] sm:$0xff]
    %v451 = vld [vmem:[#allocation4 + $0xa70] sm:$0xff]
    %v452 = vld [vmem:[#allocation4 + $0xa78] sm:$0xff]
    %v453 = vld [vmem:[#allocation4 + $0xa80] sm:$0xff]
    %v454 = vld [vmem:[#allocation4 + $0xa88] sm:$0xff]
    %v455 = vld [vmem:[#allocation4 + $0xa90] sm:$0xff]
    %v456 = vld [vmem:[#allocation4 + $0xa98] sm:$0xff]
    %v457 = vld [vmem:[#allocation4 + $0xaa0] sm:$0xff]
    %v458 = vld [vmem:[#allocation4 + $0xaa8] sm:$0xff]
    %v459 = vld [vmem:[#allocation4 + $0xab0] sm:$0xff]
    %v460 = vld [vmem:[#allocation4 + $0xab8] sm:$0xff]
    %v461 = vld [vmem:[#allocation4 + $0xac0] sm:$0xff]
    %v462 = vld [vmem:[#allocation4 + $0xac8] sm:$0xff]
    %v463 = vld [vmem:[#allocation4 + $0xad0] sm:$0xff]
    %v464 = vld [vmem:[#allocation4 + $0xad8] sm:$0xff]
    %v465 = vld [vmem:[#allocation4 + $0xae0] sm:$0xff]
    %v466 = vld [vmem:[#allocation4 + $0xae8] sm:$0xff]
    %v467 = vld [vmem:[#allocation4 + $0xaf0] sm:$0xff]
    %v468 = vld [vmem:[#allocation4 + $0xaf8] sm:$0xff]
    %v469 = vld [vmem:[#allocation4 + $0xb00] sm:$0xff]
    %v470 = vld [vmem:[#allocation4 + $0xb08] sm:$0xff]
    %v471 = vld [vmem:[#allocation4 + $0xb10] sm:$0xff]
    %v472 = vld [vmem:[#allocation4 + $0xb18] sm:$0xff]
    %v473 = vld [vmem:[#allocation4 + $0xb20] sm:$0xff]
    %v474 = vld [vmem:[#allocation4 + $0xb28] sm:$0xff]
    %v475 = vld [vmem:[#allocation4 + $0xb30] sm:$0xff]
    %v476 = vld [vmem:[#allocation4 + $0xb38] sm:$0xff]
    %v477 = vld [vmem:[#allocation4 + $0xb40] sm:$0xff]
    %v478 = vld [vmem:[#allocation4 + $0xb48] sm:$0xff]
    %v479 = vld [vmem:[#allocation4 + $0xb50] sm:$0xff]
    %v480 = vld [vmem:[#allocation4 + $0xb58] sm:$0xff]
    %v481 = vld [vmem:[#allocation4 + $0xb60] sm:$0xff]
    %v482 = vld [vmem:[#allocation4 + $0xb68] sm:$0xff]
    %v483 = vld [vmem:[#allocation4 + $0xb70] sm:$0xff]
    %v484 = vld [vmem:[#allocation4 + $0xb78] sm:$0xff]
    %v485 = vld [vmem:[#allocation4 + $0xb80] sm:$0xff]
    %v486 = vld [vmem:[#allocation4 + $0xb88] sm:$0xff]
    %v487 = vld [vmem:[#allocation4 + $0xb90] sm:$0xff]
    %v488 = vld [vmem:[#allocation4 + $0xb98] sm:$0xff]
    %v489 = vld [vmem:[#allocation4 + $0xba0] sm:$0xff]
    %v490 = vld [vmem:[#allocation4 + $0xba8] sm:$0xff]
    %v491 = vld [vmem:[#allocation4 + $0xbb0] sm:$0xff]
    %v492 = vld [vmem:[#allocation4 + $0xbb8] sm:$0xff]
    %v493 = vld [vmem:[#allocation4 + $0xbc0] sm:$0xff]
    %v494 = vld [vmem:[#allocation4 + $0xbc8] sm:$0xff]
    %v495 = vld [vmem:[#allocation4 + $0xbd0] sm:$0xff]
    %v496 = vld [vmem:[#allocation4 + $0xbd8] sm:$0xff]
    %v497 = vld [vmem:[#allocation4 + $0xbe0] sm:$0xff]
    %v498 = vld [vmem:[#allocation4 + $0xbe8] sm:$0xff]
    %v499 = vld [vmem:[#allocation4 + $0xbf0] sm:$0xff]
    %v500 = vld [vmem:[#allocation4 + $0xbf8] sm:$0xff]
    %v501 = vld [vmem:[#allocation4 + $0xc00] sm:$0xff]
    %v502 = vld [vmem:[#allocation4 + $0xc08] sm:$0xff]
    %v503 = vld [vmem:[#allocation4 + $0xc10] sm:$0xff]
    %v504 = vld [vmem:[#allocation4 + $0xc18] sm:$0xff]
    %v505 = vld [vmem:[#allocation4 + $0xc20] sm:$0xff]
    %v506 = vld [vmem:[#allocation4 + $0xc28] sm:$0xff]
    %v507 = vld [vmem:[#allocation4 + $0xc30] sm:$0xff]
    %v508 = vld [vmem:[#allocation4 + $0xc38] sm:$0xff]
    %v509 = vld [vmem:[#allocation6] sm:$0xff]
    %v511 = vlaneseq
    %v512 = vshrl.u32 %v511, 7
    %v513 = vsub.s32 0, %v512
    %v514 = vrot.slane %v509, %v513
    %v515 = vlaneseq
    %v516 = vshrl.u32 %v515, 7
    %v517 = vsub.s32 1, %v516
    %v518 = vrot.slane %v509, %v517
    %v519 = vlaneseq
    %v520 = vshrl.u32 %v519, 7
    %v521 = vsub.s32 2, %v520
    %v522 = vrot.slane %v509, %v521
    %v523 = vlaneseq
    %v524 = vshrl.u32 %v523, 7
    %v525 = vsub.s32 3, %v524
    %v526 = vrot.slane %v509, %v525
    %v527 = vlaneseq
    %v528 = vshrl.u32 %v527, 7
    %v529 = vsub.s32 4, %v528
    %v530 = vrot.slane %v509, %v529
    %v531 = vlaneseq
    %v532 = vshrl.u32 %v531, 7
    %v533 = vsub.s32 5, %v532
    %v534 = vrot.slane %v509, %v533
    %v535 = vlaneseq
    %v536 = vshrl.u32 %v535, 7
    %v537 = vsub.s32 6, %v536
    %v538 = vrot.slane %v509, %v537
    %v539 = vlaneseq
    %v540 = vshrl.u32 %v539, 7
    %v541 = vsub.s32 7, %v540
    %v542 = vrot.slane %v509, %v541
    %v943 = vunpack.c.l.b16 %v117
    %v944 = vunpack.c.h.b16 %v117
    %v945 = vunpack.c.l.b16 %v118
    %v946 = vunpack.c.h.b16 %v118
    %v947 = vunpack.c.l.b16 %v119
    %v948 = vunpack.c.h.b16 %v119
    %v949 = vunpack.c.l.b16 %v120
    %v950 = vunpack.c.h.b16 %v120
    %v951 = vunpack.c.l.b16 %v121
    %v952 = vunpack.c.h.b16 %v121
    %v953 = vunpack.c.l.b16 %v122
    %v954 = vunpack.c.h.b16 %v122
    %v955 = vunpack.c.l.b16 %v123
    %v956 = vunpack.c.h.b16 %v123
    %v957 = vunpack.c.l.b16 %v124
    %v958 = vunpack.c.h.b16 %v124
    %v959 = vunpack.c.l.b16 %v125
    %v960 = vunpack.c.h.b16 %v125
    %v961 = vunpack.c.l.b16 %v126
    %v962 = vunpack.c.h.b16 %v126
    %v963 = vunpack.c.l.b16 %v127
    %v964 = vunpack.c.h.b16 %v127
    %v965 = vunpack.c.l.b16 %v128
    %v966 = vunpack.c.h.b16 %v128
    %v967 = vunpack.c.l.b16 %v129
    %v968 = vunpack.c.h.b16 %v129
    %v969 = vunpack.c.l.b16 %v130
    %v970 = vunpack.c.h.b16 %v130
    %v971 = vunpack.c.l.b16 %v131
    %v972 = vunpack.c.h.b16 %v131
    %v973 = vunpack.c.l.b16 %v132
    %v974 = vunpack.c.h.b16 %v132
    %v975 = vunpack.c.l.b16 %v133
    %v976 = vunpack.c.h.b16 %v133
    %v977 = vunpack.c.l.b16 %v134
    %v978 = vunpack.c.h.b16 %v134
    %v979 = vunpack.c.l.b16 %v135
    %v980 = vunpack.c.h.b16 %v135
    %v981 = vunpack.c.l.b16 %v136
    %v982 = vunpack.c.h.b16 %v136
    %v983 = vunpack.c.l.b16 %v137
    %v984 = vunpack.c.h.b16 %v137
    %v985 = vunpack.c.l.b16 %v138
    %v986 = vunpack.c.h.b16 %v138
    %v987 = vunpack.c.l.b16 %v139
    %v988 = vunpack.c.h.b16 %v139
    %v989 = vunpack.c.l.b16 %v140
    %v990 = vunpack.c.h.b16 %v140
    %v991 = vunpack.c.l.b16 %v141
    %v992 = vunpack.c.h.b16 %v141
    %v993 = vunpack.c.l.b16 %v142
    %v994 = vunpack.c.h.b16 %v142
    %v995 = vunpack.c.l.b16 %v143
    %v996 = vunpack.c.h.b16 %v143
    %v997 = vunpack.c.l.b16 %v144
    %v998 = vunpack.c.h.b16 %v144
    %v999 = vunpack.c.l.b16 %v145
    %v1000 = vunpack.c.h.b16 %v145
    %v1001 = vunpack.c.l.b16 %v146
    %v1002 = vunpack.c.h.b16 %v146
    %v1003 = vunpack.c.l.b16 %v147
    %v1004 = vunpack.c.h.b16 %v147
    %v1005 = vunpack.c.l.b16 %v148
    %v1006 = vunpack.c.h.b16 %v148
    %v1007 = vunpack.c.l.b16 %v149
    %v1008 = vunpack.c.h.b16 %v149
    %v1009 = vunpack.c.l.b16 %v150
    %v1010 = vunpack.c.h.b16 %v150
    %v1011 = vunpack.c.l.b16 %v151
    %v1012 = vunpack.c.h.b16 %v151
    %v1013 = vunpack.c.l.b16 %v152
    %v1014 = vunpack.c.h.b16 %v152
    %v1015 = vunpack.c.l.b16 %v153
    %v1016 = vunpack.c.h.b16 %v153
    %v1017 = vunpack.c.l.b16 %v154
    %v1018 = vunpack.c.h.b16 %v154
    %v1019 = vunpack.c.l.b16 %v155
    %v1020 = vunpack.c.h.b16 %v155
    %v1021 = vunpack.c.l.b16 %v156
    %v1022 = vunpack.c.h.b16 %v156
    %v1023 = vunpack.c.l.b16 %v157
    %v1024 = vunpack.c.h.b16 %v157
    %v1025 = vunpack.c.l.b16 %v158
    %v1026 = vunpack.c.h.b16 %v158
    %v1027 = vunpack.c.l.b16 %v159
    %v1028 = vunpack.c.h.b16 %v159
    %v1029 = vunpack.c.l.b16 %v160
    %v1030 = vunpack.c.h.b16 %v160
    %v1031 = vunpack.c.l.b16 %v161
    %v1032 = vunpack.c.h.b16 %v161
    %v1033 = vunpack.c.l.b16 %v162
    %v1034 = vunpack.c.h.b16 %v162
    %v1035 = vunpack.c.l.b16 %v163
    %v1036 = vunpack.c.h.b16 %v163
    %v1037 = vunpack.c.l.b16 %v164
    %v1038 = vunpack.c.h.b16 %v164
    %v1039 = vunpack.c.l.b16 %v165
    %v1040 = vunpack.c.h.b16 %v165
    %v1041 = vunpack.c.l.b16 %v166
    %v1042 = vunpack.c.h.b16 %v166
    %v1043 = vunpack.c.l.b16 %v167
    %v1044 = vunpack.c.h.b16 %v167
    %v1045 = vunpack.c.l.b16 %v168
    %v1046 = vunpack.c.h.b16 %v168
    %v1047 = vunpack.c.l.b16 %v169
    %v1048 = vunpack.c.h.b16 %v169
    %v1049 = vunpack.c.l.b16 %v170
    %v1050 = vunpack.c.h.b16 %v170
    %v1051 = vunpack.c.l.b16 %v171
    %v1052 = vunpack.c.h.b16 %v171
    %v1053 = vunpack.c.l.b16 %v172
    %v1054 = vunpack.c.h.b16 %v172
    %v1055 = vunpack.c.l.b16 %v173
    %v1056 = vunpack.c.h.b16 %v173
    %v1057 = vunpack.c.l.b16 %v174
    %v1058 = vunpack.c.h.b16 %v174
    %v1059 = vunpack.c.l.b16 %v175
    %v1060 = vunpack.c.h.b16 %v175
    %v1061 = vunpack.c.l.b16 %v176
    %v1062 = vunpack.c.h.b16 %v176
    %v1063 = vunpack.c.l.b16 %v177
    %v1064 = vunpack.c.h.b16 %v177
    %v1065 = vunpack.c.l.b16 %v178
    %v1066 = vunpack.c.h.b16 %v178
    %v1067 = vunpack.c.l.b16 %v179
    %v1068 = vunpack.c.h.b16 %v179
    %v1069 = vunpack.c.l.b16 %v180
    %v1070 = vunpack.c.h.b16 %v180
    %v1071 = vunpack.c.l.b16 %v181
    %v1072 = vunpack.c.h.b16 %v181
    %v1073 = vunpack.c.l.b16 %v182
    %v1074 = vunpack.c.h.b16 %v182
    %v1075 = vunpack.c.l.b16 %v183
    %v1076 = vunpack.c.h.b16 %v183
    %v1077 = vunpack.c.l.b16 %v184
    %v1078 = vunpack.c.h.b16 %v184
    %v1079 = vunpack.c.l.b16 %v185
    %v1080 = vunpack.c.h.b16 %v185
    %v1081 = vunpack.c.l.b16 %v186
    %v1082 = vunpack.c.h.b16 %v186
    %v1083 = vunpack.c.l.b16 %v187
    %v1084 = vunpack.c.h.b16 %v187
    %v1085 = vunpack.c.l.b16 %v188
    %v1086 = vunpack.c.h.b16 %v188
    %v1087 = vunpack.c.l.b16 %v189
    %v1088 = vunpack.c.h.b16 %v189
    %v1089 = vunpack.c.l.b16 %v190
    %v1090 = vunpack.c.h.b16 %v190
    %v1091 = vunpack.c.l.b16 %v191
    %v1092 = vunpack.c.h.b16 %v191
    %v1093 = vunpack.c.l.b16 %v192
    %v1094 = vunpack.c.h.b16 %v192
    %v1095 = vunpack.c.l.b16 %v193
    %v1096 = vunpack.c.h.b16 %v193
    %v1097 = vunpack.c.l.b16 %v194
    %v1098 = vunpack.c.h.b16 %v194
    %v1099 = vunpack.c.l.b16 %v195
    %v1100 = vunpack.c.h.b16 %v195
    %v1101 = vunpack.c.l.b16 %v196
    %v1102 = vunpack.c.h.b16 %v196
    %v1103 = vunpack.c.l.b16 %v197
    %v1104 = vunpack.c.h.b16 %v197
    %v1105 = vunpack.c.l.b16 %v198
    %v1106 = vunpack.c.h.b16 %v198
    %v1107 = vunpack.c.l.b16 %v199
    %v1108 = vunpack.c.h.b16 %v199
    %v1109 = vunpack.c.l.b16 %v200
    %v1110 = vunpack.c.h.b16 %v200
    %v1111 = vunpack.c.l.b16 %v201
    %v1112 = vunpack.c.h.b16 %v201
    %v1113 = vunpack.c.l.b16 %v202
    %v1114 = vunpack.c.h.b16 %v202
    %v1115 = vunpack.c.l.b16 %v203
    %v1116 = vunpack.c.h.b16 %v203
    %v1117 = vunpack.c.l.b16 %v204
    %v1118 = vunpack.c.h.b16 %v204
    %v1119 = vunpack.c.l.b16 %v205
    %v1120 = vunpack.c.h.b16 %v205
    %v1121 = vunpack.c.l.b16 %v206
    %v1122 = vunpack.c.h.b16 %v206
    %v1123 = vunpack.c.l.b16 %v207
    %v1124 = vunpack.c.h.b16 %v207
    %v1125 = vunpack.c.l.b16 %v208
    %v1126 = vunpack.c.h.b16 %v208
    %v1127 = vunpack.c.l.b16 %v209
    %v1128 = vunpack.c.h.b16 %v209
    %v1129 = vunpack.c.l.b16 %v210
    %v1130 = vunpack.c.h.b16 %v210
    %v1131 = vunpack.c.l.b16 %v211
    %v1132 = vunpack.c.h.b16 %v211
    %v1133 = vunpack.c.l.b16 %v212
    %v1134 = vunpack.c.h.b16 %v212
    %v1135 = vunpack.c.l.b16 %v213
    %v1136 = vunpack.c.h.b16 %v213
    %v1137 = vunpack.c.l.b16 %v214
    %v1138 = vunpack.c.h.b16 %v214
    %v1139 = vunpack.c.l.b16 %v215
    %v1140 = vunpack.c.h.b16 %v215
    %v1141 = vunpack.c.l.b16 %v216
    %v1142 = vunpack.c.h.b16 %v216
    %v1143 = vunpack.c.l.b16 %v217
    %v1144 = vunpack.c.h.b16 %v217
    %v1145 = vunpack.c.l.b16 %v218
    %v1146 = vunpack.c.h.b16 %v218
    %v1147 = vunpack.c.l.b16 %v219
    %v1148 = vunpack.c.h.b16 %v219
    %v1149 = vunpack.c.l.b16 %v220
    %v1150 = vunpack.c.h.b16 %v220
    %v1151 = vunpack.c.l.b16 %v221
    %v1152 = vunpack.c.h.b16 %v221
    %v1153 = vunpack.c.l.b16 %v222
    %v1154 = vunpack.c.h.b16 %v222
    %v1155 = vunpack.c.l.b16 %v223
    %v1156 = vunpack.c.h.b16 %v223
    %v1157 = vunpack.c.l.b16 %v224
    %v1158 = vunpack.c.h.b16 %v224
    %v1159 = vunpack.c.l.b16 %v225
    %v1160 = vunpack.c.h.b16 %v225
    %v1161 = vunpack.c.l.b16 %v226
    %v1162 = vunpack.c.h.b16 %v226
    %v1163 = vunpack.c.l.b16 %v227
    %v1164 = vunpack.c.h.b16 %v227
    %v1165 = vunpack.c.l.b16 %v228
    %v1166 = vunpack.c.h.b16 %v228
    %v1167 = vunpack.c.l.b16 %v229
    %v1168 = vunpack.c.h.b16 %v229
    %v1169 = vunpack.c.l.b16 %v230
    %v1170 = vunpack.c.h.b16 %v230
    %v1171 = vunpack.c.l.b16 %v231
    %v1172 = vunpack.c.h.b16 %v231
    %v1173 = vunpack.c.l.b16 %v232
    %v1174 = vunpack.c.h.b16 %v232
    %v1175 = vunpack.c.l.b16 %v233
    %v1176 = vunpack.c.h.b16 %v233
    %v1177 = vunpack.c.l.b16 %v234
    %v1178 = vunpack.c.h.b16 %v234
    %v1179 = vunpack.c.l.b16 %v235
    %v1180 = vunpack.c.h.b16 %v235
    %v1181 = vunpack.c.l.b16 %v236
    %v1182 = vunpack.c.h.b16 %v236
    %v1183 = vunpack.c.l.b16 %v237
    %v1184 = vunpack.c.h.b16 %v237
    %v1185 = vunpack.c.l.b16 %v238
    %v1186 = vunpack.c.h.b16 %v238
    %v1187 = vunpack.c.l.b16 %v239
    %v1188 = vunpack.c.h.b16 %v239
    %v1189 = vunpack.c.l.b16 %v240
    %v1190 = vunpack.c.h.b16 %v240
    %v1191 = vunpack.c.l.b16 %v241
    %v1192 = vunpack.c.h.b16 %v241
    %v1193 = vunpack.c.l.b16 %v242
    %v1194 = vunpack.c.h.b16 %v242
    %v1195 = vunpack.c.l.b16 %v243
    %v1196 = vunpack.c.h.b16 %v243
    %v1197 = vunpack.c.l.b16 %v244
    %v1198 = vunpack.c.h.b16 %v244
    %v1199 = vunpack.c.l.b16 %v245
    %v1200 = vunpack.c.h.b16 %v245
    %v1201 = vunpack.c.l.b16 %v246
    %v1202 = vunpack.c.h.b16 %v246
    %v1203 = vunpack.c.l.b16 %v247
    %v1204 = vunpack.c.h.b16 %v247
    %v1205 = vunpack.c.l.b16 %v248
    %v1206 = vunpack.c.h.b16 %v248
    %v1207 = vunpack.c.l.b16 %v249
    %v1208 = vunpack.c.h.b16 %v249
    %v1209 = vunpack.c.l.b16 %v250
    %v1210 = vunpack.c.h.b16 %v250
    %v1211 = vunpack.c.l.b16 %v251
    %v1212 = vunpack.c.h.b16 %v251
    %v1213 = vunpack.c.l.b16 %v252
    %v1214 = vunpack.c.h.b16 %v252
    %v1215 = vunpack.c.l.b16 %v253
    %v1216 = vunpack.c.h.b16 %v253
    %v1217 = vunpack.c.l.b16 %v254
    %v1218 = vunpack.c.h.b16 %v254
    %v1219 = vunpack.c.l.b16 %v255
    %v1220 = vunpack.c.h.b16 %v255
    %v1221 = vunpack.c.l.b16 %v256
    %v1222 = vunpack.c.h.b16 %v256
    %v1223 = vunpack.c.l.b16 %v257
    %v1224 = vunpack.c.h.b16 %v257
    %v1225 = vunpack.c.l.b16 %v258
    %v1226 = vunpack.c.h.b16 %v258
    %v1227 = vunpack.c.l.b16 %v259
    %v1228 = vunpack.c.h.b16 %v259
    %v1229 = vunpack.c.l.b16 %v260
    %v1230 = vunpack.c.h.b16 %v260
    %v1231 = vunpack.c.l.b16 %v261
    %v1232 = vunpack.c.h.b16 %v261
    %v1233 = vunpack.c.l.b16 %v262
    %v1234 = vunpack.c.h.b16 %v262
    %v1235 = vunpack.c.l.b16 %v263
    %v1236 = vunpack.c.h.b16 %v263
    %v1237 = vunpack.c.l.b16 %v264
    %v1238 = vunpack.c.h.b16 %v264
    %v1239 = vunpack.c.l.b16 %v265
    %v1240 = vunpack.c.h.b16 %v265
    %v1241 = vunpack.c.l.b16 %v266
    %v1242 = vunpack.c.h.b16 %v266
    %v1243 = vunpack.c.l.b16 %v267
    %v1244 = vunpack.c.h.b16 %v267
    %v1245 = vunpack.c.l.b16 %v268
    %v1246 = vunpack.c.h.b16 %v268
    %v1247 = vunpack.c.l.b16 %v269
    %v1248 = vunpack.c.h.b16 %v269
    %v1249 = vunpack.c.l.b16 %v270
    %v1250 = vunpack.c.h.b16 %v270
    %v1251 = vunpack.c.l.b16 %v271
    %v1252 = vunpack.c.h.b16 %v271
    %v1253 = vunpack.c.l.b16 %v272
    %v1254 = vunpack.c.h.b16 %v272
    %v1255 = vunpack.c.l.b16 %v273
    %v1256 = vunpack.c.h.b16 %v273
    %v1257 = vunpack.c.l.b16 %v274
    %v1258 = vunpack.c.h.b16 %v274
    %v1259 = vunpack.c.l.b16 %v275
    %v1260 = vunpack.c.h.b16 %v275
    %v1261 = vunpack.c.l.b16 %v276
    %v1262 = vunpack.c.h.b16 %v276
    %v1263 = vunpack.c.l.b16 %v277
    %v1264 = vunpack.c.h.b16 %v277
    %v1265 = vunpack.c.l.b16 %v278
    %v1266 = vunpack.c.h.b16 %v278
    %v1267 = vunpack.c.l.b16 %v279
    %v1268 = vunpack.c.h.b16 %v279
    %v1269 = vunpack.c.l.b16 %v280
    %v1270 = vunpack.c.h.b16 %v280
    %v1271 = vunpack.c.l.b16 %v281
    %v1272 = vunpack.c.h.b16 %v281
    %v1273 = vunpack.c.l.b16 %v282
    %v1274 = vunpack.c.h.b16 %v282
    %v1275 = vunpack.c.l.b16 %v283
    %v1276 = vunpack.c.h.b16 %v283
    %v1277 = vunpack.c.l.b16 %v284
    %v1278 = vunpack.c.h.b16 %v284
    %v1279 = vunpack.c.l.b16 %v285
    %v1280 = vunpack.c.h.b16 %v285
    %v1281 = vunpack.c.l.b16 %v286
    %v1282 = vunpack.c.h.b16 %v286
    %v1283 = vunpack.c.l.b16 %v287
    %v1284 = vunpack.c.h.b16 %v287
    %v1285 = vunpack.c.l.b16 %v288
    %v1286 = vunpack.c.h.b16 %v288
    %v1287 = vunpack.c.l.b16 %v289
    %v1288 = vunpack.c.h.b16 %v289
    %v1289 = vunpack.c.l.b16 %v290
    %v1290 = vunpack.c.h.b16 %v290
    %v1291 = vunpack.c.l.b16 %v291
    %v1292 = vunpack.c.h.b16 %v291
    %v1293 = vunpack.c.l.b16 %v292
    %v1294 = vunpack.c.h.b16 %v292
    %v1295 = vunpack.c.l.b16 %v293
    %v1296 = vunpack.c.h.b16 %v293
    %v1297 = vunpack.c.l.b16 %v294
    %v1298 = vunpack.c.h.b16 %v294
    %v1299 = vunpack.c.l.b16 %v295
    %v1300 = vunpack.c.h.b16 %v295
    %v1301 = vunpack.c.l.b16 %v296
    %v1302 = vunpack.c.h.b16 %v296
    %v1303 = vunpack.c.l.b16 %v297
    %v1304 = vunpack.c.h.b16 %v297
    %v1305 = vunpack.c.l.b16 %v298
    %v1306 = vunpack.c.h.b16 %v298
    %v1307 = vunpack.c.l.b16 %v299
    %v1308 = vunpack.c.h.b16 %v299
    %v1309 = vunpack.c.l.b16 %v300
    %v1310 = vunpack.c.h.b16 %v300
    %v1311 = vunpack.c.l.b16 %v301
    %v1312 = vunpack.c.h.b16 %v301
    %v1313 = vunpack.c.l.b16 %v302
    %v1314 = vunpack.c.h.b16 %v302
    %v1315 = vunpack.c.l.b16 %v303
    %v1316 = vunpack.c.h.b16 %v303
    %v1317 = vunpack.c.l.b16 %v304
    %v1318 = vunpack.c.h.b16 %v304
    %v1319 = vunpack.c.l.b16 %v305
    %v1320 = vunpack.c.h.b16 %v305
    %v1321 = vunpack.c.l.b16 %v306
    %v1322 = vunpack.c.h.b16 %v306
    %v1323 = vunpack.c.l.b16 %v307
    %v1324 = vunpack.c.h.b16 %v307
    %v1325 = vunpack.c.l.b16 %v308
    %v1326 = vunpack.c.h.b16 %v308
    %v1327 = vunpack.c.l.b16 %v309
    %v1328 = vunpack.c.h.b16 %v309
    %v1329 = vunpack.c.l.b16 %v310
    %v1330 = vunpack.c.h.b16 %v310
    %v1331 = vunpack.c.l.b16 %v311
    %v1332 = vunpack.c.h.b16 %v311
    %v1333 = vunpack.c.l.b16 %v312
    %v1334 = vunpack.c.h.b16 %v312
    %v1335 = vunpack.c.l.b16 %v313
    %v1336 = vunpack.c.h.b16 %v313
    %v1337 = vunpack.c.l.b16 %v314
    %v1338 = vunpack.c.h.b16 %v314
    %v1339 = vunpack.c.l.b16 %v315
    %v1340 = vunpack.c.h.b16 %v315
    %v1341 = vunpack.c.l.b16 %v316
    %v1342 = vunpack.c.h.b16 %v316
    %v1343 = vunpack.c.l.b16 %v317
    %v1344 = vunpack.c.h.b16 %v317
    %v1345 = vunpack.c.l.b16 %v318
    %v1346 = vunpack.c.h.b16 %v318
    %v1347 = vunpack.c.l.b16 %v319
    %v1348 = vunpack.c.h.b16 %v319
    %v1349 = vunpack.c.l.b16 %v320
    %v1350 = vunpack.c.h.b16 %v320
    %v1351 = vunpack.c.l.b16 %v321
    %v1352 = vunpack.c.h.b16 %v321
    %v1353 = vunpack.c.l.b16 %v322
    %v1354 = vunpack.c.h.b16 %v322
    %v1355 = vunpack.c.l.b16 %v323
    %v1356 = vunpack.c.h.b16 %v323
    %v1357 = vunpack.c.l.b16 %v324
    %v1358 = vunpack.c.h.b16 %v324
    %v1359 = vunpack.c.l.b16 %v325
    %v1360 = vunpack.c.h.b16 %v325
    %v1361 = vunpack.c.l.b16 %v326
    %v1362 = vunpack.c.h.b16 %v326
    %v1363 = vunpack.c.l.b16 %v327
    %v1364 = vunpack.c.h.b16 %v327
    %v1365 = vunpack.c.l.b16 %v328
    %v1366 = vunpack.c.h.b16 %v328
    %v1367 = vunpack.c.l.b16 %v329
    %v1368 = vunpack.c.h.b16 %v329
    %v1369 = vunpack.c.l.b16 %v330
    %v1370 = vunpack.c.h.b16 %v330
    %v1371 = vunpack.c.l.b16 %v331
    %v1372 = vunpack.c.h.b16 %v331
    %v1373 = vunpack.c.l.b16 %v332
    %v1374 = vunpack.c.h.b16 %v332
    %v1375 = vunpack.c.l.b16 %v333
    %v1376 = vunpack.c.h.b16 %v333
    %v1377 = vunpack.c.l.b16 %v334
    %v1378 = vunpack.c.h.b16 %v334
    %v1379 = vunpack.c.l.b16 %v335
    %v1380 = vunpack.c.h.b16 %v335
    %v1381 = vunpack.c.l.b16 %v336
    %v1382 = vunpack.c.h.b16 %v336
    %v1383 = vunpack.c.l.b16 %v337
    %v1384 = vunpack.c.h.b16 %v337
    %v1385 = vunpack.c.l.b16 %v338
    %v1386 = vunpack.c.h.b16 %v338
    %v1387 = vunpack.c.l.b16 %v339
    %v1388 = vunpack.c.h.b16 %v339
    %v1389 = vunpack.c.l.b16 %v340
    %v1390 = vunpack.c.h.b16 %v340
    %v1391 = vunpack.c.l.b16 %v341
    %v1392 = vunpack.c.h.b16 %v341
    %v1393 = vunpack.c.l.b16 %v342
    %v1394 = vunpack.c.h.b16 %v342
    %v1395 = vunpack.c.l.b16 %v343
    %v1396 = vunpack.c.h.b16 %v343
    %v1397 = vunpack.c.l.b16 %v344
    %v1398 = vunpack.c.h.b16 %v344
    %v1399 = vunpack.c.l.b16 %v345
    %v1400 = vunpack.c.h.b16 %v345
    %v1401 = vunpack.c.l.b16 %v346
    %v1402 = vunpack.c.h.b16 %v346
    %v1403 = vunpack.c.l.b16 %v347
    %v1404 = vunpack.c.h.b16 %v347
    %v1405 = vunpack.c.l.b16 %v348
    %v1406 = vunpack.c.h.b16 %v348
    %v1407 = vunpack.c.l.b16 %v349
    %v1408 = vunpack.c.h.b16 %v349
    %v1409 = vunpack.c.l.b16 %v350
    %v1410 = vunpack.c.h.b16 %v350
    %v1411 = vunpack.c.l.b16 %v351
    %v1412 = vunpack.c.h.b16 %v351
    %v1413 = vunpack.c.l.b16 %v352
    %v1414 = vunpack.c.h.b16 %v352
    %v1415 = vunpack.c.l.b16 %v353
    %v1416 = vunpack.c.h.b16 %v353
    %v1417 = vunpack.c.l.b16 %v354
    %v1418 = vunpack.c.h.b16 %v354
    %v1419 = vunpack.c.l.b16 %v355
    %v1420 = vunpack.c.h.b16 %v355
    %v1421 = vunpack.c.l.b16 %v356
    %v1422 = vunpack.c.h.b16 %v356
    %v1423 = vunpack.c.l.b16 %v357
    %v1424 = vunpack.c.h.b16 %v357
    %v1425 = vunpack.c.l.b16 %v358
    %v1426 = vunpack.c.h.b16 %v358
    %v1427 = vunpack.c.l.b16 %v359
    %v1428 = vunpack.c.h.b16 %v359
    %v1429 = vunpack.c.l.b16 %v360
    %v1430 = vunpack.c.h.b16 %v360
    %v1431 = vunpack.c.l.b16 %v361
    %v1432 = vunpack.c.h.b16 %v361
    %v1433 = vunpack.c.l.b16 %v362
    %v1434 = vunpack.c.h.b16 %v362
    %v1435 = vunpack.c.l.b16 %v363
    %v1436 = vunpack.c.h.b16 %v363
    %v1437 = vunpack.c.l.b16 %v364
    %v1438 = vunpack.c.h.b16 %v364
    %v1439 = vunpack.c.l.b16 %v365
    %v1440 = vunpack.c.h.b16 %v365
    %v1441 = vunpack.c.l.b16 %v366
    %v1442 = vunpack.c.h.b16 %v366
    %v1443 = vunpack.c.l.b16 %v367
    %v1444 = vunpack.c.h.b16 %v367
    %v1445 = vunpack.c.l.b16 %v368
    %v1446 = vunpack.c.h.b16 %v368
    %v1447 = vunpack.c.l.b16 %v369
    %v1448 = vunpack.c.h.b16 %v369
    %v1449 = vunpack.c.l.b16 %v370
    %v1450 = vunpack.c.h.b16 %v370
    %v1451 = vunpack.c.l.b16 %v371
    %v1452 = vunpack.c.h.b16 %v371
    %v1453 = vunpack.c.l.b16 %v372
    %v1454 = vunpack.c.h.b16 %v372
    %v1455 = vunpack.c.l.b16 %v373
    %v1456 = vunpack.c.h.b16 %v373
    %v1457 = vunpack.c.l.b16 %v374
    %v1458 = vunpack.c.h.b16 %v374
    %v1459 = vunpack.c.l.b16 %v375
    %v1460 = vunpack.c.h.b16 %v375
    %v1461 = vunpack.c.l.b16 %v376
    %v1462 = vunpack.c.h.b16 %v376
    %v1463 = vunpack.c.l.b16 %v377
    %v1464 = vunpack.c.h.b16 %v377
    %v1465 = vunpack.c.l.b16 %v378
    %v1466 = vunpack.c.h.b16 %v378
    %v1467 = vunpack.c.l.b16 %v379
    %v1468 = vunpack.c.h.b16 %v379
    %v1469 = vunpack.c.l.b16 %v380
    %v1470 = vunpack.c.h.b16 %v380
    %v1471 = vunpack.c.l.b16 %v381
    %v1472 = vunpack.c.h.b16 %v381
    %v1473 = vunpack.c.l.b16 %v382
    %v1474 = vunpack.c.h.b16 %v382
    %v1475 = vunpack.c.l.b16 %v383
    %v1476 = vunpack.c.h.b16 %v383
    %v1477 = vunpack.c.l.b16 %v384
    %v1478 = vunpack.c.h.b16 %v384
    %v1479 = vunpack.c.l.b16 %v385
    %v1480 = vunpack.c.h.b16 %v385
    %v1481 = vunpack.c.l.b16 %v386
    %v1482 = vunpack.c.h.b16 %v386
    %v1483 = vunpack.c.l.b16 %v387
    %v1484 = vunpack.c.h.b16 %v387
    %v1485 = vunpack.c.l.b16 %v388
    %v1486 = vunpack.c.h.b16 %v388
    %v1487 = vunpack.c.l.b16 %v389
    %v1488 = vunpack.c.h.b16 %v389
    %v1489 = vunpack.c.l.b16 %v390
    %v1490 = vunpack.c.h.b16 %v390
    %v1491 = vunpack.c.l.b16 %v391
    %v1492 = vunpack.c.h.b16 %v391
    %v1493 = vunpack.c.l.b16 %v392
    %v1494 = vunpack.c.h.b16 %v392
    %v1495 = vunpack.c.l.b16 %v393
    %v1496 = vunpack.c.h.b16 %v393
    %v1497 = vunpack.c.l.b16 %v394
    %v1498 = vunpack.c.h.b16 %v394
    %v1499 = vunpack.c.l.b16 %v395
    %v1500 = vunpack.c.h.b16 %v395
    %v1501 = vunpack.c.l.b16 %v396
    %v1502 = vunpack.c.h.b16 %v396
    %v1503 = vunpack.c.l.b16 %v397
    %v1504 = vunpack.c.h.b16 %v397
    %v1505 = vunpack.c.l.b16 %v398
    %v1506 = vunpack.c.h.b16 %v398
    %v1507 = vunpack.c.l.b16 %v399
    %v1508 = vunpack.c.h.b16 %v399
    %v1509 = vunpack.c.l.b16 %v400
    %v1510 = vunpack.c.h.b16 %v400
    %v1511 = vunpack.c.l.b16 %v401
    %v1512 = vunpack.c.h.b16 %v401
    %v1513 = vunpack.c.l.b16 %v402
    %v1514 = vunpack.c.h.b16 %v402
    %v1515 = vunpack.c.l.b16 %v403
    %v1516 = vunpack.c.h.b16 %v403
    %v1517 = vunpack.c.l.b16 %v404
    %v1518 = vunpack.c.h.b16 %v404
    %v1519 = vunpack.c.l.b16 %v405
    %v1520 = vunpack.c.h.b16 %v405
    %v1521 = vunpack.c.l.b16 %v406
    %v1522 = vunpack.c.h.b16 %v406
    %v1523 = vunpack.c.l.b16 %v407
    %v1524 = vunpack.c.h.b16 %v407
    %v1525 = vunpack.c.l.b16 %v408
    %v1526 = vunpack.c.h.b16 %v408
    %v1527 = vunpack.c.l.b16 %v409
    %v1528 = vunpack.c.h.b16 %v409
    %v1529 = vunpack.c.l.b16 %v410
    %v1530 = vunpack.c.h.b16 %v410
    %v1531 = vunpack.c.l.b16 %v411
    %v1532 = vunpack.c.h.b16 %v411
    %v1533 = vunpack.c.l.b16 %v412
    %v1534 = vunpack.c.h.b16 %v412
    %v1535 = vunpack.c.l.b16 %v413
    %v1536 = vunpack.c.h.b16 %v413
    %v1537 = vunpack.c.l.b16 %v414
    %v1538 = vunpack.c.h.b16 %v414
    %v1539 = vunpack.c.l.b16 %v415
    %v1540 = vunpack.c.h.b16 %v415
    %v1541 = vunpack.c.l.b16 %v416
    %v1542 = vunpack.c.h.b16 %v416
    %v1543 = vunpack.c.l.b16 %v417
    %v1544 = vunpack.c.h.b16 %v417
    %v1545 = vunpack.c.l.b16 %v418
    %v1546 = vunpack.c.h.b16 %v418
    %v1547 = vunpack.c.l.b16 %v419
    %v1548 = vunpack.c.h.b16 %v419
    %v1549 = vunpack.c.l.b16 %v420
    %v1550 = vunpack.c.h.b16 %v420
    %v1551 = vunpack.c.l.b16 %v421
    %v1552 = vunpack.c.h.b16 %v421
    %v1553 = vunpack.c.l.b16 %v422
    %v1554 = vunpack.c.h.b16 %v422
    %v1555 = vunpack.c.l.b16 %v423
    %v1556 = vunpack.c.h.b16 %v423
    %v1557 = vunpack.c.l.b16 %v424
    %v1558 = vunpack.c.h.b16 %v424
    %v1559 = vunpack.c.l.b16 %v425
    %v1560 = vunpack.c.h.b16 %v425
    %v1561 = vunpack.c.l.b16 %v426
    %v1562 = vunpack.c.h.b16 %v426
    %v1563 = vunpack.c.l.b16 %v427
    %v1564 = vunpack.c.h.b16 %v427
    %v1565 = vunpack.c.l.b16 %v428
    %v1566 = vunpack.c.h.b16 %v428
    %v1567 = vunpack.c.l.b16 %v429
    %v1568 = vunpack.c.h.b16 %v429
    %v1569 = vunpack.c.l.b16 %v430
    %v1570 = vunpack.c.h.b16 %v430
    %v1571 = vunpack.c.l.b16 %v431
    %v1572 = vunpack.c.h.b16 %v431
    %v1573 = vunpack.c.l.b16 %v432
    %v1574 = vunpack.c.h.b16 %v432
    %v1575 = vunpack.c.l.b16 %v433
    %v1576 = vunpack.c.h.b16 %v433
    %v1577 = vunpack.c.l.b16 %v434
    %v1578 = vunpack.c.h.b16 %v434
    %v1579 = vunpack.c.l.b16 %v435
    %v1580 = vunpack.c.h.b16 %v435
    %v1581 = vunpack.c.l.b16 %v436
    %v1582 = vunpack.c.h.b16 %v436
    %v1583 = vunpack.c.l.b16 %v437
    %v1584 = vunpack.c.h.b16 %v437
    %v1585 = vunpack.c.l.b16 %v438
    %v1586 = vunpack.c.h.b16 %v438
    %v1587 = vunpack.c.l.b16 %v439
    %v1588 = vunpack.c.h.b16 %v439
    %v1589 = vunpack.c.l.b16 %v440
    %v1590 = vunpack.c.h.b16 %v440
    %v1591 = vunpack.c.l.b16 %v441
    %v1592 = vunpack.c.h.b16 %v441
    %v1593 = vunpack.c.l.b16 %v442
    %v1594 = vunpack.c.h.b16 %v442
    %v1595 = vunpack.c.l.b16 %v443
    %v1596 = vunpack.c.h.b16 %v443
    %v1597 = vunpack.c.l.b16 %v444
    %v1598 = vunpack.c.h.b16 %v444
    %v1599 = vunpack.c.l.b16 %v445
    %v1600 = vunpack.c.h.b16 %v445
    %v1601 = vunpack.c.l.b16 %v446
    %v1602 = vunpack.c.h.b16 %v446
    %v1603 = vunpack.c.l.b16 %v447
    %v1604 = vunpack.c.h.b16 %v447
    %v1605 = vunpack.c.l.b16 %v448
    %v1606 = vunpack.c.h.b16 %v448
    %v1607 = vunpack.c.l.b16 %v449
    %v1608 = vunpack.c.h.b16 %v449
    %v1609 = vunpack.c.l.b16 %v450
    %v1610 = vunpack.c.h.b16 %v450
    %v1611 = vunpack.c.l.b16 %v451
    %v1612 = vunpack.c.h.b16 %v451
    %v1613 = vunpack.c.l.b16 %v452
    %v1614 = vunpack.c.h.b16 %v452
    %v1615 = vunpack.c.l.b16 %v453
    %v1616 = vunpack.c.h.b16 %v453
    %v1617 = vunpack.c.l.b16 %v454
    %v1618 = vunpack.c.h.b16 %v454
    %v1619 = vunpack.c.l.b16 %v455
    %v1620 = vunpack.c.h.b16 %v455
    %v1621 = vunpack.c.l.b16 %v456
    %v1622 = vunpack.c.h.b16 %v456
    %v1623 = vunpack.c.l.b16 %v457
    %v1624 = vunpack.c.h.b16 %v457
    %v1625 = vunpack.c.l.b16 %v458
    %v1626 = vunpack.c.h.b16 %v458
    %v1627 = vunpack.c.l.b16 %v459
    %v1628 = vunpack.c.h.b16 %v459
    %v1629 = vunpack.c.l.b16 %v460
    %v1630 = vunpack.c.h.b16 %v460
    %v1631 = vunpack.c.l.b16 %v461
    %v1632 = vunpack.c.h.b16 %v461
    %v1633 = vunpack.c.l.b16 %v462
    %v1634 = vunpack.c.h.b16 %v462
    %v1635 = vunpack.c.l.b16 %v463
    %v1636 = vunpack.c.h.b16 %v463
    %v1637 = vunpack.c.l.b16 %v464
    %v1638 = vunpack.c.h.b16 %v464
    %v1639 = vunpack.c.l.b16 %v465
    %v1640 = vunpack.c.h.b16 %v465
    %v1641 = vunpack.c.l.b16 %v466
    %v1642 = vunpack.c.h.b16 %v466
    %v1643 = vunpack.c.l.b16 %v467
    %v1644 = vunpack.c.h.b16 %v467
    %v1645 = vunpack.c.l.b16 %v468
    %v1646 = vunpack.c.h.b16 %v468
    %v1647 = vunpack.c.l.b16 %v469
    %v1648 = vunpack.c.h.b16 %v469
    %v1649 = vunpack.c.l.b16 %v470
    %v1650 = vunpack.c.h.b16 %v470
    %v1651 = vunpack.c.l.b16 %v471
    %v1652 = vunpack.c.h.b16 %v471
    %v1653 = vunpack.c.l.b16 %v472
    %v1654 = vunpack.c.h.b16 %v472
    %v1655 = vunpack.c.l.b16 %v473
    %v1656 = vunpack.c.h.b16 %v473
    %v1657 = vunpack.c.l.b16 %v474
    %v1658 = vunpack.c.h.b16 %v474
    %v1659 = vunpack.c.l.b16 %v475
    %v1660 = vunpack.c.h.b16 %v475
    %v1661 = vunpack.c.l.b16 %v476
    %v1662 = vunpack.c.h.b16 %v476
    %v1663 = vunpack.c.l.b16 %v477
    %v1664 = vunpack.c.h.b16 %v477
    %v1665 = vunpack.c.l.b16 %v478
    %v1666 = vunpack.c.h.b16 %v478
    %v1667 = vunpack.c.l.b16 %v479
    %v1668 = vunpack.c.h.b16 %v479
    %v1669 = vunpack.c.l.b16 %v480
    %v1670 = vunpack.c.h.b16 %v480
    %v1671 = vunpack.c.l.b16 %v481
    %v1672 = vunpack.c.h.b16 %v481
    %v1673 = vunpack.c.l.b16 %v482
    %v1674 = vunpack.c.h.b16 %v482
    %v1675 = vunpack.c.l.b16 %v483
    %v1676 = vunpack.c.h.b16 %v483
    %v1677 = vunpack.c.l.b16 %v484
    %v1678 = vunpack.c.h.b16 %v484
    %v1679 = vunpack.c.l.b16 %v485
    %v1680 = vunpack.c.h.b16 %v485
    %v1681 = vunpack.c.l.b16 %v486
    %v1682 = vunpack.c.h.b16 %v486
    %v1683 = vunpack.c.l.b16 %v487
    %v1684 = vunpack.c.h.b16 %v487
    %v1685 = vunpack.c.l.b16 %v488
    %v1686 = vunpack.c.h.b16 %v488
    %v1687 = vunpack.c.l.b16 %v489
    %v1688 = vunpack.c.h.b16 %v489
    %v1689 = vunpack.c.l.b16 %v490
    %v1690 = vunpack.c.h.b16 %v490
    %v1691 = vunpack.c.l.b16 %v491
    %v1692 = vunpack.c.h.b16 %v491
    %v1693 = vunpack.c.l.b16 %v492
    %v1694 = vunpack.c.h.b16 %v492
    %v1695 = vunpack.c.l.b16 %v493
    %v1696 = vunpack.c.h.b16 %v493
    %v1697 = vunpack.c.l.b16 %v494
    %v1698 = vunpack.c.h.b16 %v494
    %v1699 = vunpack.c.l.b16 %v495
    %v1700 = vunpack.c.h.b16 %v495
    %v1701 = vunpack.c.l.b16 %v496
    %v1702 = vunpack.c.h.b16 %v496
    %v1703 = vunpack.c.l.b16 %v497
    %v1704 = vunpack.c.h.b16 %v497
    %v1705 = vunpack.c.l.b16 %v498
    %v1706 = vunpack.c.h.b16 %v498
    %v1707 = vunpack.c.l.b16 %v499
    %v1708 = vunpack.c.h.b16 %v499
    %v1709 = vunpack.c.l.b16 %v500
    %v1710 = vunpack.c.h.b16 %v500
    %v1711 = vunpack.c.l.b16 %v501
    %v1712 = vunpack.c.h.b16 %v501
    %v1713 = vunpack.c.l.b16 %v502
    %v1714 = vunpack.c.h.b16 %v502
    %v1715 = vunpack.c.l.b16 %v503
    %v1716 = vunpack.c.h.b16 %v503
    %v1717 = vunpack.c.l.b16 %v504
    %v1718 = vunpack.c.h.b16 %v504
    %v1719 = vunpack.c.l.b16 %v505
    %v1720 = vunpack.c.h.b16 %v505
    %v1721 = vunpack.c.l.b16 %v506
    %v1722 = vunpack.c.h.b16 %v506
    %v1723 = vunpack.c.l.b16 %v507
    %v1724 = vunpack.c.h.b16 %v507
    %v1725 = vunpack.c.l.b16 %v508
    %v1726 = vunpack.c.h.b16 %v508
    %v1727 = vpack.c.b16 %v951, %v943
    %v1728 = vpack.c.b16 %v952, %v944
    %v1729 = vpack.c.b16 %v953, %v945
    %v1730 = vpack.c.b16 %v954, %v946
    %v1731 = vpack.c.b16 %v955, %v947
    %v1732 = vpack.c.b16 %v956, %v948
    %v1733 = vpack.c.b16 %v957, %v949
    %v1734 = vpack.c.b16 %v958, %v950
    %v1735 = vpack.c.b16 %v967, %v959
    %v1736 = vpack.c.b16 %v968, %v960
    %v1737 = vpack.c.b16 %v969, %v961
    %v1738 = vpack.c.b16 %v970, %v962
    %v1739 = vpack.c.b16 %v971, %v963
    %v1740 = vpack.c.b16 %v972, %v964
    %v1741 = vpack.c.b16 %v973, %v965
    %v1742 = vpack.c.b16 %v974, %v966
    %v1743 = vpack.c.b16 %v983, %v975
    %v1744 = vpack.c.b16 %v984, %v976
    %v1745 = vpack.c.b16 %v985, %v977
    %v1746 = vpack.c.b16 %v986, %v978
    %v1747 = vpack.c.b16 %v987, %v979
    %v1748 = vpack.c.b16 %v988, %v980
    %v1749 = vpack.c.b16 %v989, %v981
    %v1750 = vpack.c.b16 %v990, %v982
    %v1751 = vpack.c.b16 %v999, %v991
    %v1752 = vpack.c.b16 %v1000, %v992
    %v1753 = vpack.c.b16 %v1001, %v993
    %v1754 = vpack.c.b16 %v1002, %v994
    %v1755 = vpack.c.b16 %v1003, %v995
    %v1756 = vpack.c.b16 %v1004, %v996
    %v1757 = vpack.c.b16 %v1005, %v997
    %v1758 = vpack.c.b16 %v1006, %v998
    %v1759 = vpack.c.b16 %v1015, %v1007
    %v1760 = vpack.c.b16 %v1016, %v1008
    %v1761 = vpack.c.b16 %v1017, %v1009
    %v1762 = vpack.c.b16 %v1018, %v1010
    %v1763 = vpack.c.b16 %v1019, %v1011
    %v1764 = vpack.c.b16 %v1020, %v1012
    %v1765 = vpack.c.b16 %v1021, %v1013
    %v1766 = vpack.c.b16 %v1022, %v1014
    %v1767 = vpack.c.b16 %v1031, %v1023
    %v1768 = vpack.c.b16 %v1032, %v1024
    %v1769 = vpack.c.b16 %v1033, %v1025
    %v1770 = vpack.c.b16 %v1034, %v1026
    %v1771 = vpack.c.b16 %v1035, %v1027
    %v1772 = vpack.c.b16 %v1036, %v1028
    %v1773 = vpack.c.b16 %v1037, %v1029
    %v1774 = vpack.c.b16 %v1038, %v1030
    %v1775 = vpack.c.b16 %v1047, %v1039
    %v1776 = vpack.c.b16 %v1048, %v1040
    %v1777 = vpack.c.b16 %v1049, %v1041
    %v1778 = vpack.c.b16 %v1050, %v1042
    %v1779 = vpack.c.b16 %v1051, %v1043
    %v1780 = vpack.c.b16 %v1052, %v1044
    %v1781 = vpack.c.b16 %v1053, %v1045
    %v1782 = vpack.c.b16 %v1054, %v1046
    %v1783 = vpack.c.b16 %v1063, %v1055
    %v1784 = vpack.c.b16 %v1064, %v1056
    %v1785 = vpack.c.b16 %v1065, %v1057
    %v1786 = vpack.c.b16 %v1066, %v1058
    %v1787 = vpack.c.b16 %v1067, %v1059
    %v1788 = vpack.c.b16 %v1068, %v1060
    %v1789 = vpack.c.b16 %v1069, %v1061
    %v1790 = vpack.c.b16 %v1070, %v1062
    %v1791 = vpack.c.b16 %v1079, %v1071
    %v1792 = vpack.c.b16 %v1080, %v1072
    %v1793 = vpack.c.b16 %v1081, %v1073
    %v1794 = vpack.c.b16 %v1082, %v1074
    %v1795 = vpack.c.b16 %v1083, %v1075
    %v1796 = vpack.c.b16 %v1084, %v1076
    %v1797 = vpack.c.b16 %v1085, %v1077
    %v1798 = vpack.c.b16 %v1086, %v1078
    %v1799 = vpack.c.b16 %v1095, %v1087
    %v1800 = vpack.c.b16 %v1096, %v1088
    %v1801 = vpack.c.b16 %v1097, %v1089
    %v1802 = vpack.c.b16 %v1098, %v1090
    %v1803 = vpack.c.b16 %v1099, %v1091
    %v1804 = vpack.c.b16 %v1100, %v1092
    %v1805 = vpack.c.b16 %v1101, %v1093
    %v1806 = vpack.c.b16 %v1102, %v1094
    %v1807 = vpack.c.b16 %v1111, %v1103
    %v1808 = vpack.c.b16 %v1112, %v1104
    %v1809 = vpack.c.b16 %v1113, %v1105
    %v1810 = vpack.c.b16 %v1114, %v1106
    %v1811 = vpack.c.b16 %v1115, %v1107
    %v1812 = vpack.c.b16 %v1116, %v1108
    %v1813 = vpack.c.b16 %v1117, %v1109
    %v1814 = vpack.c.b16 %v1118, %v1110
    %v1815 = vpack.c.b16 %v1127, %v1119
    %v1816 = vpack.c.b16 %v1128, %v1120
    %v1817 = vpack.c.b16 %v1129, %v1121
    %v1818 = vpack.c.b16 %v1130, %v1122
    %v1819 = vpack.c.b16 %v1131, %v1123
    %v1820 = vpack.c.b16 %v1132, %v1124
    %v1821 = vpack.c.b16 %v1133, %v1125
    %v1822 = vpack.c.b16 %v1134, %v1126
    %v1823 = vpack.c.b16 %v1143, %v1135
    %v1824 = vpack.c.b16 %v1144, %v1136
    %v1825 = vpack.c.b16 %v1145, %v1137
    %v1826 = vpack.c.b16 %v1146, %v1138
    %v1827 = vpack.c.b16 %v1147, %v1139
    %v1828 = vpack.c.b16 %v1148, %v1140
    %v1829 = vpack.c.b16 %v1149, %v1141
    %v1830 = vpack.c.b16 %v1150, %v1142
    %v1831 = vpack.c.b16 %v1159, %v1151
    %v1832 = vpack.c.b16 %v1160, %v1152
    %v1833 = vpack.c.b16 %v1161, %v1153
    %v1834 = vpack.c.b16 %v1162, %v1154
    %v1835 = vpack.c.b16 %v1163, %v1155
    %v1836 = vpack.c.b16 %v1164, %v1156
    %v1837 = vpack.c.b16 %v1165, %v1157
    %v1838 = vpack.c.b16 %v1166, %v1158
    %v1839 = vpack.c.b16 %v1175, %v1167
    %v1840 = vpack.c.b16 %v1176, %v1168
    %v1841 = vpack.c.b16 %v1177, %v1169
    %v1842 = vpack.c.b16 %v1178, %v1170
    %v1843 = vpack.c.b16 %v1179, %v1171
    %v1844 = vpack.c.b16 %v1180, %v1172
    %v1845 = vpack.c.b16 %v1181, %v1173
    %v1846 = vpack.c.b16 %v1182, %v1174
    %v1847 = vpack.c.b16 %v1191, %v1183
    %v1848 = vpack.c.b16 %v1192, %v1184
    %v1849 = vpack.c.b16 %v1193, %v1185
    %v1850 = vpack.c.b16 %v1194, %v1186
    %v1851 = vpack.c.b16 %v1195, %v1187
    %v1852 = vpack.c.b16 %v1196, %v1188
    %v1853 = vpack.c.b16 %v1197, %v1189
    %v1854 = vpack.c.b16 %v1198, %v1190
    %v1855 = vpack.c.b16 %v1207, %v1199
    %v1856 = vpack.c.b16 %v1208, %v1200
    %v1857 = vpack.c.b16 %v1209, %v1201
    %v1858 = vpack.c.b16 %v1210, %v1202
    %v1859 = vpack.c.b16 %v1211, %v1203
    %v1860 = vpack.c.b16 %v1212, %v1204
    %v1861 = vpack.c.b16 %v1213, %v1205
    %v1862 = vpack.c.b16 %v1214, %v1206
    %v1863 = vpack.c.b16 %v1223, %v1215
    %v1864 = vpack.c.b16 %v1224, %v1216
    %v1865 = vpack.c.b16 %v1225, %v1217
    %v1866 = vpack.c.b16 %v1226, %v1218
    %v1867 = vpack.c.b16 %v1227, %v1219
    %v1868 = vpack.c.b16 %v1228, %v1220
    %v1869 = vpack.c.b16 %v1229, %v1221
    %v1870 = vpack.c.b16 %v1230, %v1222
    %v1871 = vpack.c.b16 %v1239, %v1231
    %v1872 = vpack.c.b16 %v1240, %v1232
    %v1873 = vpack.c.b16 %v1241, %v1233
    %v1874 = vpack.c.b16 %v1242, %v1234
    %v1875 = vpack.c.b16 %v1243, %v1235
    %v1876 = vpack.c.b16 %v1244, %v1236
    %v1877 = vpack.c.b16 %v1245, %v1237
    %v1878 = vpack.c.b16 %v1246, %v1238
    %v1879 = vpack.c.b16 %v1255, %v1247
    %v1880 = vpack.c.b16 %v1256, %v1248
    %v1881 = vpack.c.b16 %v1257, %v1249
    %v1882 = vpack.c.b16 %v1258, %v1250
    %v1883 = vpack.c.b16 %v1259, %v1251
    %v1884 = vpack.c.b16 %v1260, %v1252
    %v1885 = vpack.c.b16 %v1261, %v1253
    %v1886 = vpack.c.b16 %v1262, %v1254
    %v1887 = vpack.c.b16 %v1271, %v1263
    %v1888 = vpack.c.b16 %v1272, %v1264
    %v1889 = vpack.c.b16 %v1273, %v1265
    %v1890 = vpack.c.b16 %v1274, %v1266
    %v1891 = vpack.c.b16 %v1275, %v1267
    %v1892 = vpack.c.b16 %v1276, %v1268
    %v1893 = vpack.c.b16 %v1277, %v1269
    %v1894 = vpack.c.b16 %v1278, %v1270
    %v1895 = vpack.c.b16 %v1287, %v1279
    %v1896 = vpack.c.b16 %v1288, %v1280
    %v1897 = vpack.c.b16 %v1289, %v1281
    %v1898 = vpack.c.b16 %v1290, %v1282
    %v1899 = vpack.c.b16 %v1291, %v1283
    %v1900 = vpack.c.b16 %v1292, %v1284
    %v1901 = vpack.c.b16 %v1293, %v1285
    %v1902 = vpack.c.b16 %v1294, %v1286
    %v1903 = vpack.c.b16 %v1303, %v1295
    %v1904 = vpack.c.b16 %v1304, %v1296
    %v1905 = vpack.c.b16 %v1305, %v1297
    %v1906 = vpack.c.b16 %v1306, %v1298
    %v1907 = vpack.c.b16 %v1307, %v1299
    %v1908 = vpack.c.b16 %v1308, %v1300
    %v1909 = vpack.c.b16 %v1309, %v1301
    %v1910 = vpack.c.b16 %v1310, %v1302
    %v1911 = vpack.c.b16 %v1319, %v1311
    %v1912 = vpack.c.b16 %v1320, %v1312
    %v1913 = vpack.c.b16 %v1321, %v1313
    %v1914 = vpack.c.b16 %v1322, %v1314
    %v1915 = vpack.c.b16 %v1323, %v1315
    %v1916 = vpack.c.b16 %v1324, %v1316
    %v1917 = vpack.c.b16 %v1325, %v1317
    %v1918 = vpack.c.b16 %v1326, %v1318
    %v1919 = vpack.c.b16 %v1335, %v1327
    %v1920 = vpack.c.b16 %v1336, %v1328
    %v1921 = vpack.c.b16 %v1337, %v1329
    %v1922 = vpack.c.b16 %v1338, %v1330
    %v1923 = vpack.c.b16 %v1339, %v1331
    %v1924 = vpack.c.b16 %v1340, %v1332
    %v1925 = vpack.c.b16 %v1341, %v1333
    %v1926 = vpack.c.b16 %v1342, %v1334
    %v1927 = vpack.c.b16 %v1351, %v1343
    %v1928 = vpack.c.b16 %v1352, %v1344
    %v1929 = vpack.c.b16 %v1353, %v1345
    %v1930 = vpack.c.b16 %v1354, %v1346
    %v1931 = vpack.c.b16 %v1355, %v1347
    %v1932 = vpack.c.b16 %v1356, %v1348
    %v1933 = vpack.c.b16 %v1357, %v1349
    %v1934 = vpack.c.b16 %v1358, %v1350
    %v1935 = vpack.c.b16 %v1367, %v1359
    %v1936 = vpack.c.b16 %v1368, %v1360
    %v1937 = vpack.c.b16 %v1369, %v1361
    %v1938 = vpack.c.b16 %v1370, %v1362
    %v1939 = vpack.c.b16 %v1371, %v1363
    %v1940 = vpack.c.b16 %v1372, %v1364
    %v1941 = vpack.c.b16 %v1373, %v1365
    %v1942 = vpack.c.b16 %v1374, %v1366
    %v1943 = vpack.c.b16 %v1383, %v1375
    %v1944 = vpack.c.b16 %v1384, %v1376
    %v1945 = vpack.c.b16 %v1385, %v1377
    %v1946 = vpack.c.b16 %v1386, %v1378
    %v1947 = vpack.c.b16 %v1387, %v1379
    %v1948 = vpack.c.b16 %v1388, %v1380
    %v1949 = vpack.c.b16 %v1389, %v1381
    %v1950 = vpack.c.b16 %v1390, %v1382
    %v1951 = vpack.c.b16 %v1399, %v1391
    %v1952 = vpack.c.b16 %v1400, %v1392
    %v1953 = vpack.c.b16 %v1401, %v1393
    %v1954 = vpack.c.b16 %v1402, %v1394
    %v1955 = vpack.c.b16 %v1403, %v1395
    %v1956 = vpack.c.b16 %v1404, %v1396
    %v1957 = vpack.c.b16 %v1405, %v1397
    %v1958 = vpack.c.b16 %v1406, %v1398
    %v1959 = vpack.c.b16 %v1415, %v1407
    %v1960 = vpack.c.b16 %v1416, %v1408
    %v1961 = vpack.c.b16 %v1417, %v1409
    %v1962 = vpack.c.b16 %v1418, %v1410
    %v1963 = vpack.c.b16 %v1419, %v1411
    %v1964 = vpack.c.b16 %v1420, %v1412
    %v1965 = vpack.c.b16 %v1421, %v1413
    %v1966 = vpack.c.b16 %v1422, %v1414
    %v1967 = vpack.c.b16 %v1431, %v1423
    %v1968 = vpack.c.b16 %v1432, %v1424
    %v1969 = vpack.c.b16 %v1433, %v1425
    %v1970 = vpack.c.b16 %v1434, %v1426
    %v1971 = vpack.c.b16 %v1435, %v1427
    %v1972 = vpack.c.b16 %v1436, %v1428
    %v1973 = vpack.c.b16 %v1437, %v1429
    %v1974 = vpack.c.b16 %v1438, %v1430
    %v1975 = vpack.c.b16 %v1447, %v1439
    %v1976 = vpack.c.b16 %v1448, %v1440
    %v1977 = vpack.c.b16 %v1449, %v1441
    %v1978 = vpack.c.b16 %v1450, %v1442
    %v1979 = vpack.c.b16 %v1451, %v1443
    %v1980 = vpack.c.b16 %v1452, %v1444
    %v1981 = vpack.c.b16 %v1453, %v1445
    %v1982 = vpack.c.b16 %v1454, %v1446
    %v1983 = vpack.c.b16 %v1463, %v1455
    %v1984 = vpack.c.b16 %v1464, %v1456
    %v1985 = vpack.c.b16 %v1465, %v1457
    %v1986 = vpack.c.b16 %v1466, %v1458
    %v1987 = vpack.c.b16 %v1467, %v1459
    %v1988 = vpack.c.b16 %v1468, %v1460
    %v1989 = vpack.c.b16 %v1469, %v1461
    %v1990 = vpack.c.b16 %v1470, %v1462
    %v1991 = vpack.c.b16 %v1479, %v1471
    %v1992 = vpack.c.b16 %v1480, %v1472
    %v1993 = vpack.c.b16 %v1481, %v1473
    %v1994 = vpack.c.b16 %v1482, %v1474
    %v1995 = vpack.c.b16 %v1483, %v1475
    %v1996 = vpack.c.b16 %v1484, %v1476
    %v1997 = vpack.c.b16 %v1485, %v1477
    %v1998 = vpack.c.b16 %v1486, %v1478
    %v1999 = vpack.c.b16 %v1495, %v1487
    %v2000 = vpack.c.b16 %v1496, %v1488
    %v2001 = vpack.c.b16 %v1497, %v1489
    %v2002 = vpack.c.b16 %v1498, %v1490
    %v2003 = vpack.c.b16 %v1499, %v1491
    %v2004 = vpack.c.b16 %v1500, %v1492
    %v2005 = vpack.c.b16 %v1501, %v1493
    %v2006 = vpack.c.b16 %v1502, %v1494
    %v2007 = vpack.c.b16 %v1511, %v1503
    %v2008 = vpack.c.b16 %v1512, %v1504
    %v2009 = vpack.c.b16 %v1513, %v1505
    %v2010 = vpack.c.b16 %v1514, %v1506
    %v2011 = vpack.c.b16 %v1515, %v1507
    %v2012 = vpack.c.b16 %v1516, %v1508
    %v2013 = vpack.c.b16 %v1517, %v1509
    %v2014 = vpack.c.b16 %v1518, %v1510
    %v2015 = vpack.c.b16 %v1527, %v1519
    %v2016 = vpack.c.b16 %v1528, %v1520
    %v2017 = vpack.c.b16 %v1529, %v1521
    %v2018 = vpack.c.b16 %v1530, %v1522
    %v2019 = vpack.c.b16 %v1531, %v1523
    %v2020 = vpack.c.b16 %v1532, %v1524
    %v2021 = vpack.c.b16 %v1533, %v1525
    %v2022 = vpack.c.b16 %v1534, %v1526
    %v2023 = vpack.c.b16 %v1543, %v1535
    %v2024 = vpack.c.b16 %v1544, %v1536
    %v2025 = vpack.c.b16 %v1545, %v1537
    %v2026 = vpack.c.b16 %v1546, %v1538
    %v2027 = vpack.c.b16 %v1547, %v1539
    %v2028 = vpack.c.b16 %v1548, %v1540
    %v2029 = vpack.c.b16 %v1549, %v1541
    %v2030 = vpack.c.b16 %v1550, %v1542
    %v2031 = vpack.c.b16 %v1559, %v1551
    %v2032 = vpack.c.b16 %v1560, %v1552
    %v2033 = vpack.c.b16 %v1561, %v1553
    %v2034 = vpack.c.b16 %v1562, %v1554
    %v2035 = vpack.c.b16 %v1563, %v1555
    %v2036 = vpack.c.b16 %v1564, %v1556
    %v2037 = vpack.c.b16 %v1565, %v1557
    %v2038 = vpack.c.b16 %v1566, %v1558
    %v2039 = vpack.c.b16 %v1575, %v1567
    %v2040 = vpack.c.b16 %v1576, %v1568
    %v2041 = vpack.c.b16 %v1577, %v1569
    %v2042 = vpack.c.b16 %v1578, %v1570
    %v2043 = vpack.c.b16 %v1579, %v1571
    %v2044 = vpack.c.b16 %v1580, %v1572
    %v2045 = vpack.c.b16 %v1581, %v1573
    %v2046 = vpack.c.b16 %v1582, %v1574
    %v2047 = vpack.c.b16 %v1591, %v1583
    %v2048 = vpack.c.b16 %v1592, %v1584
    %v2049 = vpack.c.b16 %v1593, %v1585
    %v2050 = vpack.c.b16 %v1594, %v1586
    %v2051 = vpack.c.b16 %v1595, %v1587
    %v2052 = vpack.c.b16 %v1596, %v1588
    %v2053 = vpack.c.b16 %v1597, %v1589
    %v2054 = vpack.c.b16 %v1598, %v1590
    %v2055 = vpack.c.b16 %v1607, %v1599
    %v2056 = vpack.c.b16 %v1608, %v1600
    %v2057 = vpack.c.b16 %v1609, %v1601
    %v2058 = vpack.c.b16 %v1610, %v1602
    %v2059 = vpack.c.b16 %v1611, %v1603
    %v2060 = vpack.c.b16 %v1612, %v1604
    %v2061 = vpack.c.b16 %v1613, %v1605
    %v2062 = vpack.c.b16 %v1614, %v1606
    %v2063 = vpack.c.b16 %v1623, %v1615
    %v2064 = vpack.c.b16 %v1624, %v1616
    %v2065 = vpack.c.b16 %v1625, %v1617
    %v2066 = vpack.c.b16 %v1626, %v1618
    %v2067 = vpack.c.b16 %v1627, %v1619
    %v2068 = vpack.c.b16 %v1628, %v1620
    %v2069 = vpack.c.b16 %v1629, %v1621
    %v2070 = vpack.c.b16 %v1630, %v1622
    %v2071 = vpack.c.b16 %v1639, %v1631
    %v2072 = vpack.c.b16 %v1640, %v1632
    %v2073 = vpack.c.b16 %v1641, %v1633
    %v2074 = vpack.c.b16 %v1642, %v1634
    %v2075 = vpack.c.b16 %v1643, %v1635
    %v2076 = vpack.c.b16 %v1644, %v1636
    %v2077 = vpack.c.b16 %v1645, %v1637
    %v2078 = vpack.c.b16 %v1646, %v1638
    %v2079 = vpack.c.b16 %v1655, %v1647
    %v2080 = vpack.c.b16 %v1656, %v1648
    %v2081 = vpack.c.b16 %v1657, %v1649
    %v2082 = vpack.c.b16 %v1658, %v1650
    %v2083 = vpack.c.b16 %v1659, %v1651
    %v2084 = vpack.c.b16 %v1660, %v1652
    %v2085 = vpack.c.b16 %v1661, %v1653
    %v2086 = vpack.c.b16 %v1662, %v1654
    %v2087 = vpack.c.b16 %v1671, %v1663
    %v2088 = vpack.c.b16 %v1672, %v1664
    %v2089 = vpack.c.b16 %v1673, %v1665
    %v2090 = vpack.c.b16 %v1674, %v1666
    %v2091 = vpack.c.b16 %v1675, %v1667
    %v2092 = vpack.c.b16 %v1676, %v1668
    %v2093 = vpack.c.b16 %v1677, %v1669
    %v2094 = vpack.c.b16 %v1678, %v1670
    %v2095 = vpack.c.b16 %v1687, %v1679
    %v2096 = vpack.c.b16 %v1688, %v1680
    %v2097 = vpack.c.b16 %v1689, %v1681
    %v2098 = vpack.c.b16 %v1690, %v1682
    %v2099 = vpack.c.b16 %v1691, %v1683
    %v2100 = vpack.c.b16 %v1692, %v1684
    %v2101 = vpack.c.b16 %v1693, %v1685
    %v2102 = vpack.c.b16 %v1694, %v1686
    %v2103 = vpack.c.b16 %v1703, %v1695
    %v2104 = vpack.c.b16 %v1704, %v1696
    %v2105 = vpack.c.b16 %v1705, %v1697
    %v2106 = vpack.c.b16 %v1706, %v1698
    %v2107 = vpack.c.b16 %v1707, %v1699
    %v2108 = vpack.c.b16 %v1708, %v1700
    %v2109 = vpack.c.b16 %v1709, %v1701
    %v2110 = vpack.c.b16 %v1710, %v1702
    %v2111 = vpack.c.b16 %v1719, %v1711
    %v2112 = vpack.c.b16 %v1720, %v1712
    %v2113 = vpack.c.b16 %v1721, %v1713
    %v2114 = vpack.c.b16 %v1722, %v1714
    %v2115 = vpack.c.b16 %v1723, %v1715
    %v2116 = vpack.c.b16 %v1724, %v1716
    %v2117 = vpack.c.b16 %v1725, %v1717
    %v2118 = vpack.c.b16 %v1726, %v1718
    %vm2511 = vcmask 130048
    %v2513 = vsel %vm2511, %v116, 0
    %2515 = vmatprep.subr.bf16.mxu0 %v1784
    %2516 = vmatpush1.bf16.msra.mxu0 %v1783
    %2517 = vmatprep.subr.bf16.mxu0 %v1776
    %2518 = vmatpush1.bf16.msra.mxu0 %v1775
    %2519 = vmatprep.subr.bf16.mxu0 %v1768
    %2520 = vmatpush1.bf16.msra.mxu0 %v1767
    %2521 = vmatprep.subr.bf16.mxu0 %v1760
    %2522 = vmatpush1.bf16.msra.mxu0 %v1759
    %2523 = vmatprep.subr.bf16.mxu0 %v1752
    %2524 = vmatpush1.bf16.msra.mxu0 %v1751
    %2525 = vmatprep.subr.bf16.mxu0 %v1744
    %2526 = vmatpush1.bf16.msra.mxu0 %v1743
    %2527 = vmatprep.subr.bf16.mxu0 %v1736
    %2528 = vmatpush1.bf16.msra.mxu0 %v1735
    %2529 = vmatprep.subr.bf16.mxu0 %v1728
    %2530 = vmatpush1.bf16.msra.mxu0 %v1727
    %2531 = vmatprep.subr.bf16.mxu0 %v1848
    %2532 = vmatpush2.bf16.msra.mxu0 %v1847
    %2533 = vmatprep.subr.bf16.mxu0 %v1840
    %2534 = vmatpush2.bf16.msra.mxu0 %v1839
    %2535 = vmatprep.subr.bf16.mxu0 %v1832
    %2536 = vmatpush2.bf16.msra.mxu0 %v1831
    %2537 = vmatprep.subr.bf16.mxu0 %v1824
    %2538 = vmatpush2.bf16.msra.mxu0 %v1823
    %2539 = vmatprep.subr.bf16.mxu0 %v1816
    %2540 = vmatpush2.bf16.msra.mxu0 %v1815
    %2541 = vmatprep.subr.bf16.mxu0 %v1808
    %2542 = vmatpush2.bf16.msra.mxu0 %v1807
    %2543 = vmatprep.subr.bf16.mxu0 %v1800
    %2544 = vmatpush2.bf16.msra.mxu0 %v1799
    %2545 = vmatprep.subr.bf16.mxu0 %v1792
    %2546 = vmatpush2.bf16.msra.mxu0 %v1791
    %2547 = vmatprep.mubr.bf16.mxu0 %v111
    %2548 = vmatmul.mubr.bf16.gmra.mxu0 %v110
    %v2549 = vpop.f32.mrf.mxu0
    %v2550 = vadd.f32 %v514, %v2549
    %v2551 = vpop.f32.mrf.mxu0
    %v2552 = vadd.f32 %v518, %v2551
    %v2553 = vpop.f32.mrf.mxu0
    %v2554 = vpop.f32.mrf.mxu0
    %2555 = vdwg.mxu0
    %2556 = vmatprep.subr.bf16.mxu0 %v1912
    %2557 = vmatpush1.bf16.msra.mxu0 %v1911
    %2558 = vmatprep.subr.bf16.mxu0 %v1904
    %2559 = vmatpush1.bf16.msra.mxu0 %v1903
    %2560 = vmatprep.subr.bf16.mxu0 %v1896
    %2561 = vmatpush1.bf16.msra.mxu0 %v1895
    %2562 = vmatprep.subr.bf16.mxu0 %v1888
    %2563 = vmatpush1.bf16.msra.mxu0 %v1887
    %2564 = vmatprep.subr.bf16.mxu0 %v1880
    %2565 = vmatpush1.bf16.msra.mxu0 %v1879
    %2566 = vmatprep.subr.bf16.mxu0 %v1872
    %2567 = vmatpush1.bf16.msra.mxu0 %v1871
    %2568 = vmatprep.subr.bf16.mxu0 %v1864
    %2569 = vmatpush1.bf16.msra.mxu0 %v1863
    %2570 = vmatprep.subr.bf16.mxu0 %v1856
    %2571 = vmatpush1.bf16.msra.mxu0 %v1855
    %2572 = vmatprep.subr.bf16.mxu0 %v1976
    %2573 = vmatpush2.bf16.msra.mxu0 %v1975
    %2574 = vmatprep.subr.bf16.mxu0 %v1968
    %2575 = vmatpush2.bf16.msra.mxu0 %v1967
    %2576 = vmatprep.subr.bf16.mxu0 %v1960
    %2577 = vmatpush2.bf16.msra.mxu0 %v1959
    %2578 = vmatprep.subr.bf16.mxu0 %v1952
    %2579 = vmatpush2.bf16.msra.mxu0 %v1951
    %2580 = vmatprep.subr.bf16.mxu0 %v1944
    %2581 = vmatpush2.bf16.msra.mxu0 %v1943
    %2582 = vmatprep.subr.bf16.mxu0 %v1936
    %2583 = vmatpush2.bf16.msra.mxu0 %v1935
    %2584 = vmatprep.subr.bf16.mxu0 %v1928
    %2585 = vmatpush2.bf16.msra.mxu0 %v1927
    %2586 = vmatprep.subr.bf16.mxu0 %v1920
    %2587 = vmatpush2.bf16.msra.mxu0 %v1919
    %2588 = vmatprep.mubr.bf16.mxu0 %v113
    %2589 = vmatmul.mubr.bf16.gmra.mxu0 %v112
    %v2590 = vpop.f32.mrf.mxu0
    %v2591 = vadd.f32 %v2550, %v2590
    %v2592 = vpop.f32.mrf.mxu0
    %v2593 = vadd.f32 %v2552, %v2592
    %v2594 = vpop.f32.mrf.mxu0
    %v2595 = vpop.f32.mrf.mxu0
    %2596 = vdwg.mxu0
    %2597 = vmatprep.subr.bf16.mxu0 %v2040
    %2598 = vmatpush1.bf16.msra.mxu0 %v2039
    %2599 = vmatprep.subr.bf16.mxu0 %v2032
    %2600 = vmatpush1.bf16.msra.mxu0 %v2031
    %2601 = vmatprep.subr.bf16.mxu0 %v2024
    %2602 = vmatpush1.bf16.msra.mxu0 %v2023
    %2603 = vmatprep.subr.bf16.mxu0 %v2016
    %2604 = vmatpush1.bf16.msra.mxu0 %v2015
    %2605 = vmatprep.subr.bf16.mxu0 %v2008
    %2606 = vmatpush1.bf16.msra.mxu0 %v2007
    %2607 = vmatprep.subr.bf16.mxu0 %v2000
    %2608 = vmatpush1.bf16.msra.mxu0 %v1999
    %2609 = vmatprep.subr.bf16.mxu0 %v1992
    %2610 = vmatpush1.bf16.msra.mxu0 %v1991
    %2611 = vmatprep.subr.bf16.mxu0 %v1984
    %2612 = vmatpush1.bf16.msra.mxu0 %v1983
    %2613 = vmatprep.subr.bf16.mxu0 %v2104
    %2614 = vmatpush2.bf16.msra.mxu0 %v2103
    %2615 = vmatprep.subr.bf16.mxu0 %v2096
    %2616 = vmatpush2.bf16.msra.mxu0 %v2095
    %2617 = vmatprep.subr.bf16.mxu0 %v2088
    %2618 = vmatpush2.bf16.msra.mxu0 %v2087
    %2619 = vmatprep.subr.bf16.mxu0 %v2080
    %2620 = vmatpush2.bf16.msra.mxu0 %v2079
    %2621 = vmatprep.subr.bf16.mxu0 %v2072
    %2622 = vmatpush2.bf16.msra.mxu0 %v2071
    %2623 = vmatprep.subr.bf16.mxu0 %v2064
    %2624 = vmatpush2.bf16.msra.mxu0 %v2063
    %2625 = vmatprep.subr.bf16.mxu0 %v2056
    %2626 = vmatpush2.bf16.msra.mxu0 %v2055
    %2627 = vmatprep.subr.bf16.mxu0 %v2048
    %2628 = vmatpush2.bf16.msra.mxu0 %v2047
    %2629 = vmatprep.mubr.bf16.mxu0 %v115
    %2630 = vmatmul.mubr.bf16.gmra.mxu0 %v114
    %v2631 = vpop.f32.mrf.mxu0
    %v2632 = vadd.f32 %v2591, %v2631
    %v2633 = vpop.f32.mrf.mxu0
    %v2634 = vadd.f32 %v2593, %v2633
    %v2635 = vpop.f32.mrf.mxu0
    %v2636 = vpop.f32.mrf.mxu0
    %2637 = vdwg.mxu0
    %2638 = vmatprep.subr.bf16.mxu0 0
    %2639 = vmatpush1.bf16.msra.mxu0 0
    %2640 = vmatprep.subr.bf16.mxu0 0
    %2641 = vmatpush1.bf16.msra.mxu0 0
    %2642 = vmatprep.subr.bf16.mxu0 0
    %2643 = vmatpush1.bf16.msra.mxu0 0
    %2644 = vmatprep.subr.bf16.mxu0 0
    %2645 = vmatpush1.bf16.msra.mxu0 0
    %2646 = vmatprep.subr.bf16.mxu0 0
    %2647 = vmatpush1.bf16.msra.mxu0 0
    %2648 = vmatprep.subr.bf16.mxu0 0
    %2649 = vmatpush1.bf16.msra.mxu0 0
    %2650 = vmatprep.subr.bf16.mxu0 0
    %2651 = vmatpush1.bf16.msra.mxu0 0
    %2652 = vmatprep.subr.bf16.mxu0 %v2112
    %2653 = vmatpush1.bf16.msra.mxu0 %v2111
    %2654 = vmatprep.subr.bf16.mxu0 0
    %2655 = vmatpush2.bf16.msra.mxu0 0
    %2656 = vmatprep.subr.bf16.mxu0 0
    %2657 = vmatpush2.bf16.msra.mxu0 0
    %2658 = vmatprep.subr.bf16.mxu0 0
    %2659 = vmatpush2.bf16.msra.mxu0 0
    %2660 = vmatprep.subr.bf16.mxu0 0
    %2661 = vmatpush2.bf16.msra.mxu0 0
    %2662 = vmatprep.subr.bf16.mxu0 0
    %2663 = vmatpush2.bf16.msra.mxu0 0
    %2664 = vmatprep.subr.bf16.mxu0 0
    %2665 = vmatpush2.bf16.msra.mxu0 0
    %2666 = vmatprep.subr.bf16.mxu0 0
    %2667 = vmatpush2.bf16.msra.mxu0 0
    %2668 = vmatprep.subr.bf16.mxu0 0
    %2669 = vmatpush2.bf16.msra.mxu0 0
    %2670 = vmatprep.mubr.bf16.mxu0 0
    %2671 = vmatmul.mubr.bf16.gmra.mxu0 %v2513
    %v2672 = vpop.f32.mrf.mxu0
    %v2673 = vadd.f32 %v2632, %v2672
    %v2674 = vpop.f32.mrf.mxu0
    %v2675 = vadd.f32 %v2634, %v2674
    %v2676 = vpop.f32.mrf.mxu0
    %v2677 = vpop.f32.mrf.mxu0
    %2678 = vdwg.mxu0
    %2679 = vmatprep.subr.bf16.mxu0 %v1786
    %2680 = vmatpush1.bf16.msra.mxu0 %v1785
    %2681 = vmatprep.subr.bf16.mxu0 %v1778
    %2682 = vmatpush1.bf16.msra.mxu0 %v1777
    %2683 = vmatprep.subr.bf16.mxu0 %v1770
    %2684 = vmatpush1.bf16.msra.mxu0 %v1769
    %2685 = vmatprep.subr.bf16.mxu0 %v1762
    %2686 = vmatpush1.bf16.msra.mxu0 %v1761
    %2687 = vmatprep.subr.bf16.mxu0 %v1754
    %2688 = vmatpush1.bf16.msra.mxu0 %v1753
    %2689 = vmatprep.subr.bf16.mxu0 %v1746
    %2690 = vmatpush1.bf16.msra.mxu0 %v1745
    %2691 = vmatprep.subr.bf16.mxu0 %v1738
    %2692 = vmatpush1.bf16.msra.mxu0 %v1737
    %2693 = vmatprep.subr.bf16.mxu0 %v1730
    %2694 = vmatpush1.bf16.msra.mxu0 %v1729
    %2695 = vmatprep.subr.bf16.mxu0 %v1850
    %2696 = vmatpush2.bf16.msra.mxu0 %v1849
    %2697 = vmatprep.subr.bf16.mxu0 %v1842
    %2698 = vmatpush2.bf16.msra.mxu0 %v1841
    %2699 = vmatprep.subr.bf16.mxu0 %v1834
    %2700 = vmatpush2.bf16.msra.mxu0 %v1833
    %2701 = vmatprep.subr.bf16.mxu0 %v1826
    %2702 = vmatpush2.bf16.msra.mxu0 %v1825
    %2703 = vmatprep.subr.bf16.mxu0 %v1818
    %2704 = vmatpush2.bf16.msra.mxu0 %v1817
    %2705 = vmatprep.subr.bf16.mxu0 %v1810
    %2706 = vmatpush2.bf16.msra.mxu0 %v1809
    %2707 = vmatprep.subr.bf16.mxu0 %v1802
    %2708 = vmatpush2.bf16.msra.mxu0 %v1801
    %2709 = vmatprep.subr.bf16.mxu0 %v1794
    %2710 = vmatpush2.bf16.msra.mxu0 %v1793
    %2711 = vmatprep.mubr.bf16.mxu0 %v111
    %2712 = vmatmul.mubr.bf16.gmra.mxu0 %v110
    %v2713 = vpop.f32.mrf.mxu0
    %v2714 = vadd.f32 %v522, %v2713
    %v2715 = vpop.f32.mrf.mxu0
    %v2716 = vadd.f32 %v526, %v2715
    %v2717 = vpop.f32.mrf.mxu0
    %v2718 = vpop.f32.mrf.mxu0
    %2719 = vdwg.mxu0
    %2720 = vmatprep.subr.bf16.mxu0 %v1914
    %2721 = vmatpush1.bf16.msra.mxu0 %v1913
    %2722 = vmatprep.subr.bf16.mxu0 %v1906
    %2723 = vmatpush1.bf16.msra.mxu0 %v1905
    %2724 = vmatprep.subr.bf16.mxu0 %v1898
    %2725 = vmatpush1.bf16.msra.mxu0 %v1897
    %2726 = vmatprep.subr.bf16.mxu0 %v1890
    %2727 = vmatpush1.bf16.msra.mxu0 %v1889
    %2728 = vmatprep.subr.bf16.mxu0 %v1882
    %2729 = vmatpush1.bf16.msra.mxu0 %v1881
    %2730 = vmatprep.subr.bf16.mxu0 %v1874
    %2731 = vmatpush1.bf16.msra.mxu0 %v1873
    %2732 = vmatprep.subr.bf16.mxu0 %v1866
    %2733 = vmatpush1.bf16.msra.mxu0 %v1865
    %2734 = vmatprep.subr.bf16.mxu0 %v1858
    %2735 = vmatpush1.bf16.msra.mxu0 %v1857
    %2736 = vmatprep.subr.bf16.mxu0 %v1978
    %2737 = vmatpush2.bf16.msra.mxu0 %v1977
    %2738 = vmatprep.subr.bf16.mxu0 %v1970
    %2739 = vmatpush2.bf16.msra.mxu0 %v1969
    %2740 = vmatprep.subr.bf16.mxu0 %v1962
    %2741 = vmatpush2.bf16.msra.mxu0 %v1961
    %2742 = vmatprep.subr.bf16.mxu0 %v1954
    %2743 = vmatpush2.bf16.msra.mxu0 %v1953
    %2744 = vmatprep.subr.bf16.mxu0 %v1946
    %2745 = vmatpush2.bf16.msra.mxu0 %v1945
    %2746 = vmatprep.subr.bf16.mxu0 %v1938
    %2747 = vmatpush2.bf16.msra.mxu0 %v1937
    %2748 = vmatprep.subr.bf16.mxu0 %v1930
    %2749 = vmatpush2.bf16.msra.mxu0 %v1929
    %2750 = vmatprep.subr.bf16.mxu0 %v1922
    %2751 = vmatpush2.bf16.msra.mxu0 %v1921
    %2752 = vmatprep.mubr.bf16.mxu0 %v113
    %2753 = vmatmul.mubr.bf16.gmra.mxu0 %v112
    %v2754 = vpop.f32.mrf.mxu0
    %v2755 = vadd.f32 %v2714, %v2754
    %v2756 = vpop.f32.mrf.mxu0
    %v2757 = vadd.f32 %v2716, %v2756
    %v2758 = vpop.f32.mrf.mxu0
    %v2759 = vpop.f32.mrf.mxu0
    %2760 = vdwg.mxu0
    %2761 = vmatprep.subr.bf16.mxu0 %v2042
    %2762 = vmatpush1.bf16.msra.mxu0 %v2041
    %2763 = vmatprep.subr.bf16.mxu0 %v2034
    %2764 = vmatpush1.bf16.msra.mxu0 %v2033
    %2765 = vmatprep.subr.bf16.mxu0 %v2026
    %2766 = vmatpush1.bf16.msra.mxu0 %v2025
    %2767 = vmatprep.subr.bf16.mxu0 %v2018
    %2768 = vmatpush1.bf16.msra.mxu0 %v2017
    %2769 = vmatprep.subr.bf16.mxu0 %v2010
    %2770 = vmatpush1.bf16.msra.mxu0 %v2009
    %2771 = vmatprep.subr.bf16.mxu0 %v2002
    %2772 = vmatpush1.bf16.msra.mxu0 %v2001
    %2773 = vmatprep.subr.bf16.mxu0 %v1994
    %2774 = vmatpush1.bf16.msra.mxu0 %v1993
    %2775 = vmatprep.subr.bf16.mxu0 %v1986
    %2776 = vmatpush1.bf16.msra.mxu0 %v1985
    %2777 = vmatprep.subr.bf16.mxu0 %v2106
    %2778 = vmatpush2.bf16.msra.mxu0 %v2105
    %2779 = vmatprep.subr.bf16.mxu0 %v2098
    %2780 = vmatpush2.bf16.msra.mxu0 %v2097
    %2781 = vmatprep.subr.bf16.mxu0 %v2090
    %2782 = vmatpush2.bf16.msra.mxu0 %v2089
    %2783 = vmatprep.subr.bf16.mxu0 %v2082
    %2784 = vmatpush2.bf16.msra.mxu0 %v2081
    %2785 = vmatprep.subr.bf16.mxu0 %v2074
    %2786 = vmatpush2.bf16.msra.mxu0 %v2073
    %2787 = vmatprep.subr.bf16.mxu0 %v2066
    %2788 = vmatpush2.bf16.msra.mxu0 %v2065
    %2789 = vmatprep.subr.bf16.mxu0 %v2058
    %2790 = vmatpush2.bf16.msra.mxu0 %v2057
    %2791 = vmatprep.subr.bf16.mxu0 %v2050
    %2792 = vmatpush2.bf16.msra.mxu0 %v2049
    %2793 = vmatprep.mubr.bf16.mxu0 %v115
    %2794 = vmatmul.mubr.bf16.gmra.mxu0 %v114
    %v2795 = vpop.f32.mrf.mxu0
    %v2796 = vadd.f32 %v2755, %v2795
    %v2797 = vpop.f32.mrf.mxu0
    %v2798 = vadd.f32 %v2757, %v2797
    %v2799 = vpop.f32.mrf.mxu0
    %v2800 = vpop.f32.mrf.mxu0
    %2801 = vdwg.mxu0
    %2802 = vmatprep.subr.bf16.mxu0 0
    %2803 = vmatpush1.bf16.msra.mxu0 0
    %2804 = vmatprep.subr.bf16.mxu0 0
    %2805 = vmatpush1.bf16.msra.mxu0 0
    %2806 = vmatprep.subr.bf16.mxu0 0
    %2807 = vmatpush1.bf16.msra.mxu0 0
    %2808 = vmatprep.subr.bf16.mxu0 0
    %2809 = vmatpush1.bf16.msra.mxu0 0
    %2810 = vmatprep.subr.bf16.mxu0 0
    %2811 = vmatpush1.bf16.msra.mxu0 0
    %2812 = vmatprep.subr.bf16.mxu0 0
    %2813 = vmatpush1.bf16.msra.mxu0 0
    %2814 = vmatprep.subr.bf16.mxu0 0
    %2815 = vmatpush1.bf16.msra.mxu0 0
    %2816 = vmatprep.subr.bf16.mxu0 %v2114
    %2817 = vmatpush1.bf16.msra.mxu0 %v2113
    %2818 = vmatprep.subr.bf16.mxu0 0
    %2819 = vmatpush2.bf16.msra.mxu0 0
    %2820 = vmatprep.subr.bf16.mxu0 0
    %2821 = vmatpush2.bf16.msra.mxu0 0
    %2822 = vmatprep.subr.bf16.mxu0 0
    %2823 = vmatpush2.bf16.msra.mxu0 0
    %2824 = vmatprep.subr.bf16.mxu0 0
    %2825 = vmatpush2.bf16.msra.mxu0 0
    %2826 = vmatprep.subr.bf16.mxu0 0
    %2827 = vmatpush2.bf16.msra.mxu0 0
    %2828 = vmatprep.subr.bf16.mxu0 0
    %2829 = vmatpush2.bf16.msra.mxu0 0
    %2830 = vmatprep.subr.bf16.mxu0 0
    %2831 = vmatpush2.bf16.msra.mxu0 0
    %2832 = vmatprep.subr.bf16.mxu0 0
    %2833 = vmatpush2.bf16.msra.mxu0 0
    %2834 = vmatprep.mubr.bf16.mxu0 0
    %2835 = vmatmul.mubr.bf16.gmra.mxu0 %v2513
    %v2836 = vpop.f32.mrf.mxu0
    %v2837 = vadd.f32 %v2796, %v2836
    %v2838 = vpop.f32.mrf.mxu0
    %v2839 = vadd.f32 %v2798, %v2838
    %v2840 = vpop.f32.mrf.mxu0
    %v2841 = vpop.f32.mrf.mxu0
    %2842 = vdwg.mxu0
    %2843 = vmatprep.subr.bf16.mxu0 %v1788
    %2844 = vmatpush1.bf16.msra.mxu0 %v1787
    %2845 = vmatprep.subr.bf16.mxu0 %v1780
    %2846 = vmatpush1.bf16.msra.mxu0 %v1779
    %2847 = vmatprep.subr.bf16.mxu0 %v1772
    %2848 = vmatpush1.bf16.msra.mxu0 %v1771
    %2849 = vmatprep.subr.bf16.mxu0 %v1764
    %2850 = vmatpush1.bf16.msra.mxu0 %v1763
    %2851 = vmatprep.subr.bf16.mxu0 %v1756
    %2852 = vmatpush1.bf16.msra.mxu0 %v1755
    %2853 = vmatprep.subr.bf16.mxu0 %v1748
    %2854 = vmatpush1.bf16.msra.mxu0 %v1747
    %2855 = vmatprep.subr.bf16.mxu0 %v1740
    %2856 = vmatpush1.bf16.msra.mxu0 %v1739
    %2857 = vmatprep.subr.bf16.mxu0 %v1732
    %2858 = vmatpush1.bf16.msra.mxu0 %v1731
    %2859 = vmatprep.subr.bf16.mxu0 %v1852
    %2860 = vmatpush2.bf16.msra.mxu0 %v1851
    %2861 = vmatprep.subr.bf16.mxu0 %v1844
    %2862 = vmatpush2.bf16.msra.mxu0 %v1843
    %2863 = vmatprep.subr.bf16.mxu0 %v1836
    %2864 = vmatpush2.bf16.msra.mxu0 %v1835
    %2865 = vmatprep.subr.bf16.mxu0 %v1828
    %2866 = vmatpush2.bf16.msra.mxu0 %v1827
    %2867 = vmatprep.subr.bf16.mxu0 %v1820
    %2868 = vmatpush2.bf16.msra.mxu0 %v1819
    %2869 = vmatprep.subr.bf16.mxu0 %v1812
    %2870 = vmatpush2.bf16.msra.mxu0 %v1811
    %2871 = vmatprep.subr.bf16.mxu0 %v1804
    %2872 = vmatpush2.bf16.msra.mxu0 %v1803
    %2873 = vmatprep.subr.bf16.mxu0 %v1796
    %2874 = vmatpush2.bf16.msra.mxu0 %v1795
    %2875 = vmatprep.mubr.bf16.mxu0 %v111
    %2876 = vmatmul.mubr.bf16.gmra.mxu0 %v110
    %v2877 = vpop.f32.mrf.mxu0
    %v2878 = vadd.f32 %v530, %v2877
    %v2879 = vpop.f32.mrf.mxu0
    %v2880 = vadd.f32 %v534, %v2879
    %v2881 = vpop.f32.mrf.mxu0
    %v2882 = vpop.f32.mrf.mxu0
    %2883 = vdwg.mxu0
    %2884 = vmatprep.subr.bf16.mxu0 %v1916
    %2885 = vmatpush1.bf16.msra.mxu0 %v1915
    %2886 = vmatprep.subr.bf16.mxu0 %v1908
    %2887 = vmatpush1.bf16.msra.mxu0 %v1907
    %2888 = vmatprep.subr.bf16.mxu0 %v1900
    %2889 = vmatpush1.bf16.msra.mxu0 %v1899
    %2890 = vmatprep.subr.bf16.mxu0 %v1892
    %2891 = vmatpush1.bf16.msra.mxu0 %v1891
    %2892 = vmatprep.subr.bf16.mxu0 %v1884
    %2893 = vmatpush1.bf16.msra.mxu0 %v1883
    %2894 = vmatprep.subr.bf16.mxu0 %v1876
    %2895 = vmatpush1.bf16.msra.mxu0 %v1875
    %2896 = vmatprep.subr.bf16.mxu0 %v1868
    %2897 = vmatpush1.bf16.msra.mxu0 %v1867
    %2898 = vmatprep.subr.bf16.mxu0 %v1860
    %2899 = vmatpush1.bf16.msra.mxu0 %v1859
    %2900 = vmatprep.subr.bf16.mxu0 %v1980
    %2901 = vmatpush2.bf16.msra.mxu0 %v1979
    %2902 = vmatprep.subr.bf16.mxu0 %v1972
    %2903 = vmatpush2.bf16.msra.mxu0 %v1971
    %2904 = vmatprep.subr.bf16.mxu0 %v1964
    %2905 = vmatpush2.bf16.msra.mxu0 %v1963
    %2906 = vmatprep.subr.bf16.mxu0 %v1956
    %2907 = vmatpush2.bf16.msra.mxu0 %v1955
    %2908 = vmatprep.subr.bf16.mxu0 %v1948
    %2909 = vmatpush2.bf16.msra.mxu0 %v1947
    %2910 = vmatprep.subr.bf16.mxu0 %v1940
    %2911 = vmatpush2.bf16.msra.mxu0 %v1939
    %2912 = vmatprep.subr.bf16.mxu0 %v1932
    %2913 = vmatpush2.bf16.msra.mxu0 %v1931
    %2914 = vmatprep.subr.bf16.mxu0 %v1924
    %2915 = vmatpush2.bf16.msra.mxu0 %v1923
    %2916 = vmatprep.mubr.bf16.mxu0 %v113
    %2917 = vmatmul.mubr.bf16.gmra.mxu0 %v112
    %v2918 = vpop.f32.mrf.mxu0
    %v2919 = vadd.f32 %v2878, %v2918
    %v2920 = vpop.f32.mrf.mxu0
    %v2921 = vadd.f32 %v2880, %v2920
    %v2922 = vpop.f32.mrf.mxu0
    %v2923 = vpop.f32.mrf.mxu0
    %2924 = vdwg.mxu0
    %2925 = vmatprep.subr.bf16.mxu0 %v2044
    %2926 = vmatpush1.bf16.msra.mxu0 %v2043
    %2927 = vmatprep.subr.bf16.mxu0 %v2036
    %2928 = vmatpush1.bf16.msra.mxu0 %v2035
    %2929 = vmatprep.subr.bf16.mxu0 %v2028
    %2930 = vmatpush1.bf16.msra.mxu0 %v2027
    %2931 = vmatprep.subr.bf16.mxu0 %v2020
    %2932 = vmatpush1.bf16.msra.mxu0 %v2019
    %2933 = vmatprep.subr.bf16.mxu0 %v2012
    %2934 = vmatpush1.bf16.msra.mxu0 %v2011
    %2935 = vmatprep.subr.bf16.mxu0 %v2004
    %2936 = vmatpush1.bf16.msra.mxu0 %v2003
    %2937 = vmatprep.subr.bf16.mxu0 %v1996
    %2938 = vmatpush1.bf16.msra.mxu0 %v1995
    %2939 = vmatprep.subr.bf16.mxu0 %v1988
    %2940 = vmatpush1.bf16.msra.mxu0 %v1987
    %2941 = vmatprep.subr.bf16.mxu0 %v2108
    %2942 = vmatpush2.bf16.msra.mxu0 %v2107
    %2943 = vmatprep.subr.bf16.mxu0 %v2100
    %2944 = vmatpush2.bf16.msra.mxu0 %v2099
    %2945 = vmatprep.subr.bf16.mxu0 %v2092
    %2946 = vmatpush2.bf16.msra.mxu0 %v2091
    %2947 = vmatprep.subr.bf16.mxu0 %v2084
    %2948 = vmatpush2.bf16.msra.mxu0 %v2083
    %2949 = vmatprep.subr.bf16.mxu0 %v2076
    %2950 = vmatpush2.bf16.msra.mxu0 %v2075
    %2951 = vmatprep.subr.bf16.mxu0 %v2068
    %2952 = vmatpush2.bf16.msra.mxu0 %v2067
    %2953 = vmatprep.subr.bf16.mxu0 %v2060
    %2954 = vmatpush2.bf16.msra.mxu0 %v2059
    %2955 = vmatprep.subr.bf16.mxu0 %v2052
    %2956 = vmatpush2.bf16.msra.mxu0 %v2051
    %2957 = vmatprep.mubr.bf16.mxu0 %v115
    %2958 = vmatmul.mubr.bf16.gmra.mxu0 %v114
    %v2959 = vpop.f32.mrf.mxu0
    %v2960 = vadd.f32 %v2919, %v2959
    %v2961 = vpop.f32.mrf.mxu0
    %v2962 = vadd.f32 %v2921, %v2961
    %v2963 = vpop.f32.mrf.mxu0
    %v2964 = vpop.f32.mrf.mxu0
    %2965 = vdwg.mxu0
    %2966 = vmatprep.subr.bf16.mxu0 0
    %2967 = vmatpush1.bf16.msra.mxu0 0
    %2968 = vmatprep.subr.bf16.mxu0 0
    %2969 = vmatpush1.bf16.msra.mxu0 0
    %2970 = vmatprep.subr.bf16.mxu0 0
    %2971 = vmatpush1.bf16.msra.mxu0 0
    %2972 = vmatprep.subr.bf16.mxu0 0
    %2973 = vmatpush1.bf16.msra.mxu0 0
    %2974 = vmatprep.subr.bf16.mxu0 0
    %2975 = vmatpush1.bf16.msra.mxu0 0
    %2976 = vmatprep.subr.bf16.mxu0 0
    %2977 = vmatpush1.bf16.msra.mxu0 0
    %2978 = vmatprep.subr.bf16.mxu0 0
    %2979 = vmatpush1.bf16.msra.mxu0 0
    %2980 = vmatprep.subr.bf16.mxu0 %v2116
    %2981 = vmatpush1.bf16.msra.mxu0 %v2115
    %2982 = vmatprep.subr.bf16.mxu0 0
    %2983 = vmatpush2.bf16.msra.mxu0 0
    %2984 = vmatprep.subr.bf16.mxu0 0
    %2985 = vmatpush2.bf16.msra.mxu0 0
    %2986 = vmatprep.subr.bf16.mxu0 0
    %2987 = vmatpush2.bf16.msra.mxu0 0
    %2988 = vmatprep.subr.bf16.mxu0 0
    %2989 = vmatpush2.bf16.msra.mxu0 0
    %2990 = vmatprep.subr.bf16.mxu0 0
    %2991 = vmatpush2.bf16.msra.mxu0 0
    %2992 = vmatprep.subr.bf16.mxu0 0
    %2993 = vmatpush2.bf16.msra.mxu0 0
    %2994 = vmatprep.subr.bf16.mxu0 0
    %2995 = vmatpush2.bf16.msra.mxu0 0
    %2996 = vmatprep.subr.bf16.mxu0 0
    %2997 = vmatpush2.bf16.msra.mxu0 0
    %2998 = vmatprep.mubr.bf16.mxu0 0
    %2999 = vmatmul.mubr.bf16.gmra.mxu0 %v2513
    %v3000 = vpop.f32.mrf.mxu0
    %v3001 = vadd.f32 %v2960, %v3000
    %v3002 = vpop.f32.mrf.mxu0
    %v3003 = vadd.f32 %v2962, %v3002
    %v3004 = vpop.f32.mrf.mxu0
    %v3005 = vpop.f32.mrf.mxu0
    %3006 = vdwg.mxu0
    %3007 = vmatprep.subr.bf16.mxu0 %v1790
    %3008 = vmatpush1.bf16.msra.mxu0 %v1789
    %3009 = vmatprep.subr.bf16.mxu0 %v1782
    %3010 = vmatpush1.bf16.msra.mxu0 %v1781
    %3011 = vmatprep.subr.bf16.mxu0 %v1774
    %3012 = vmatpush1.bf16.msra.mxu0 %v1773
    %3013 = vmatprep.subr.bf16.mxu0 %v1766
    %3014 = vmatpush1.bf16.msra.mxu0 %v1765
    %3015 = vmatprep.subr.bf16.mxu0 %v1758
    %3016 = vmatpush1.bf16.msra.mxu0 %v1757
    %3017 = vmatprep.subr.bf16.mxu0 %v1750
    %3018 = vmatpush1.bf16.msra.mxu0 %v1749
    %3019 = vmatprep.subr.bf16.mxu0 %v1742
    %3020 = vmatpush1.bf16.msra.mxu0 %v1741
    %3021 = vmatprep.subr.bf16.mxu0 %v1734
    %3022 = vmatpush1.bf16.msra.mxu0 %v1733
    %3023 = vmatprep.subr.bf16.mxu0 %v1854
    %3024 = vmatpush2.bf16.msra.mxu0 %v1853
    %3025 = vmatprep.subr.bf16.mxu0 %v1846
    %3026 = vmatpush2.bf16.msra.mxu0 %v1845
    %3027 = vmatprep.subr.bf16.mxu0 %v1838
    %3028 = vmatpush2.bf16.msra.mxu0 %v1837
    %3029 = vmatprep.subr.bf16.mxu0 %v1830
    %3030 = vmatpush2.bf16.msra.mxu0 %v1829
    %3031 = vmatprep.subr.bf16.mxu0 %v1822
    %3032 = vmatpush2.bf16.msra.mxu0 %v1821
    %3033 = vmatprep.subr.bf16.mxu0 %v1814
    %3034 = vmatpush2.bf16.msra.mxu0 %v1813
    %3035 = vmatprep.subr.bf16.mxu0 %v1806
    %3036 = vmatpush2.bf16.msra.mxu0 %v1805
    %3037 = vmatprep.subr.bf16.mxu0 %v1798
    %3038 = vmatpush2.bf16.msra.mxu0 %v1797
    %3039 = vmatprep.mubr.bf16.mxu0 %v111
    %3040 = vmatmul.mubr.bf16.gmra.mxu0 %v110
    %v3041 = vpop.f32.mrf.mxu0
    %v3042 = vadd.f32 %v538, %v3041
    %v3043 = vpop.f32.mrf.mxu0
    %v3044 = vadd.f32 %v542, %v3043
    %v3045 = vpop.f32.mrf.mxu0
    %v3046 = vpop.f32.mrf.mxu0
    %3047 = vdwg.mxu0
    %3048 = vmatprep.subr.bf16.mxu0 %v1918
    %3049 = vmatpush1.bf16.msra.mxu0 %v1917
    %3050 = vmatprep.subr.bf16.mxu0 %v1910
    %3051 = vmatpush1.bf16.msra.mxu0 %v1909
    %3052 = vmatprep.subr.bf16.mxu0 %v1902
    %3053 = vmatpush1.bf16.msra.mxu0 %v1901
    %3054 = vmatprep.subr.bf16.mxu0 %v1894
    %3055 = vmatpush1.bf16.msra.mxu0 %v1893
    %3056 = vmatprep.subr.bf16.mxu0 %v1886
    %3057 = vmatpush1.bf16.msra.mxu0 %v1885
    %3058 = vmatprep.subr.bf16.mxu0 %v1878
    %3059 = vmatpush1.bf16.msra.mxu0 %v1877
    %3060 = vmatprep.subr.bf16.mxu0 %v1870
    %3061 = vmatpush1.bf16.msra.mxu0 %v1869
    %3062 = vmatprep.subr.bf16.mxu0 %v1862
    %3063 = vmatpush1.bf16.msra.mxu0 %v1861
    %3064 = vmatprep.subr.bf16.mxu0 %v1982
    %3065 = vmatpush2.bf16.msra.mxu0 %v1981
    %3066 = vmatprep.subr.bf16.mxu0 %v1974
    %3067 = vmatpush2.bf16.msra.mxu0 %v1973
    %3068 = vmatprep.subr.bf16.mxu0 %v1966
    %3069 = vmatpush2.bf16.msra.mxu0 %v1965
    %3070 = vmatprep.subr.bf16.mxu0 %v1958
    %3071 = vmatpush2.bf16.msra.mxu0 %v1957
    %3072 = vmatprep.subr.bf16.mxu0 %v1950
    %3073 = vmatpush2.bf16.msra.mxu0 %v1949
    %3074 = vmatprep.subr.bf16.mxu0 %v1942
    %3075 = vmatpush2.bf16.msra.mxu0 %v1941
    %3076 = vmatprep.subr.bf16.mxu0 %v1934
    %3077 = vmatpush2.bf16.msra.mxu0 %v1933
    %3078 = vmatprep.subr.bf16.mxu0 %v1926
    %3079 = vmatpush2.bf16.msra.mxu0 %v1925
    %3080 = vmatprep.mubr.bf16.mxu0 %v113
    %3081 = vmatmul.mubr.bf16.gmra.mxu0 %v112
    %v3082 = vpop.f32.mrf.mxu0
    %v3083 = vadd.f32 %v3042, %v3082
    %v3084 = vpop.f32.mrf.mxu0
    %v3085 = vadd.f32 %v3044, %v3084
    %v3086 = vpop.f32.mrf.mxu0
    %v3087 = vpop.f32.mrf.mxu0
    %3088 = vdwg.mxu0
    %3089 = vmatprep.subr.bf16.mxu0 %v2046
    %3090 = vmatpush1.bf16.msra.mxu0 %v2045
    %3091 = vmatprep.subr.bf16.mxu0 %v2038
    %3092 = vmatpush1.bf16.msra.mxu0 %v2037
    %3093 = vmatprep.subr.bf16.mxu0 %v2030
    %3094 = vmatpush1.bf16.msra.mxu0 %v2029
    %3095 = vmatprep.subr.bf16.mxu0 %v2022
    %3096 = vmatpush1.bf16.msra.mxu0 %v2021
    %3097 = vmatprep.subr.bf16.mxu0 %v2014
    %3098 = vmatpush1.bf16.msra.mxu0 %v2013
    %3099 = vmatprep.subr.bf16.mxu0 %v2006
    %3100 = vmatpush1.bf16.msra.mxu0 %v2005
    %3101 = vmatprep.subr.bf16.mxu0 %v1998
    %3102 = vmatpush1.bf16.msra.mxu0 %v1997
    %3103 = vmatprep.subr.bf16.mxu0 %v1990
    %3104 = vmatpush1.bf16.msra.mxu0 %v1989
    %3105 = vmatprep.subr.bf16.mxu0 %v2110
    %3106 = vmatpush2.bf16.msra.mxu0 %v2109
    %3107 = vmatprep.subr.bf16.mxu0 %v2102
    %3108 = vmatpush2.bf16.msra.mxu0 %v2101
    %3109 = vmatprep.subr.bf16.mxu0 %v2094
    %3110 = vmatpush2.bf16.msra.mxu0 %v2093
    %3111 = vmatprep.subr.bf16.mxu0 %v2086
    %3112 = vmatpush2.bf16.msra.mxu0 %v2085
    %3113 = vmatprep.subr.bf16.mxu0 %v2078
    %3114 = vmatpush2.bf16.msra.mxu0 %v2077
    %3115 = vmatprep.subr.bf16.mxu0 %v2070
    %3116 = vmatpush2.bf16.msra.mxu0 %v2069
    %3117 = vmatprep.subr.bf16.mxu0 %v2062
    %3118 = vmatpush2.bf16.msra.mxu0 %v2061
    %3119 = vmatprep.subr.bf16.mxu0 %v2054
    %3120 = vmatpush2.bf16.msra.mxu0 %v2053
    %3121 = vmatprep.mubr.bf16.mxu0 %v115
    %3122 = vmatmul.mubr.bf16.gmra.mxu0 %v114
    %v3123 = vpop.f32.mrf.mxu0
    %v3124 = vadd.f32 %v3083, %v3123
    %v3125 = vpop.f32.mrf.mxu0
    %v3126 = vadd.f32 %v3085, %v3125
    %v3127 = vpop.f32.mrf.mxu0
    %v3128 = vpop.f32.mrf.mxu0
    %3129 = vdwg.mxu0
    %3130 = vmatprep.subr.bf16.mxu0 0
    %3131 = vmatpush1.bf16.msra.mxu0 0
    %3132 = vmatprep.subr.bf16.mxu0 0
    %3133 = vmatpush1.bf16.msra.mxu0 0
    %3134 = vmatprep.subr.bf16.mxu0 0
    %3135 = vmatpush1.bf16.msra.mxu0 0
    %3136 = vmatprep.subr.bf16.mxu0 0
    %3137 = vmatpush1.bf16.msra.mxu0 0
    %3138 = vmatprep.subr.bf16.mxu0 0
    %3139 = vmatpush1.bf16.msra.mxu0 0
    %3140 = vmatprep.subr.bf16.mxu0 0
    %3141 = vmatpush1.bf16.msra.mxu0 0
    %3142 = vmatprep.subr.bf16.mxu0 0
    %3143 = vmatpush1.bf16.msra.mxu0 0
    %3144 = vmatprep.subr.bf16.mxu0 %v2118
    %3145 = vmatpush1.bf16.msra.mxu0 %v2117
    %3146 = vmatprep.subr.bf16.mxu0 0
    %3147 = vmatpush2.bf16.msra.mxu0 0
    %3148 = vmatprep.subr.bf16.mxu0 0
    %3149 = vmatpush2.bf16.msra.mxu0 0
    %3150 = vmatprep.subr.bf16.mxu0 0
    %3151 = vmatpush2.bf16.msra.mxu0 0
    %3152 = vmatprep.subr.bf16.mxu0 0
    %3153 = vmatpush2.bf16.msra.mxu0 0
    %3154 = vmatprep.subr.bf16.mxu0 0
    %3155 = vmatpush2.bf16.msra.mxu0 0
    %3156 = vmatprep.subr.bf16.mxu0 0
    %3157 = vmatpush2.bf16.msra.mxu0 0
    %3158 = vmatprep.subr.bf16.mxu0 0
    %3159 = vmatpush2.bf16.msra.mxu0 0
    %3160 = vmatprep.subr.bf16.mxu0 0
    %3161 = vmatpush2.bf16.msra.mxu0 0
    %3162 = vmatprep.mubr.bf16.mxu0 0
    %3163 = vmatmul.mubr.bf16.gmra.mxu0 %v2513
    %v3164 = vpop.f32.mrf.mxu0
    %v3165 = vadd.f32 %v3124, %v3164
    %v3166 = vpop.f32.mrf.mxu0
    %v3167 = vadd.f32 %v3126, %v3166
    %v3168 = vpop.f32.mrf.mxu0
    %v3169 = vpop.f32.mrf.mxu0
    %3170 = vdwg.mxu0
    %v3171 = vmax.f32 %v2673, 0.0
    %v3172 = vmax.f32 %v2675, 0.0
    %v3173 = vmax.f32 %v2837, 0.0
    %v3174 = vmax.f32 %v2839, 0.0
    %v3175 = vmax.f32 %v3001, 0.0
    %v3176 = vmax.f32 %v3003, 0.0
    %v3177 = vmax.f32 %v3165, 0.0
    %v3178 = vmax.f32 %v3167, 0.0
    %v3179 = vpack.c.bf16 %v3171, %v3171
    %v3180 = vpack.c.bf16 %v3172, %v3172
    %v3181 = vpack.c.bf16 %v3173, %v3173
    %v3182 = vpack.c.bf16 %v3174, %v3174
    %v3183 = vpack.c.bf16 %v3175, %v3175
    %v3184 = vpack.c.bf16 %v3176, %v3176
    %v3185 = vpack.c.bf16 %v3177, %v3177
    %v3186 = vpack.c.bf16 %v3178, %v3178
    %v3195 = vunpack.c.l.b16 %v3179
    %v3196 = vunpack.c.l.b16 %v3180
    %v3197 = vunpack.c.l.b16 %v3181
    %v3198 = vunpack.c.l.b16 %v3182
    %v3199 = vunpack.c.l.b16 %v3183
    %v3200 = vunpack.c.l.b16 %v3184
    %v3201 = vunpack.c.l.b16 %v3185
    %v3202 = vunpack.c.l.b16 %v3186
    %v3203 = vpack.c.b16 %v3196, %v3195
    %v3204 = vpack.c.b16 %v3198, %v3197
    %v3205 = vpack.c.b16 %v3200, %v3199
    %v3206 = vpack.c.b16 %v3202, %v3201
    %3211 = vst [vmem:[#allocation2] sm:$0xff] %v3203
    %3212 = vst [vmem:[#allocation2 + $0x8] sm:$0xff] %v3204
    %3213 = vst [vmem:[#allocation2 + $0x10] sm:$0xff] %v3205
    %3214 = vst [vmem:[#allocation2 + $0x18] sm:$0xff] %v3206
    %v3215 = vld [vmem:[#allocation2] sm:$0xff]
    %v3216 = vld [vmem:[#allocation2 + $0x8] sm:$0xff]
    %v3217 = vld [vmem:[#allocation2 + $0x10] sm:$0xff]
    %v3218 = vld [vmem:[#allocation2 + $0x18] sm:$0xff]
    %v3219 = vld [vmem:[#allocation8] sm:$0xff]
    %v3220 = vld [vmem:[#allocation8 + $0x8] sm:$0xff]
    %v3221 = vld [vmem:[#allocation8 + $0x10] sm:$0xff]
    %v3222 = vld [vmem:[#allocation8 + $0x18] sm:$0xff]
    %v3223 = vld [vmem:[#allocation8 + $0x20] sm:$0xff]
    %v3224 = vld [vmem:[#allocation8 + $0x28] sm:$0xff]
    %v3225 = vld [vmem:[#allocation8 + $0x30] sm:$0xff]
    %v3226 = vld [vmem:[#allocation8 + $0x38] sm:$0xff]
    %v3227 = vld [vmem:[#allocation8 + $0x40] sm:$0xff]
    %v3228 = vld [vmem:[#allocation8 + $0x48] sm:$0xff]
    %v3229 = vld [vmem:[#allocation8 + $0x50] sm:$0xff]
    %v3230 = vld [vmem:[#allocation8 + $0x58] sm:$0xff]
    %v3231 = vld [vmem:[#allocation8 + $0x60] sm:$0xff]
    %v3232 = vld [vmem:[#allocation8 + $0x68] sm:$0xff]
    %v3233 = vld [vmem:[#allocation8 + $0x70] sm:$0xff]
    %v3234 = vld [vmem:[#allocation8 + $0x78] sm:$0xff]
    %v3235 = vld [vmem:[#allocation8 + $0x80] sm:$0xff]
    %v3236 = vld [vmem:[#allocation8 + $0x88] sm:$0xff]
    %v3237 = vld [vmem:[#allocation8 + $0x90] sm:$0xff]
    %v3238 = vld [vmem:[#allocation8 + $0x98] sm:$0xff]
    %v3239 = vld [vmem:[#allocation8 + $0xa0] sm:$0xff]
    %v3240 = vld [vmem:[#allocation8 + $0xa8] sm:$0xff]
    %v3241 = vld [vmem:[#allocation8 + $0xb0] sm:$0xff]
    %v3242 = vld [vmem:[#allocation8 + $0xb8] sm:$0xff]
    %v3243 = vld [vmem:[#allocation8 + $0xc0] sm:$0xff]
    %v3244 = vld [vmem:[#allocation8 + $0xc8] sm:$0xff]
    %v3245 = vld [vmem:[#allocation8 + $0xd0] sm:$0xff]
    %v3246 = vld [vmem:[#allocation8 + $0xd8] sm:$0xff]
    %v3247 = vld [vmem:[#allocation8 + $0xe0] sm:$0xff]
    %v3248 = vld [vmem:[#allocation8 + $0xe8] sm:$0xff]
    %v3249 = vld [vmem:[#allocation8 + $0xf0] sm:$0xff]
    %v3250 = vld [vmem:[#allocation8 + $0xf8] sm:$0xff]
    %v3251 = vld [vmem:[#allocation8 + $0x100] sm:$0xff]
    %v3252 = vld [vmem:[#allocation8 + $0x108] sm:$0xff]
    %v3253 = vld [vmem:[#allocation8 + $0x110] sm:$0xff]
    %v3254 = vld [vmem:[#allocation8 + $0x118] sm:$0xff]
    %v3255 = vld [vmem:[#allocation8 + $0x120] sm:$0xff]
    %v3256 = vld [vmem:[#allocation8 + $0x128] sm:$0xff]
    %v3257 = vld [vmem:[#allocation8 + $0x130] sm:$0xff]
    %v3258 = vld [vmem:[#allocation8 + $0x138] sm:$0xff]
    %v3259 = vld [vmem:[#allocation8 + $0x140] sm:$0xff]
    %v3260 = vld [vmem:[#allocation8 + $0x148] sm:$0xff]
    %v3261 = vld [vmem:[#allocation8 + $0x150] sm:$0xff]
    %v3262 = vld [vmem:[#allocation8 + $0x158] sm:$0xff]
    %v3263 = vld [vmem:[#allocation8 + $0x160] sm:$0xff]
    %v3264 = vld [vmem:[#allocation8 + $0x168] sm:$0xff]
    %v3265 = vld [vmem:[#allocation8 + $0x170] sm:$0xff]
    %v3266 = vld [vmem:[#allocation8 + $0x178] sm:$0xff]
    %v3267 = vld [vmem:[#allocation8 + $0x180] sm:$0xff]
    %v3268 = vld [vmem:[#allocation8 + $0x188] sm:$0xff]
    %v3269 = vld [vmem:[#allocation8 + $0x190] sm:$0xff]
    %v3270 = vld [vmem:[#allocation8 + $0x198] sm:$0xff]
    %v3271 = vld [vmem:[#allocation8 + $0x1a0] sm:$0xff]
    %v3272 = vld [vmem:[#allocation8 + $0x1a8] sm:$0xff]
    %v3273 = vld [vmem:[#allocation8 + $0x1b0] sm:$0xff]
    %v3274 = vld [vmem:[#allocation8 + $0x1b8] sm:$0xff]
    %v3275 = vld [vmem:[#allocation8 + $0x1c0] sm:$0xff]
    %v3276 = vld [vmem:[#allocation8 + $0x1c8] sm:$0xff]
    %v3277 = vld [vmem:[#allocation8 + $0x1d0] sm:$0xff]
    %v3278 = vld [vmem:[#allocation8 + $0x1d8] sm:$0xff]
    %v3279 = vld [vmem:[#allocation8 + $0x1e0] sm:$0xff]
    %v3280 = vld [vmem:[#allocation8 + $0x1e8] sm:$0xff]
    %v3281 = vld [vmem:[#allocation8 + $0x1f0] sm:$0xff]
    %v3282 = vld [vmem:[#allocation8 + $0x1f8] sm:$0xff]
    %v3283 = vld [vmem:[#allocation8 + $0x200] sm:$0xff]
    %v3284 = vld [vmem:[#allocation8 + $0x208] sm:$0xff]
    %v3285 = vld [vmem:[#allocation8 + $0x210] sm:$0xff]
    %v3286 = vld [vmem:[#allocation8 + $0x218] sm:$0xff]
    %v3287 = vld [vmem:[#allocation8 + $0x220] sm:$0xff]
    %v3288 = vld [vmem:[#allocation8 + $0x228] sm:$0xff]
    %v3289 = vld [vmem:[#allocation8 + $0x230] sm:$0xff]
    %v3290 = vld [vmem:[#allocation8 + $0x238] sm:$0xff]
    %v3291 = vld [vmem:[#allocation8 + $0x240] sm:$0xff]
    %v3292 = vld [vmem:[#allocation8 + $0x248] sm:$0xff]
    %v3293 = vld [vmem:[#allocation8 + $0x250] sm:$0xff]
    %v3294 = vld [vmem:[#allocation8 + $0x258] sm:$0xff]
    %v3295 = vld [vmem:[#allocation8 + $0x260] sm:$0xff]
    %v3296 = vld [vmem:[#allocation8 + $0x268] sm:$0xff]
    %v3297 = vld [vmem:[#allocation8 + $0x270] sm:$0xff]
    %v3298 = vld [vmem:[#allocation8 + $0x278] sm:$0xff]
    %v3299 = vld [vmem:[#allocation8 + $0x280] sm:$0xff]
    %v3300 = vld [vmem:[#allocation8 + $0x288] sm:$0xff]
    %v3301 = vld [vmem:[#allocation8 + $0x290] sm:$0xff]
    %v3302 = vld [vmem:[#allocation8 + $0x298] sm:$0xff]
    %v3303 = vld [vmem:[#allocation8 + $0x2a0] sm:$0xff]
    %v3304 = vld [vmem:[#allocation8 + $0x2a8] sm:$0xff]
    %v3305 = vld [vmem:[#allocation8 + $0x2b0] sm:$0xff]
    %v3306 = vld [vmem:[#allocation8 + $0x2b8] sm:$0xff]
    %v3307 = vld [vmem:[#allocation8 + $0x2c0] sm:$0xff]
    %v3308 = vld [vmem:[#allocation8 + $0x2c8] sm:$0xff]
    %v3309 = vld [vmem:[#allocation8 + $0x2d0] sm:$0xff]
    %v3310 = vld [vmem:[#allocation8 + $0x2d8] sm:$0xff]
    %v3311 = vld [vmem:[#allocation8 + $0x2e0] sm:$0xff]
    %v3312 = vld [vmem:[#allocation8 + $0x2e8] sm:$0xff]
    %v3313 = vld [vmem:[#allocation8 + $0x2f0] sm:$0xff]
    %v3314 = vld [vmem:[#allocation8 + $0x2f8] sm:$0xff]
    %v3315 = vld [vmem:[#allocation8 + $0x300] sm:$0xff]
    %v3316 = vld [vmem:[#allocation8 + $0x308] sm:$0xff]
    %v3317 = vld [vmem:[#allocation8 + $0x310] sm:$0xff]
    %v3318 = vld [vmem:[#allocation8 + $0x318] sm:$0xff]
    %v3319 = vld [vmem:[#allocation8 + $0x320] sm:$0xff]
    %v3320 = vld [vmem:[#allocation8 + $0x328] sm:$0xff]
    %v3321 = vld [vmem:[#allocation8 + $0x330] sm:$0xff]
    %v3322 = vld [vmem:[#allocation8 + $0x338] sm:$0xff]
    %v3323 = vld [vmem:[#allocation8 + $0x340] sm:$0xff]
    %v3324 = vld [vmem:[#allocation8 + $0x348] sm:$0xff]
    %v3325 = vld [vmem:[#allocation8 + $0x350] sm:$0xff]
    %v3326 = vld [vmem:[#allocation8 + $0x358] sm:$0xff]
    %v3327 = vld [vmem:[#allocation8 + $0x360] sm:$0xff]
    %v3328 = vld [vmem:[#allocation8 + $0x368] sm:$0xff]
    %v3329 = vld [vmem:[#allocation8 + $0x370] sm:$0xff]
    %v3330 = vld [vmem:[#allocation8 + $0x378] sm:$0xff]
    %v3331 = vld [vmem:[#allocation8 + $0x380] sm:$0xff]
    %v3332 = vld [vmem:[#allocation8 + $0x388] sm:$0xff]
    %v3333 = vld [vmem:[#allocation8 + $0x390] sm:$0xff]
    %v3334 = vld [vmem:[#allocation8 + $0x398] sm:$0xff]
    %v3335 = vld [vmem:[#allocation8 + $0x3a0] sm:$0xff]
    %v3336 = vld [vmem:[#allocation8 + $0x3a8] sm:$0xff]
    %v3337 = vld [vmem:[#allocation8 + $0x3b0] sm:$0xff]
    %v3338 = vld [vmem:[#allocation8 + $0x3b8] sm:$0xff]
    %v3339 = vld [vmem:[#allocation8 + $0x3c0] sm:$0xff]
    %v3340 = vld [vmem:[#allocation8 + $0x3c8] sm:$0xff]
    %v3341 = vld [vmem:[#allocation8 + $0x3d0] sm:$0xff]
    %v3342 = vld [vmem:[#allocation8 + $0x3d8] sm:$0xff]
    %v3343 = vld [vmem:[#allocation8 + $0x3e0] sm:$0xff]
    %v3344 = vld [vmem:[#allocation8 + $0x3e8] sm:$0xff]
    %v3345 = vld [vmem:[#allocation8 + $0x3f0] sm:$0xff]
    %v3346 = vld [vmem:[#allocation8 + $0x3f8] sm:$0xff]
    %v3347 = vld [vmem:[#allocation8 + $0x400] sm:$0xff]
    %v3348 = vld [vmem:[#allocation8 + $0x408] sm:$0xff]
    %v3349 = vld [vmem:[#allocation8 + $0x410] sm:$0xff]
    %v3350 = vld [vmem:[#allocation8 + $0x418] sm:$0xff]
    %v3351 = vld [vmem:[#allocation8 + $0x420] sm:$0xff]
    %v3352 = vld [vmem:[#allocation8 + $0x428] sm:$0xff]
    %v3353 = vld [vmem:[#allocation8 + $0x430] sm:$0xff]
    %v3354 = vld [vmem:[#allocation8 + $0x438] sm:$0xff]
    %v3355 = vld [vmem:[#allocation8 + $0x440] sm:$0xff]
    %v3356 = vld [vmem:[#allocation8 + $0x448] sm:$0xff]
    %v3357 = vld [vmem:[#allocation8 + $0x450] sm:$0xff]
    %v3358 = vld [vmem:[#allocation8 + $0x458] sm:$0xff]
    %v3359 = vld [vmem:[#allocation8 + $0x460] sm:$0xff]
    %v3360 = vld [vmem:[#allocation8 + $0x468] sm:$0xff]
    %v3361 = vld [vmem:[#allocation8 + $0x470] sm:$0xff]
    %v3362 = vld [vmem:[#allocation8 + $0x478] sm:$0xff]
    %v3363 = vld [vmem:[#allocation8 + $0x480] sm:$0xff]
    %v3364 = vld [vmem:[#allocation8 + $0x488] sm:$0xff]
    %v3365 = vld [vmem:[#allocation8 + $0x490] sm:$0xff]
    %v3366 = vld [vmem:[#allocation8 + $0x498] sm:$0xff]
    %v3367 = vld [vmem:[#allocation8 + $0x4a0] sm:$0xff]
    %v3368 = vld [vmem:[#allocation8 + $0x4a8] sm:$0xff]
    %v3369 = vld [vmem:[#allocation8 + $0x4b0] sm:$0xff]
    %v3370 = vld [vmem:[#allocation8 + $0x4b8] sm:$0xff]
    %v3371 = vld [vmem:[#allocation8 + $0x4c0] sm:$0xff]
    %v3372 = vld [vmem:[#allocation8 + $0x4c8] sm:$0xff]
    %v3373 = vld [vmem:[#allocation8 + $0x4d0] sm:$0xff]
    %v3374 = vld [vmem:[#allocation8 + $0x4d8] sm:$0xff]
    %v3375 = vld [vmem:[#allocation8 + $0x4e0] sm:$0xff]
    %v3376 = vld [vmem:[#allocation8 + $0x4e8] sm:$0xff]
    %v3377 = vld [vmem:[#allocation8 + $0x4f0] sm:$0xff]
    %v3378 = vld [vmem:[#allocation8 + $0x4f8] sm:$0xff]
    %v3379 = vld [vmem:[#allocation8 + $0x500] sm:$0xff]
    %v3380 = vld [vmem:[#allocation8 + $0x508] sm:$0xff]
    %v3381 = vld [vmem:[#allocation8 + $0x510] sm:$0xff]
    %v3382 = vld [vmem:[#allocation8 + $0x518] sm:$0xff]
    %v3383 = vld [vmem:[#allocation8 + $0x520] sm:$0xff]
    %v3384 = vld [vmem:[#allocation8 + $0x528] sm:$0xff]
    %v3385 = vld [vmem:[#allocation8 + $0x530] sm:$0xff]
    %v3386 = vld [vmem:[#allocation8 + $0x538] sm:$0xff]
    %v3387 = vld [vmem:[#allocation8 + $0x540] sm:$0xff]
    %v3388 = vld [vmem:[#allocation8 + $0x548] sm:$0xff]
    %v3389 = vld [vmem:[#allocation8 + $0x550] sm:$0xff]
    %v3390 = vld [vmem:[#allocation8 + $0x558] sm:$0xff]
    %v3391 = vld [vmem:[#allocation8 + $0x560] sm:$0xff]
    %v3392 = vld [vmem:[#allocation8 + $0x568] sm:$0xff]
    %v3393 = vld [vmem:[#allocation8 + $0x570] sm:$0xff]
    %v3394 = vld [vmem:[#allocation8 + $0x578] sm:$0xff]
    %v3395 = vld [vmem:[#allocation8 + $0x580] sm:$0xff]
    %v3396 = vld [vmem:[#allocation8 + $0x588] sm:$0xff]
    %v3397 = vld [vmem:[#allocation8 + $0x590] sm:$0xff]
    %v3398 = vld [vmem:[#allocation8 + $0x598] sm:$0xff]
    %v3399 = vld [vmem:[#allocation8 + $0x5a0] sm:$0xff]
    %v3400 = vld [vmem:[#allocation8 + $0x5a8] sm:$0xff]
    %v3401 = vld [vmem:[#allocation8 + $0x5b0] sm:$0xff]
    %v3402 = vld [vmem:[#allocation8 + $0x5b8] sm:$0xff]
    %v3403 = vld [vmem:[#allocation8 + $0x5c0] sm:$0xff]
    %v3404 = vld [vmem:[#allocation8 + $0x5c8] sm:$0xff]
    %v3405 = vld [vmem:[#allocation8 + $0x5d0] sm:$0xff]
    %v3406 = vld [vmem:[#allocation8 + $0x5d8] sm:$0xff]
    %v3407 = vld [vmem:[#allocation8 + $0x5e0] sm:$0xff]
    %v3408 = vld [vmem:[#allocation8 + $0x5e8] sm:$0xff]
    %v3409 = vld [vmem:[#allocation8 + $0x5f0] sm:$0xff]
    %v3410 = vld [vmem:[#allocation8 + $0x5f8] sm:$0xff]
    %v3411 = vld [vmem:[#allocation8 + $0x600] sm:$0xff]
    %v3412 = vld [vmem:[#allocation8 + $0x608] sm:$0xff]
    %v3413 = vld [vmem:[#allocation8 + $0x610] sm:$0xff]
    %v3414 = vld [vmem:[#allocation8 + $0x618] sm:$0xff]
    %v3415 = vld [vmem:[#allocation8 + $0x620] sm:$0xff]
    %v3416 = vld [vmem:[#allocation8 + $0x628] sm:$0xff]
    %v3417 = vld [vmem:[#allocation8 + $0x630] sm:$0xff]
    %v3418 = vld [vmem:[#allocation8 + $0x638] sm:$0xff]
    %v3419 = vld [vmem:[#allocation8 + $0x640] sm:$0xff]
    %v3420 = vld [vmem:[#allocation8 + $0x648] sm:$0xff]
    %v3421 = vld [vmem:[#allocation8 + $0x650] sm:$0xff]
    %v3422 = vld [vmem:[#allocation8 + $0x658] sm:$0xff]
    %v3423 = vld [vmem:[#allocation8 + $0x660] sm:$0xff]
    %v3424 = vld [vmem:[#allocation8 + $0x668] sm:$0xff]
    %v3425 = vld [vmem:[#allocation8 + $0x670] sm:$0xff]
    %v3426 = vld [vmem:[#allocation8 + $0x678] sm:$0xff]
    %v3427 = vld [vmem:[#allocation8 + $0x680] sm:$0xff]
    %v3428 = vld [vmem:[#allocation8 + $0x688] sm:$0xff]
    %v3429 = vld [vmem:[#allocation8 + $0x690] sm:$0xff]
    %v3430 = vld [vmem:[#allocation8 + $0x698] sm:$0xff]
    %v3431 = vld [vmem:[#allocation8 + $0x6a0] sm:$0xff]
    %v3432 = vld [vmem:[#allocation8 + $0x6a8] sm:$0xff]
    %v3433 = vld [vmem:[#allocation8 + $0x6b0] sm:$0xff]
    %v3434 = vld [vmem:[#allocation8 + $0x6b8] sm:$0xff]
    %v3435 = vld [vmem:[#allocation8 + $0x6c0] sm:$0xff]
    %v3436 = vld [vmem:[#allocation8 + $0x6c8] sm:$0xff]
    %v3437 = vld [vmem:[#allocation8 + $0x6d0] sm:$0xff]
    %v3438 = vld [vmem:[#allocation8 + $0x6d8] sm:$0xff]
    %v3439 = vld [vmem:[#allocation8 + $0x6e0] sm:$0xff]
    %v3440 = vld [vmem:[#allocation8 + $0x6e8] sm:$0xff]
    %v3441 = vld [vmem:[#allocation8 + $0x6f0] sm:$0xff]
    %v3442 = vld [vmem:[#allocation8 + $0x6f8] sm:$0xff]
    %v3443 = vld [vmem:[#allocation8 + $0x700] sm:$0xff]
    %v3444 = vld [vmem:[#allocation8 + $0x708] sm:$0xff]
    %v3445 = vld [vmem:[#allocation8 + $0x710] sm:$0xff]
    %v3446 = vld [vmem:[#allocation8 + $0x718] sm:$0xff]
    %v3447 = vld [vmem:[#allocation8 + $0x720] sm:$0xff]
    %v3448 = vld [vmem:[#allocation8 + $0x728] sm:$0xff]
    %v3449 = vld [vmem:[#allocation8 + $0x730] sm:$0xff]
    %v3450 = vld [vmem:[#allocation8 + $0x738] sm:$0xff]
    %v3451 = vld [vmem:[#allocation8 + $0x740] sm:$0xff]
    %v3452 = vld [vmem:[#allocation8 + $0x748] sm:$0xff]
    %v3453 = vld [vmem:[#allocation8 + $0x750] sm:$0xff]
    %v3454 = vld [vmem:[#allocation8 + $0x758] sm:$0xff]
    %v3455 = vld [vmem:[#allocation8 + $0x760] sm:$0xff]
    %v3456 = vld [vmem:[#allocation8 + $0x768] sm:$0xff]
    %v3457 = vld [vmem:[#allocation8 + $0x770] sm:$0xff]
    %v3458 = vld [vmem:[#allocation8 + $0x778] sm:$0xff]
    %v3459 = vld [vmem:[#allocation8 + $0x780] sm:$0xff]
    %v3460 = vld [vmem:[#allocation8 + $0x788] sm:$0xff]
    %v3461 = vld [vmem:[#allocation8 + $0x790] sm:$0xff]
    %v3462 = vld [vmem:[#allocation8 + $0x798] sm:$0xff]
    %v3463 = vld [vmem:[#allocation8 + $0x7a0] sm:$0xff]
    %v3464 = vld [vmem:[#allocation8 + $0x7a8] sm:$0xff]
    %v3465 = vld [vmem:[#allocation8 + $0x7b0] sm:$0xff]
    %v3466 = vld [vmem:[#allocation8 + $0x7b8] sm:$0xff]
    %v3467 = vld [vmem:[#allocation8 + $0x7c0] sm:$0xff]
    %v3468 = vld [vmem:[#allocation8 + $0x7c8] sm:$0xff]
    %v3469 = vld [vmem:[#allocation8 + $0x7d0] sm:$0xff]
    %v3470 = vld [vmem:[#allocation8 + $0x7d8] sm:$0xff]
    %v3471 = vld [vmem:[#allocation8 + $0x7e0] sm:$0xff]
    %v3472 = vld [vmem:[#allocation8 + $0x7e8] sm:$0xff]
    %v3473 = vld [vmem:[#allocation8 + $0x7f0] sm:$0xff]
    %v3474 = vld [vmem:[#allocation8 + $0x7f8] sm:$0xff]
    %v3475 = vld [vmem:[#allocation8 + $0x800] sm:$0xff]
    %v3476 = vld [vmem:[#allocation8 + $0x808] sm:$0xff]
    %v3477 = vld [vmem:[#allocation8 + $0x810] sm:$0xff]
    %v3478 = vld [vmem:[#allocation8 + $0x818] sm:$0xff]
    %v3479 = vld [vmem:[#allocation8 + $0x820] sm:$0xff]
    %v3480 = vld [vmem:[#allocation8 + $0x828] sm:$0xff]
    %v3481 = vld [vmem:[#allocation8 + $0x830] sm:$0xff]
    %v3482 = vld [vmem:[#allocation8 + $0x838] sm:$0xff]
    %v3483 = vld [vmem:[#allocation8 + $0x840] sm:$0xff]
    %v3484 = vld [vmem:[#allocation8 + $0x848] sm:$0xff]
    %v3485 = vld [vmem:[#allocation8 + $0x850] sm:$0xff]
    %v3486 = vld [vmem:[#allocation8 + $0x858] sm:$0xff]
    %v3487 = vld [vmem:[#allocation8 + $0x860] sm:$0xff]
    %v3488 = vld [vmem:[#allocation8 + $0x868] sm:$0xff]
    %v3489 = vld [vmem:[#allocation8 + $0x870] sm:$0xff]
    %v3490 = vld [vmem:[#allocation8 + $0x878] sm:$0xff]
    %v3491 = vld [vmem:[#allocation8 + $0x880] sm:$0xff]
    %v3492 = vld [vmem:[#allocation8 + $0x888] sm:$0xff]
    %v3493 = vld [vmem:[#allocation8 + $0x890] sm:$0xff]
    %v3494 = vld [vmem:[#allocation8 + $0x898] sm:$0xff]
    %v3495 = vld [vmem:[#allocation8 + $0x8a0] sm:$0xff]
    %v3496 = vld [vmem:[#allocation8 + $0x8a8] sm:$0xff]
    %v3497 = vld [vmem:[#allocation8 + $0x8b0] sm:$0xff]
    %v3498 = vld [vmem:[#allocation8 + $0x8b8] sm:$0xff]
    %v3499 = vld [vmem:[#allocation8 + $0x8c0] sm:$0xff]
    %v3500 = vld [vmem:[#allocation8 + $0x8c8] sm:$0xff]
    %v3501 = vld [vmem:[#allocation8 + $0x8d0] sm:$0xff]
    %v3502 = vld [vmem:[#allocation8 + $0x8d8] sm:$0xff]
    %v3503 = vld [vmem:[#allocation8 + $0x8e0] sm:$0xff]
    %v3504 = vld [vmem:[#allocation8 + $0x8e8] sm:$0xff]
    %v3505 = vld [vmem:[#allocation8 + $0x8f0] sm:$0xff]
    %v3506 = vld [vmem:[#allocation8 + $0x8f8] sm:$0xff]
    %v3507 = vld [vmem:[#allocation8 + $0x900] sm:$0xff]
    %v3508 = vld [vmem:[#allocation8 + $0x908] sm:$0xff]
    %v3509 = vld [vmem:[#allocation8 + $0x910] sm:$0xff]
    %v3510 = vld [vmem:[#allocation8 + $0x918] sm:$0xff]
    %v3511 = vld [vmem:[#allocation8 + $0x920] sm:$0xff]
    %v3512 = vld [vmem:[#allocation8 + $0x928] sm:$0xff]
    %v3513 = vld [vmem:[#allocation8 + $0x930] sm:$0xff]
    %v3514 = vld [vmem:[#allocation8 + $0x938] sm:$0xff]
    %v3515 = vld [vmem:[#allocation8 + $0x940] sm:$0xff]
    %v3516 = vld [vmem:[#allocation8 + $0x948] sm:$0xff]
    %v3517 = vld [vmem:[#allocation8 + $0x950] sm:$0xff]
    %v3518 = vld [vmem:[#allocation8 + $0x958] sm:$0xff]
    %v3519 = vld [vmem:[#allocation8 + $0x960] sm:$0xff]
    %v3520 = vld [vmem:[#allocation8 + $0x968] sm:$0xff]
    %v3521 = vld [vmem:[#allocation8 + $0x970] sm:$0xff]
    %v3522 = vld [vmem:[#allocation8 + $0x978] sm:$0xff]
    %v3523 = vld [vmem:[#allocation8 + $0x980] sm:$0xff]
    %v3524 = vld [vmem:[#allocation8 + $0x988] sm:$0xff]
    %v3525 = vld [vmem:[#allocation8 + $0x990] sm:$0xff]
    %v3526 = vld [vmem:[#allocation8 + $0x998] sm:$0xff]
    %v3527 = vld [vmem:[#allocation8 + $0x9a0] sm:$0xff]
    %v3528 = vld [vmem:[#allocation8 + $0x9a8] sm:$0xff]
    %v3529 = vld [vmem:[#allocation8 + $0x9b0] sm:$0xff]
    %v3530 = vld [vmem:[#allocation8 + $0x9b8] sm:$0xff]
    %v3531 = vld [vmem:[#allocation8 + $0x9c0] sm:$0xff]
    %v3532 = vld [vmem:[#allocation8 + $0x9c8] sm:$0xff]
    %v3533 = vld [vmem:[#allocation8 + $0x9d0] sm:$0xff]
    %v3534 = vld [vmem:[#allocation8 + $0x9d8] sm:$0xff]
    %v3535 = vld [vmem:[#allocation8 + $0x9e0] sm:$0xff]
    %v3536 = vld [vmem:[#allocation8 + $0x9e8] sm:$0xff]
    %v3537 = vld [vmem:[#allocation8 + $0x9f0] sm:$0xff]
    %v3538 = vld [vmem:[#allocation8 + $0x9f8] sm:$0xff]
    %v3539 = vld [vmem:[#allocation8 + $0xa00] sm:$0xff]
    %v3540 = vld [vmem:[#allocation8 + $0xa08] sm:$0xff]
    %v3541 = vld [vmem:[#allocation8 + $0xa10] sm:$0xff]
    %v3542 = vld [vmem:[#allocation8 + $0xa18] sm:$0xff]
    %v3543 = vld [vmem:[#allocation8 + $0xa20] sm:$0xff]
    %v3544 = vld [vmem:[#allocation8 + $0xa28] sm:$0xff]
    %v3545 = vld [vmem:[#allocation8 + $0xa30] sm:$0xff]
    %v3546 = vld [vmem:[#allocation8 + $0xa38] sm:$0xff]
    %v3547 = vld [vmem:[#allocation8 + $0xa40] sm:$0xff]
    %v3548 = vld [vmem:[#allocation8 + $0xa48] sm:$0xff]
    %v3549 = vld [vmem:[#allocation8 + $0xa50] sm:$0xff]
    %v3550 = vld [vmem:[#allocation8 + $0xa58] sm:$0xff]
    %v3551 = vld [vmem:[#allocation8 + $0xa60] sm:$0xff]
    %v3552 = vld [vmem:[#allocation8 + $0xa68] sm:$0xff]
    %v3553 = vld [vmem:[#allocation8 + $0xa70] sm:$0xff]
    %v3554 = vld [vmem:[#allocation8 + $0xa78] sm:$0xff]
    %v3555 = vld [vmem:[#allocation8 + $0xa80] sm:$0xff]
    %v3556 = vld [vmem:[#allocation8 + $0xa88] sm:$0xff]
    %v3557 = vld [vmem:[#allocation8 + $0xa90] sm:$0xff]
    %v3558 = vld [vmem:[#allocation8 + $0xa98] sm:$0xff]
    %v3559 = vld [vmem:[#allocation8 + $0xaa0] sm:$0xff]
    %v3560 = vld [vmem:[#allocation8 + $0xaa8] sm:$0xff]
    %v3561 = vld [vmem:[#allocation8 + $0xab0] sm:$0xff]
    %v3562 = vld [vmem:[#allocation8 + $0xab8] sm:$0xff]
    %v3563 = vld [vmem:[#allocation8 + $0xac0] sm:$0xff]
    %v3564 = vld [vmem:[#allocation8 + $0xac8] sm:$0xff]
    %v3565 = vld [vmem:[#allocation8 + $0xad0] sm:$0xff]
    %v3566 = vld [vmem:[#allocation8 + $0xad8] sm:$0xff]
    %v3567 = vld [vmem:[#allocation8 + $0xae0] sm:$0xff]
    %v3568 = vld [vmem:[#allocation8 + $0xae8] sm:$0xff]
    %v3569 = vld [vmem:[#allocation8 + $0xaf0] sm:$0xff]
    %v3570 = vld [vmem:[#allocation8 + $0xaf8] sm:$0xff]
    %v3571 = vld [vmem:[#allocation8 + $0xb00] sm:$0xff]
    %v3572 = vld [vmem:[#allocation8 + $0xb08] sm:$0xff]
    %v3573 = vld [vmem:[#allocation8 + $0xb10] sm:$0xff]
    %v3574 = vld [vmem:[#allocation8 + $0xb18] sm:$0xff]
    %v3575 = vld [vmem:[#allocation8 + $0xb20] sm:$0xff]
    %v3576 = vld [vmem:[#allocation8 + $0xb28] sm:$0xff]
    %v3577 = vld [vmem:[#allocation8 + $0xb30] sm:$0xff]
    %v3578 = vld [vmem:[#allocation8 + $0xb38] sm:$0xff]
    %v3579 = vld [vmem:[#allocation8 + $0xb40] sm:$0xff]
    %v3580 = vld [vmem:[#allocation8 + $0xb48] sm:$0xff]
    %v3581 = vld [vmem:[#allocation8 + $0xb50] sm:$0xff]
    %v3582 = vld [vmem:[#allocation8 + $0xb58] sm:$0xff]
    %v3583 = vld [vmem:[#allocation8 + $0xb60] sm:$0xff]
    %v3584 = vld [vmem:[#allocation8 + $0xb68] sm:$0xff]
    %v3585 = vld [vmem:[#allocation8 + $0xb70] sm:$0xff]
    %v3586 = vld [vmem:[#allocation8 + $0xb78] sm:$0xff]
    %v3587 = vld [vmem:[#allocation8 + $0xb80] sm:$0xff]
    %v3588 = vld [vmem:[#allocation8 + $0xb88] sm:$0xff]
    %v3589 = vld [vmem:[#allocation8 + $0xb90] sm:$0xff]
    %v3590 = vld [vmem:[#allocation8 + $0xb98] sm:$0xff]
    %v3591 = vld [vmem:[#allocation8 + $0xba0] sm:$0xff]
    %v3592 = vld [vmem:[#allocation8 + $0xba8] sm:$0xff]
    %v3593 = vld [vmem:[#allocation8 + $0xbb0] sm:$0xff]
    %v3594 = vld [vmem:[#allocation8 + $0xbb8] sm:$0xff]
    %v3595 = vld [vmem:[#allocation8 + $0xbc0] sm:$0xff]
    %v3596 = vld [vmem:[#allocation8 + $0xbc8] sm:$0xff]
    %v3597 = vld [vmem:[#allocation8 + $0xbd0] sm:$0xff]
    %v3598 = vld [vmem:[#allocation8 + $0xbd8] sm:$0xff]
    %v3599 = vld [vmem:[#allocation8 + $0xbe0] sm:$0xff]
    %v3600 = vld [vmem:[#allocation8 + $0xbe8] sm:$0xff]
    %v3601 = vld [vmem:[#allocation8 + $0xbf0] sm:$0xff]
    %v3602 = vld [vmem:[#allocation8 + $0xbf8] sm:$0xff]
    %v3603 = vld [vmem:[#allocation8 + $0xc00] sm:$0xff]
    %v3604 = vld [vmem:[#allocation8 + $0xc08] sm:$0xff]
    %v3605 = vld [vmem:[#allocation8 + $0xc10] sm:$0xff]
    %v3606 = vld [vmem:[#allocation8 + $0xc18] sm:$0xff]
    %v3607 = vld [vmem:[#allocation8 + $0xc20] sm:$0xff]
    %v3608 = vld [vmem:[#allocation8 + $0xc28] sm:$0xff]
    %v3609 = vld [vmem:[#allocation8 + $0xc30] sm:$0xff]
    %v3610 = vld [vmem:[#allocation8 + $0xc38] sm:$0xff]
    %v3611 = vld [vmem:[#allocation8 + $0xc40] sm:$0xff]
    %v3612 = vld [vmem:[#allocation8 + $0xc48] sm:$0xff]
    %v3613 = vld [vmem:[#allocation8 + $0xc50] sm:$0xff]
    %v3614 = vld [vmem:[#allocation8 + $0xc58] sm:$0xff]
    %v3615 = vld [vmem:[#allocation8 + $0xc60] sm:$0xff]
    %v3616 = vld [vmem:[#allocation8 + $0xc68] sm:$0xff]
    %v3617 = vld [vmem:[#allocation8 + $0xc70] sm:$0xff]
    %v3618 = vld [vmem:[#allocation8 + $0xc78] sm:$0xff]
    %v3619 = vld [vmem:[#allocation8 + $0xc80] sm:$0xff]
    %v3620 = vld [vmem:[#allocation8 + $0xc88] sm:$0xff]
    %v3621 = vld [vmem:[#allocation8 + $0xc90] sm:$0xff]
    %v3622 = vld [vmem:[#allocation8 + $0xc98] sm:$0xff]
    %v3623 = vld [vmem:[#allocation8 + $0xca0] sm:$0xff]
    %v3624 = vld [vmem:[#allocation8 + $0xca8] sm:$0xff]
    %v3625 = vld [vmem:[#allocation8 + $0xcb0] sm:$0xff]
    %v3626 = vld [vmem:[#allocation8 + $0xcb8] sm:$0xff]
    %v3627 = vld [vmem:[#allocation8 + $0xcc0] sm:$0xff]
    %v3628 = vld [vmem:[#allocation8 + $0xcc8] sm:$0xff]
    %v3629 = vld [vmem:[#allocation8 + $0xcd0] sm:$0xff]
    %v3630 = vld [vmem:[#allocation8 + $0xcd8] sm:$0xff]
    %v3631 = vld [vmem:[#allocation8 + $0xce0] sm:$0xff]
    %v3632 = vld [vmem:[#allocation8 + $0xce8] sm:$0xff]
    %v3633 = vld [vmem:[#allocation8 + $0xcf0] sm:$0xff]
    %v3634 = vld [vmem:[#allocation8 + $0xcf8] sm:$0xff]
    %v3635 = vld [vmem:[#allocation8 + $0xd00] sm:$0xff]
    %v3636 = vld [vmem:[#allocation8 + $0xd08] sm:$0xff]
    %v3637 = vld [vmem:[#allocation8 + $0xd10] sm:$0xff]
    %v3638 = vld [vmem:[#allocation8 + $0xd18] sm:$0xff]
    %v3639 = vld [vmem:[#allocation8 + $0xd20] sm:$0xff]
    %v3640 = vld [vmem:[#allocation8 + $0xd28] sm:$0xff]
    %v3641 = vld [vmem:[#allocation8 + $0xd30] sm:$0xff]
    %v3642 = vld [vmem:[#allocation8 + $0xd38] sm:$0xff]
    %v3643 = vld [vmem:[#allocation8 + $0xd40] sm:$0xff]
    %v3644 = vld [vmem:[#allocation8 + $0xd48] sm:$0xff]
    %v3645 = vld [vmem:[#allocation8 + $0xd50] sm:$0xff]
    %v3646 = vld [vmem:[#allocation8 + $0xd58] sm:$0xff]
    %v3647 = vld [vmem:[#allocation8 + $0xd60] sm:$0xff]
    %v3648 = vld [vmem:[#allocation8 + $0xd68] sm:$0xff]
    %v3649 = vld [vmem:[#allocation8 + $0xd70] sm:$0xff]
    %v3650 = vld [vmem:[#allocation8 + $0xd78] sm:$0xff]
    %v3651 = vld [vmem:[#allocation8 + $0xd80] sm:$0xff]
    %v3652 = vld [vmem:[#allocation8 + $0xd88] sm:$0xff]
    %v3653 = vld [vmem:[#allocation8 + $0xd90] sm:$0xff]
    %v3654 = vld [vmem:[#allocation8 + $0xd98] sm:$0xff]
    %v3655 = vld [vmem:[#allocation8 + $0xda0] sm:$0xff]
    %v3656 = vld [vmem:[#allocation8 + $0xda8] sm:$0xff]
    %v3657 = vld [vmem:[#allocation8 + $0xdb0] sm:$0xff]
    %v3658 = vld [vmem:[#allocation8 + $0xdb8] sm:$0xff]
    %v3659 = vld [vmem:[#allocation8 + $0xdc0] sm:$0xff]
    %v3660 = vld [vmem:[#allocation8 + $0xdc8] sm:$0xff]
    %v3661 = vld [vmem:[#allocation8 + $0xdd0] sm:$0xff]
    %v3662 = vld [vmem:[#allocation8 + $0xdd8] sm:$0xff]
    %v3663 = vld [vmem:[#allocation8 + $0xde0] sm:$0xff]
    %v3664 = vld [vmem:[#allocation8 + $0xde8] sm:$0xff]
    %v3665 = vld [vmem:[#allocation8 + $0xdf0] sm:$0xff]
    %v3666 = vld [vmem:[#allocation8 + $0xdf8] sm:$0xff]
    %v3667 = vld [vmem:[#allocation8 + $0xe00] sm:$0xff]
    %v3668 = vld [vmem:[#allocation8 + $0xe08] sm:$0xff]
    %v3669 = vld [vmem:[#allocation8 + $0xe10] sm:$0xff]
    %v3670 = vld [vmem:[#allocation8 + $0xe18] sm:$0xff]
    %v3671 = vld [vmem:[#allocation8 + $0xe20] sm:$0xff]
    %v3672 = vld [vmem:[#allocation8 + $0xe28] sm:$0xff]
    %v3673 = vld [vmem:[#allocation8 + $0xe30] sm:$0xff]
    %v3674 = vld [vmem:[#allocation8 + $0xe38] sm:$0xff]
    %v3675 = vld [vmem:[#allocation8 + $0xe40] sm:$0xff]
    %v3676 = vld [vmem:[#allocation8 + $0xe48] sm:$0xff]
    %v3677 = vld [vmem:[#allocation8 + $0xe50] sm:$0xff]
    %v3678 = vld [vmem:[#allocation8 + $0xe58] sm:$0xff]
    %v3679 = vld [vmem:[#allocation8 + $0xe60] sm:$0xff]
    %v3680 = vld [vmem:[#allocation8 + $0xe68] sm:$0xff]
    %v3681 = vld [vmem:[#allocation8 + $0xe70] sm:$0xff]
    %v3682 = vld [vmem:[#allocation8 + $0xe78] sm:$0xff]
    %v3683 = vld [vmem:[#allocation8 + $0xe80] sm:$0xff]
    %v3684 = vld [vmem:[#allocation8 + $0xe88] sm:$0xff]
    %v3685 = vld [vmem:[#allocation8 + $0xe90] sm:$0xff]
    %v3686 = vld [vmem:[#allocation8 + $0xe98] sm:$0xff]
    %v3687 = vld [vmem:[#allocation8 + $0xea0] sm:$0xff]
    %v3688 = vld [vmem:[#allocation8 + $0xea8] sm:$0xff]
    %v3689 = vld [vmem:[#allocation8 + $0xeb0] sm:$0xff]
    %v3690 = vld [vmem:[#allocation8 + $0xeb8] sm:$0xff]
    %v3691 = vld [vmem:[#allocation8 + $0xec0] sm:$0xff]
    %v3692 = vld [vmem:[#allocation8 + $0xec8] sm:$0xff]
    %v3693 = vld [vmem:[#allocation8 + $0xed0] sm:$0xff]
    %v3694 = vld [vmem:[#allocation8 + $0xed8] sm:$0xff]
    %v3695 = vld [vmem:[#allocation8 + $0xee0] sm:$0xff]
    %v3696 = vld [vmem:[#allocation8 + $0xee8] sm:$0xff]
    %v3697 = vld [vmem:[#allocation8 + $0xef0] sm:$0xff]
    %v3698 = vld [vmem:[#allocation8 + $0xef8] sm:$0xff]
    %v3699 = vld [vmem:[#allocation8 + $0xf00] sm:$0xff]
    %v3700 = vld [vmem:[#allocation8 + $0xf08] sm:$0xff]
    %v3701 = vld [vmem:[#allocation8 + $0xf10] sm:$0xff]
    %v3702 = vld [vmem:[#allocation8 + $0xf18] sm:$0xff]
    %v3703 = vld [vmem:[#allocation8 + $0xf20] sm:$0xff]
    %v3704 = vld [vmem:[#allocation8 + $0xf28] sm:$0xff]
    %v3705 = vld [vmem:[#allocation8 + $0xf30] sm:$0xff]
    %v3706 = vld [vmem:[#allocation8 + $0xf38] sm:$0xff]
    %v3707 = vld [vmem:[#allocation8 + $0xf40] sm:$0xff]
    %v3708 = vld [vmem:[#allocation8 + $0xf48] sm:$0xff]
    %v3709 = vld [vmem:[#allocation8 + $0xf50] sm:$0xff]
    %v3710 = vld [vmem:[#allocation8 + $0xf58] sm:$0xff]
    %v3711 = vld [vmem:[#allocation8 + $0xf60] sm:$0xff]
    %v3712 = vld [vmem:[#allocation8 + $0xf68] sm:$0xff]
    %v3713 = vld [vmem:[#allocation8 + $0xf70] sm:$0xff]
    %v3714 = vld [vmem:[#allocation8 + $0xf78] sm:$0xff]
    %v3715 = vld [vmem:[#allocation8 + $0xf80] sm:$0xff]
    %v3716 = vld [vmem:[#allocation8 + $0xf88] sm:$0xff]
    %v3717 = vld [vmem:[#allocation8 + $0xf90] sm:$0xff]
    %v3718 = vld [vmem:[#allocation8 + $0xf98] sm:$0xff]
    %v3719 = vld [vmem:[#allocation8 + $0xfa0] sm:$0xff]
    %v3720 = vld [vmem:[#allocation8 + $0xfa8] sm:$0xff]
    %v3721 = vld [vmem:[#allocation8 + $0xfb0] sm:$0xff]
    %v3722 = vld [vmem:[#allocation8 + $0xfb8] sm:$0xff]
    %v3723 = vld [vmem:[#allocation8 + $0xfc0] sm:$0xff]
    %v3724 = vld [vmem:[#allocation8 + $0xfc8] sm:$0xff]
    %v3725 = vld [vmem:[#allocation8 + $0xfd0] sm:$0xff]
    %v3726 = vld [vmem:[#allocation8 + $0xfd8] sm:$0xff]
    %v3727 = vld [vmem:[#allocation8 + $0xfe0] sm:$0xff]
    %v3728 = vld [vmem:[#allocation8 + $0xfe8] sm:$0xff]
    %v3729 = vld [vmem:[#allocation8 + $0xff0] sm:$0xff]
    %v3730 = vld [vmem:[#allocation8 + $0xff8] sm:$0xff]
    %v3731 = vld [vmem:[#allocation9] sm:$0xff]
    %v3733 = vlaneseq
    %v3734 = vshrl.u32 %v3733, 7
    %v3735 = vsub.s32 0, %v3734
    %v3736 = vrot.slane %v3731, %v3735
    %v3737 = vlaneseq
    %v3738 = vshrl.u32 %v3737, 7
    %v3739 = vsub.s32 1, %v3738
    %v3740 = vrot.slane %v3731, %v3739
    %v3741 = vlaneseq
    %v3742 = vshrl.u32 %v3741, 7
    %v3743 = vsub.s32 2, %v3742
    %v3744 = vrot.slane %v3731, %v3743
    %v3745 = vlaneseq
    %v3746 = vshrl.u32 %v3745, 7
    %v3747 = vsub.s32 3, %v3746
    %v3748 = vrot.slane %v3731, %v3747
    %v3749 = vlaneseq
    %v3750 = vshrl.u32 %v3749, 7
    %v3751 = vsub.s32 4, %v3750
    %v3752 = vrot.slane %v3731, %v3751
    %v3753 = vlaneseq
    %v3754 = vshrl.u32 %v3753, 7
    %v3755 = vsub.s32 5, %v3754
    %v3756 = vrot.slane %v3731, %v3755
    %v3757 = vlaneseq
    %v3758 = vshrl.u32 %v3757, 7
    %v3759 = vsub.s32 6, %v3758
    %v3760 = vrot.slane %v3731, %v3759
    %v3761 = vlaneseq
    %v3762 = vshrl.u32 %v3761, 7
    %v3763 = vsub.s32 7, %v3762
    %v3764 = vrot.slane %v3731, %v3763
    %v3777 = vunpack.c.l.b16 %v3215
    %v3778 = vunpack.c.h.b16 %v3215
    %v3779 = vunpack.c.l.b16 %v3216
    %v3780 = vunpack.c.h.b16 %v3216
    %v3781 = vunpack.c.l.b16 %v3217
    %v3782 = vunpack.c.h.b16 %v3217
    %v3783 = vunpack.c.l.b16 %v3218
    %v3784 = vunpack.c.h.b16 %v3218
    %v3785 = vpack.c.b16 %v3777, %v3777
    %v3786 = vpack.c.b16 %v3778, %v3778
    %v3787 = vpack.c.b16 %v3779, %v3779
    %v3788 = vpack.c.b16 %v3780, %v3780
    %v3789 = vpack.c.b16 %v3781, %v3781
    %v3790 = vpack.c.b16 %v3782, %v3782
    %v3791 = vpack.c.b16 %v3783, %v3783
    %v3792 = vpack.c.b16 %v3784, %v3784
    %v4313 = vunpack.c.l.b16 %v3219
    %v4314 = vunpack.c.h.b16 %v3219
    %v4315 = vunpack.c.l.b16 %v3220
    %v4316 = vunpack.c.h.b16 %v3220
    %v4317 = vunpack.c.l.b16 %v3221
    %v4318 = vunpack.c.h.b16 %v3221
    %v4319 = vunpack.c.l.b16 %v3222
    %v4320 = vunpack.c.h.b16 %v3222
    %v4321 = vunpack.c.l.b16 %v3223
    %v4322 = vunpack.c.h.b16 %v3223
    %v4323 = vunpack.c.l.b16 %v3224
    %v4324 = vunpack.c.h.b16 %v3224
    %v4325 = vunpack.c.l.b16 %v3225
    %v4326 = vunpack.c.h.b16 %v3225
    %v4327 = vunpack.c.l.b16 %v3226
    %v4328 = vunpack.c.h.b16 %v3226
    %v4329 = vunpack.c.l.b16 %v3227
    %v4330 = vunpack.c.h.b16 %v3227
    %v4331 = vunpack.c.l.b16 %v3228
    %v4332 = vunpack.c.h.b16 %v3228
    %v4333 = vunpack.c.l.b16 %v3229
    %v4334 = vunpack.c.h.b16 %v3229
    %v4335 = vunpack.c.l.b16 %v3230
    %v4336 = vunpack.c.h.b16 %v3230
    %v4337 = vunpack.c.l.b16 %v3231
    %v4338 = vunpack.c.h.b16 %v3231
    %v4339 = vunpack.c.l.b16 %v3232
    %v4340 = vunpack.c.h.b16 %v3232
    %v4341 = vunpack.c.l.b16 %v3233
    %v4342 = vunpack.c.h.b16 %v3233
    %v4343 = vunpack.c.l.b16 %v3234
    %v4344 = vunpack.c.h.b16 %v3234
    %v4345 = vunpack.c.l.b16 %v3235
    %v4346 = vunpack.c.h.b16 %v3235
    %v4347 = vunpack.c.l.b16 %v3236
    %v4348 = vunpack.c.h.b16 %v3236
    %v4349 = vunpack.c.l.b16 %v3237
    %v4350 = vunpack.c.h.b16 %v3237
    %v4351 = vunpack.c.l.b16 %v3238
    %v4352 = vunpack.c.h.b16 %v3238
    %v4353 = vunpack.c.l.b16 %v3239
    %v4354 = vunpack.c.h.b16 %v3239
    %v4355 = vunpack.c.l.b16 %v3240
    %v4356 = vunpack.c.h.b16 %v3240
    %v4357 = vunpack.c.l.b16 %v3241
    %v4358 = vunpack.c.h.b16 %v3241
    %v4359 = vunpack.c.l.b16 %v3242
    %v4360 = vunpack.c.h.b16 %v3242
    %v4361 = vunpack.c.l.b16 %v3243
    %v4362 = vunpack.c.h.b16 %v3243
    %v4363 = vunpack.c.l.b16 %v3244
    %v4364 = vunpack.c.h.b16 %v3244
    %v4365 = vunpack.c.l.b16 %v3245
    %v4366 = vunpack.c.h.b16 %v3245
    %v4367 = vunpack.c.l.b16 %v3246
    %v4368 = vunpack.c.h.b16 %v3246
    %v4369 = vunpack.c.l.b16 %v3247
    %v4370 = vunpack.c.h.b16 %v3247
    %v4371 = vunpack.c.l.b16 %v3248
    %v4372 = vunpack.c.h.b16 %v3248
    %v4373 = vunpack.c.l.b16 %v3249
    %v4374 = vunpack.c.h.b16 %v3249
    %v4375 = vunpack.c.l.b16 %v3250
    %v4376 = vunpack.c.h.b16 %v3250
    %v4377 = vunpack.c.l.b16 %v3251
    %v4378 = vunpack.c.h.b16 %v3251
    %v4379 = vunpack.c.l.b16 %v3252
    %v4380 = vunpack.c.h.b16 %v3252
    %v4381 = vunpack.c.l.b16 %v3253
    %v4382 = vunpack.c.h.b16 %v3253
    %v4383 = vunpack.c.l.b16 %v3254
    %v4384 = vunpack.c.h.b16 %v3254
    %v4385 = vunpack.c.l.b16 %v3255
    %v4386 = vunpack.c.h.b16 %v3255
    %v4387 = vunpack.c.l.b16 %v3256
    %v4388 = vunpack.c.h.b16 %v3256
    %v4389 = vunpack.c.l.b16 %v3257
    %v4390 = vunpack.c.h.b16 %v3257
    %v4391 = vunpack.c.l.b16 %v3258
    %v4392 = vunpack.c.h.b16 %v3258
    %v4393 = vunpack.c.l.b16 %v3259
    %v4394 = vunpack.c.h.b16 %v3259
    %v4395 = vunpack.c.l.b16 %v3260
    %v4396 = vunpack.c.h.b16 %v3260
    %v4397 = vunpack.c.l.b16 %v3261
    %v4398 = vunpack.c.h.b16 %v3261
    %v4399 = vunpack.c.l.b16 %v3262
    %v4400 = vunpack.c.h.b16 %v3262
    %v4401 = vunpack.c.l.b16 %v3263
    %v4402 = vunpack.c.h.b16 %v3263
    %v4403 = vunpack.c.l.b16 %v3264
    %v4404 = vunpack.c.h.b16 %v3264
    %v4405 = vunpack.c.l.b16 %v3265
    %v4406 = vunpack.c.h.b16 %v3265
    %v4407 = vunpack.c.l.b16 %v3266
    %v4408 = vunpack.c.h.b16 %v3266
    %v4409 = vunpack.c.l.b16 %v3267
    %v4410 = vunpack.c.h.b16 %v3267
    %v4411 = vunpack.c.l.b16 %v3268
    %v4412 = vunpack.c.h.b16 %v3268
    %v4413 = vunpack.c.l.b16 %v3269
    %v4414 = vunpack.c.h.b16 %v3269
    %v4415 = vunpack.c.l.b16 %v3270
    %v4416 = vunpack.c.h.b16 %v3270
    %v4417 = vunpack.c.l.b16 %v3271
    %v4418 = vunpack.c.h.b16 %v3271
    %v4419 = vunpack.c.l.b16 %v3272
    %v4420 = vunpack.c.h.b16 %v3272
    %v4421 = vunpack.c.l.b16 %v3273
    %v4422 = vunpack.c.h.b16 %v3273
    %v4423 = vunpack.c.l.b16 %v3274
    %v4424 = vunpack.c.h.b16 %v3274
    %v4425 = vunpack.c.l.b16 %v3275
    %v4426 = vunpack.c.h.b16 %v3275
    %v4427 = vunpack.c.l.b16 %v3276
    %v4428 = vunpack.c.h.b16 %v3276
    %v4429 = vunpack.c.l.b16 %v3277
    %v4430 = vunpack.c.h.b16 %v3277
    %v4431 = vunpack.c.l.b16 %v3278
    %v4432 = vunpack.c.h.b16 %v3278
    %v4433 = vunpack.c.l.b16 %v3279
    %v4434 = vunpack.c.h.b16 %v3279
    %v4435 = vunpack.c.l.b16 %v3280
    %v4436 = vunpack.c.h.b16 %v3280
    %v4437 = vunpack.c.l.b16 %v3281
    %v4438 = vunpack.c.h.b16 %v3281
    %v4439 = vunpack.c.l.b16 %v3282
    %v4440 = vunpack.c.h.b16 %v3282
    %v4441 = vunpack.c.l.b16 %v3283
    %v4442 = vunpack.c.h.b16 %v3283
    %v4443 = vunpack.c.l.b16 %v3284
    %v4444 = vunpack.c.h.b16 %v3284
    %v4445 = vunpack.c.l.b16 %v3285
    %v4446 = vunpack.c.h.b16 %v3285
    %v4447 = vunpack.c.l.b16 %v3286
    %v4448 = vunpack.c.h.b16 %v3286
    %v4449 = vunpack.c.l.b16 %v3287
    %v4450 = vunpack.c.h.b16 %v3287
    %v4451 = vunpack.c.l.b16 %v3288
    %v4452 = vunpack.c.h.b16 %v3288
    %v4453 = vunpack.c.l.b16 %v3289
    %v4454 = vunpack.c.h.b16 %v3289
    %v4455 = vunpack.c.l.b16 %v3290
    %v4456 = vunpack.c.h.b16 %v3290
    %v4457 = vunpack.c.l.b16 %v3291
    %v4458 = vunpack.c.h.b16 %v3291
    %v4459 = vunpack.c.l.b16 %v3292
    %v4460 = vunpack.c.h.b16 %v3292
    %v4461 = vunpack.c.l.b16 %v3293
    %v4462 = vunpack.c.h.b16 %v3293
    %v4463 = vunpack.c.l.b16 %v3294
    %v4464 = vunpack.c.h.b16 %v3294
    %v4465 = vunpack.c.l.b16 %v3295
    %v4466 = vunpack.c.h.b16 %v3295
    %v4467 = vunpack.c.l.b16 %v3296
    %v4468 = vunpack.c.h.b16 %v3296
    %v4469 = vunpack.c.l.b16 %v3297
    %v4470 = vunpack.c.h.b16 %v3297
    %v4471 = vunpack.c.l.b16 %v3298
    %v4472 = vunpack.c.h.b16 %v3298
    %v4473 = vunpack.c.l.b16 %v3299
    %v4474 = vunpack.c.h.b16 %v3299
    %v4475 = vunpack.c.l.b16 %v3300
    %v4476 = vunpack.c.h.b16 %v3300
    %v4477 = vunpack.c.l.b16 %v3301
    %v4478 = vunpack.c.h.b16 %v3301
    %v4479 = vunpack.c.l.b16 %v3302
    %v4480 = vunpack.c.h.b16 %v3302
    %v4481 = vunpack.c.l.b16 %v3303
    %v4482 = vunpack.c.h.b16 %v3303
    %v4483 = vunpack.c.l.b16 %v3304
    %v4484 = vunpack.c.h.b16 %v3304
    %v4485 = vunpack.c.l.b16 %v3305
    %v4486 = vunpack.c.h.b16 %v3305
    %v4487 = vunpack.c.l.b16 %v3306
    %v4488 = vunpack.c.h.b16 %v3306
    %v4489 = vunpack.c.l.b16 %v3307
    %v4490 = vunpack.c.h.b16 %v3307
    %v4491 = vunpack.c.l.b16 %v3308
    %v4492 = vunpack.c.h.b16 %v3308
    %v4493 = vunpack.c.l.b16 %v3309
    %v4494 = vunpack.c.h.b16 %v3309
    %v4495 = vunpack.c.l.b16 %v3310
    %v4496 = vunpack.c.h.b16 %v3310
    %v4497 = vunpack.c.l.b16 %v3311
    %v4498 = vunpack.c.h.b16 %v3311
    %v4499 = vunpack.c.l.b16 %v3312
    %v4500 = vunpack.c.h.b16 %v3312
    %v4501 = vunpack.c.l.b16 %v3313
    %v4502 = vunpack.c.h.b16 %v3313
    %v4503 = vunpack.c.l.b16 %v3314
    %v4504 = vunpack.c.h.b16 %v3314
    %v4505 = vunpack.c.l.b16 %v3315
    %v4506 = vunpack.c.h.b16 %v3315
    %v4507 = vunpack.c.l.b16 %v3316
    %v4508 = vunpack.c.h.b16 %v3316
    %v4509 = vunpack.c.l.b16 %v3317
    %v4510 = vunpack.c.h.b16 %v3317
    %v4511 = vunpack.c.l.b16 %v3318
    %v4512 = vunpack.c.h.b16 %v3318
    %v4513 = vunpack.c.l.b16 %v3319
    %v4514 = vunpack.c.h.b16 %v3319
    %v4515 = vunpack.c.l.b16 %v3320
    %v4516 = vunpack.c.h.b16 %v3320
    %v4517 = vunpack.c.l.b16 %v3321
    %v4518 = vunpack.c.h.b16 %v3321
    %v4519 = vunpack.c.l.b16 %v3322
    %v4520 = vunpack.c.h.b16 %v3322
    %v4521 = vunpack.c.l.b16 %v3323
    %v4522 = vunpack.c.h.b16 %v3323
    %v4523 = vunpack.c.l.b16 %v3324
    %v4524 = vunpack.c.h.b16 %v3324
    %v4525 = vunpack.c.l.b16 %v3325
    %v4526 = vunpack.c.h.b16 %v3325
    %v4527 = vunpack.c.l.b16 %v3326
    %v4528 = vunpack.c.h.b16 %v3326
    %v4529 = vunpack.c.l.b16 %v3327
    %v4530 = vunpack.c.h.b16 %v3327
    %v4531 = vunpack.c.l.b16 %v3328
    %v4532 = vunpack.c.h.b16 %v3328
    %v4533 = vunpack.c.l.b16 %v3329
    %v4534 = vunpack.c.h.b16 %v3329
    %v4535 = vunpack.c.l.b16 %v3330
    %v4536 = vunpack.c.h.b16 %v3330
    %v4537 = vunpack.c.l.b16 %v3331
    %v4538 = vunpack.c.h.b16 %v3331
    %v4539 = vunpack.c.l.b16 %v3332
    %v4540 = vunpack.c.h.b16 %v3332
    %v4541 = vunpack.c.l.b16 %v3333
    %v4542 = vunpack.c.h.b16 %v3333
    %v4543 = vunpack.c.l.b16 %v3334
    %v4544 = vunpack.c.h.b16 %v3334
    %v4545 = vunpack.c.l.b16 %v3335
    %v4546 = vunpack.c.h.b16 %v3335
    %v4547 = vunpack.c.l.b16 %v3336
    %v4548 = vunpack.c.h.b16 %v3336
    %v4549 = vunpack.c.l.b16 %v3337
    %v4550 = vunpack.c.h.b16 %v3337
    %v4551 = vunpack.c.l.b16 %v3338
    %v4552 = vunpack.c.h.b16 %v3338
    %v4553 = vunpack.c.l.b16 %v3339
    %v4554 = vunpack.c.h.b16 %v3339
    %v4555 = vunpack.c.l.b16 %v3340
    %v4556 = vunpack.c.h.b16 %v3340
    %v4557 = vunpack.c.l.b16 %v3341
    %v4558 = vunpack.c.h.b16 %v3341
    %v4559 = vunpack.c.l.b16 %v3342
    %v4560 = vunpack.c.h.b16 %v3342
    %v4561 = vunpack.c.l.b16 %v3343
    %v4562 = vunpack.c.h.b16 %v3343
    %v4563 = vunpack.c.l.b16 %v3344
    %v4564 = vunpack.c.h.b16 %v3344
    %v4565 = vunpack.c.l.b16 %v3345
    %v4566 = vunpack.c.h.b16 %v3345
    %v4567 = vunpack.c.l.b16 %v3346
    %v4568 = vunpack.c.h.b16 %v3346
    %v4569 = vunpack.c.l.b16 %v3347
    %v4570 = vunpack.c.h.b16 %v3347
    %v4571 = vunpack.c.l.b16 %v3348
    %v4572 = vunpack.c.h.b16 %v3348
    %v4573 = vunpack.c.l.b16 %v3349
    %v4574 = vunpack.c.h.b16 %v3349
    %v4575 = vunpack.c.l.b16 %v3350
    %v4576 = vunpack.c.h.b16 %v3350
    %v4577 = vunpack.c.l.b16 %v3351
    %v4578 = vunpack.c.h.b16 %v3351
    %v4579 = vunpack.c.l.b16 %v3352
    %v4580 = vunpack.c.h.b16 %v3352
    %v4581 = vunpack.c.l.b16 %v3353
    %v4582 = vunpack.c.h.b16 %v3353
    %v4583 = vunpack.c.l.b16 %v3354
    %v4584 = vunpack.c.h.b16 %v3354
    %v4585 = vunpack.c.l.b16 %v3355
    %v4586 = vunpack.c.h.b16 %v3355
    %v4587 = vunpack.c.l.b16 %v3356
    %v4588 = vunpack.c.h.b16 %v3356
    %v4589 = vunpack.c.l.b16 %v3357
    %v4590 = vunpack.c.h.b16 %v3357
    %v4591 = vunpack.c.l.b16 %v3358
    %v4592 = vunpack.c.h.b16 %v3358
    %v4593 = vunpack.c.l.b16 %v3359
    %v4594 = vunpack.c.h.b16 %v3359
    %v4595 = vunpack.c.l.b16 %v3360
    %v4596 = vunpack.c.h.b16 %v3360
    %v4597 = vunpack.c.l.b16 %v3361
    %v4598 = vunpack.c.h.b16 %v3361
    %v4599 = vunpack.c.l.b16 %v3362
    %v4600 = vunpack.c.h.b16 %v3362
    %v4601 = vunpack.c.l.b16 %v3363
    %v4602 = vunpack.c.h.b16 %v3363
    %v4603 = vunpack.c.l.b16 %v3364
    %v4604 = vunpack.c.h.b16 %v3364
    %v4605 = vunpack.c.l.b16 %v3365
    %v4606 = vunpack.c.h.b16 %v3365
    %v4607 = vunpack.c.l.b16 %v3366
    %v4608 = vunpack.c.h.b16 %v3366
    %v4609 = vunpack.c.l.b16 %v3367
    %v4610 = vunpack.c.h.b16 %v3367
    %v4611 = vunpack.c.l.b16 %v3368
    %v4612 = vunpack.c.h.b16 %v3368
    %v4613 = vunpack.c.l.b16 %v3369
    %v4614 = vunpack.c.h.b16 %v3369
    %v4615 = vunpack.c.l.b16 %v3370
    %v4616 = vunpack.c.h.b16 %v3370
    %v4617 = vunpack.c.l.b16 %v3371
    %v4618 = vunpack.c.h.b16 %v3371
    %v4619 = vunpack.c.l.b16 %v3372
    %v4620 = vunpack.c.h.b16 %v3372
    %v4621 = vunpack.c.l.b16 %v3373
    %v4622 = vunpack.c.h.b16 %v3373
    %v4623 = vunpack.c.l.b16 %v3374
    %v4624 = vunpack.c.h.b16 %v3374
    %v4625 = vunpack.c.l.b16 %v3375
    %v4626 = vunpack.c.h.b16 %v3375
    %v4627 = vunpack.c.l.b16 %v3376
    %v4628 = vunpack.c.h.b16 %v3376
    %v4629 = vunpack.c.l.b16 %v3377
    %v4630 = vunpack.c.h.b16 %v3377
    %v4631 = vunpack.c.l.b16 %v3378
    %v4632 = vunpack.c.h.b16 %v3378
    %v4633 = vunpack.c.l.b16 %v3379
    %v4634 = vunpack.c.h.b16 %v3379
    %v4635 = vunpack.c.l.b16 %v3380
    %v4636 = vunpack.c.h.b16 %v3380
    %v4637 = vunpack.c.l.b16 %v3381
    %v4638 = vunpack.c.h.b16 %v3381
    %v4639 = vunpack.c.l.b16 %v3382
    %v4640 = vunpack.c.h.b16 %v3382
    %v4641 = vunpack.c.l.b16 %v3383
    %v4642 = vunpack.c.h.b16 %v3383
    %v4643 = vunpack.c.l.b16 %v3384
    %v4644 = vunpack.c.h.b16 %v3384
    %v4645 = vunpack.c.l.b16 %v3385
    %v4646 = vunpack.c.h.b16 %v3385
    %v4647 = vunpack.c.l.b16 %v3386
    %v4648 = vunpack.c.h.b16 %v3386
    %v4649 = vunpack.c.l.b16 %v3387
    %v4650 = vunpack.c.h.b16 %v3387
    %v4651 = vunpack.c.l.b16 %v3388
    %v4652 = vunpack.c.h.b16 %v3388
    %v4653 = vunpack.c.l.b16 %v3389
    %v4654 = vunpack.c.h.b16 %v3389
    %v4655 = vunpack.c.l.b16 %v3390
    %v4656 = vunpack.c.h.b16 %v3390
    %v4657 = vunpack.c.l.b16 %v3391
    %v4658 = vunpack.c.h.b16 %v3391
    %v4659 = vunpack.c.l.b16 %v3392
    %v4660 = vunpack.c.h.b16 %v3392
    %v4661 = vunpack.c.l.b16 %v3393
    %v4662 = vunpack.c.h.b16 %v3393
    %v4663 = vunpack.c.l.b16 %v3394
    %v4664 = vunpack.c.h.b16 %v3394
    %v4665 = vunpack.c.l.b16 %v3395
    %v4666 = vunpack.c.h.b16 %v3395
    %v4667 = vunpack.c.l.b16 %v3396
    %v4668 = vunpack.c.h.b16 %v3396
    %v4669 = vunpack.c.l.b16 %v3397
    %v4670 = vunpack.c.h.b16 %v3397
    %v4671 = vunpack.c.l.b16 %v3398
    %v4672 = vunpack.c.h.b16 %v3398
    %v4673 = vunpack.c.l.b16 %v3399
    %v4674 = vunpack.c.h.b16 %v3399
    %v4675 = vunpack.c.l.b16 %v3400
    %v4676 = vunpack.c.h.b16 %v3400
    %v4677 = vunpack.c.l.b16 %v3401
    %v4678 = vunpack.c.h.b16 %v3401
    %v4679 = vunpack.c.l.b16 %v3402
    %v4680 = vunpack.c.h.b16 %v3402
    %v4681 = vunpack.c.l.b16 %v3403
    %v4682 = vunpack.c.h.b16 %v3403
    %v4683 = vunpack.c.l.b16 %v3404
    %v4684 = vunpack.c.h.b16 %v3404
    %v4685 = vunpack.c.l.b16 %v3405
    %v4686 = vunpack.c.h.b16 %v3405
    %v4687 = vunpack.c.l.b16 %v3406
    %v4688 = vunpack.c.h.b16 %v3406
    %v4689 = vunpack.c.l.b16 %v3407
    %v4690 = vunpack.c.h.b16 %v3407
    %v4691 = vunpack.c.l.b16 %v3408
    %v4692 = vunpack.c.h.b16 %v3408
    %v4693 = vunpack.c.l.b16 %v3409
    %v4694 = vunpack.c.h.b16 %v3409
    %v4695 = vunpack.c.l.b16 %v3410
    %v4696 = vunpack.c.h.b16 %v3410
    %v4697 = vunpack.c.l.b16 %v3411
    %v4698 = vunpack.c.h.b16 %v3411
    %v4699 = vunpack.c.l.b16 %v3412
    %v4700 = vunpack.c.h.b16 %v3412
    %v4701 = vunpack.c.l.b16 %v3413
    %v4702 = vunpack.c.h.b16 %v3413
    %v4703 = vunpack.c.l.b16 %v3414
    %v4704 = vunpack.c.h.b16 %v3414
    %v4705 = vunpack.c.l.b16 %v3415
    %v4706 = vunpack.c.h.b16 %v3415
    %v4707 = vunpack.c.l.b16 %v3416
    %v4708 = vunpack.c.h.b16 %v3416
    %v4709 = vunpack.c.l.b16 %v3417
    %v4710 = vunpack.c.h.b16 %v3417
    %v4711 = vunpack.c.l.b16 %v3418
    %v4712 = vunpack.c.h.b16 %v3418
    %v4713 = vunpack.c.l.b16 %v3419
    %v4714 = vunpack.c.h.b16 %v3419
    %v4715 = vunpack.c.l.b16 %v3420
    %v4716 = vunpack.c.h.b16 %v3420
    %v4717 = vunpack.c.l.b16 %v3421
    %v4718 = vunpack.c.h.b16 %v3421
    %v4719 = vunpack.c.l.b16 %v3422
    %v4720 = vunpack.c.h.b16 %v3422
    %v4721 = vunpack.c.l.b16 %v3423
    %v4722 = vunpack.c.h.b16 %v3423
    %v4723 = vunpack.c.l.b16 %v3424
    %v4724 = vunpack.c.h.b16 %v3424
    %v4725 = vunpack.c.l.b16 %v3425
    %v4726 = vunpack.c.h.b16 %v3425
    %v4727 = vunpack.c.l.b16 %v3426
    %v4728 = vunpack.c.h.b16 %v3426
    %v4729 = vunpack.c.l.b16 %v3427
    %v4730 = vunpack.c.h.b16 %v3427
    %v4731 = vunpack.c.l.b16 %v3428
    %v4732 = vunpack.c.h.b16 %v3428
    %v4733 = vunpack.c.l.b16 %v3429
    %v4734 = vunpack.c.h.b16 %v3429
    %v4735 = vunpack.c.l.b16 %v3430
    %v4736 = vunpack.c.h.b16 %v3430
    %v4737 = vunpack.c.l.b16 %v3431
    %v4738 = vunpack.c.h.b16 %v3431
    %v4739 = vunpack.c.l.b16 %v3432
    %v4740 = vunpack.c.h.b16 %v3432
    %v4741 = vunpack.c.l.b16 %v3433
    %v4742 = vunpack.c.h.b16 %v3433
    %v4743 = vunpack.c.l.b16 %v3434
    %v4744 = vunpack.c.h.b16 %v3434
    %v4745 = vunpack.c.l.b16 %v3435
    %v4746 = vunpack.c.h.b16 %v3435
    %v4747 = vunpack.c.l.b16 %v3436
    %v4748 = vunpack.c.h.b16 %v3436
    %v4749 = vunpack.c.l.b16 %v3437
    %v4750 = vunpack.c.h.b16 %v3437
    %v4751 = vunpack.c.l.b16 %v3438
    %v4752 = vunpack.c.h.b16 %v3438
    %v4753 = vunpack.c.l.b16 %v3439
    %v4754 = vunpack.c.h.b16 %v3439
    %v4755 = vunpack.c.l.b16 %v3440
    %v4756 = vunpack.c.h.b16 %v3440
    %v4757 = vunpack.c.l.b16 %v3441
    %v4758 = vunpack.c.h.b16 %v3441
    %v4759 = vunpack.c.l.b16 %v3442
    %v4760 = vunpack.c.h.b16 %v3442
    %v4761 = vunpack.c.l.b16 %v3443
    %v4762 = vunpack.c.h.b16 %v3443
    %v4763 = vunpack.c.l.b16 %v3444
    %v4764 = vunpack.c.h.b16 %v3444
    %v4765 = vunpack.c.l.b16 %v3445
    %v4766 = vunpack.c.h.b16 %v3445
    %v4767 = vunpack.c.l.b16 %v3446
    %v4768 = vunpack.c.h.b16 %v3446
    %v4769 = vunpack.c.l.b16 %v3447
    %v4770 = vunpack.c.h.b16 %v3447
    %v4771 = vunpack.c.l.b16 %v3448
    %v4772 = vunpack.c.h.b16 %v3448
    %v4773 = vunpack.c.l.b16 %v3449
    %v4774 = vunpack.c.h.b16 %v3449
    %v4775 = vunpack.c.l.b16 %v3450
    %v4776 = vunpack.c.h.b16 %v3450
    %v4777 = vunpack.c.l.b16 %v3451
    %v4778 = vunpack.c.h.b16 %v3451
    %v4779 = vunpack.c.l.b16 %v3452
    %v4780 = vunpack.c.h.b16 %v3452
    %v4781 = vunpack.c.l.b16 %v3453
    %v4782 = vunpack.c.h.b16 %v3453
    %v4783 = vunpack.c.l.b16 %v3454
    %v4784 = vunpack.c.h.b16 %v3454
    %v4785 = vunpack.c.l.b16 %v3455
    %v4786 = vunpack.c.h.b16 %v3455
    %v4787 = vunpack.c.l.b16 %v3456
    %v4788 = vunpack.c.h.b16 %v3456
    %v4789 = vunpack.c.l.b16 %v3457
    %v4790 = vunpack.c.h.b16 %v3457
    %v4791 = vunpack.c.l.b16 %v3458
    %v4792 = vunpack.c.h.b16 %v3458
    %v4793 = vunpack.c.l.b16 %v3459
    %v4794 = vunpack.c.h.b16 %v3459
    %v4795 = vunpack.c.l.b16 %v3460
    %v4796 = vunpack.c.h.b16 %v3460
    %v4797 = vunpack.c.l.b16 %v3461
    %v4798 = vunpack.c.h.b16 %v3461
    %v4799 = vunpack.c.l.b16 %v3462
    %v4800 = vunpack.c.h.b16 %v3462
    %v4801 = vunpack.c.l.b16 %v3463
    %v4802 = vunpack.c.h.b16 %v3463
    %v4803 = vunpack.c.l.b16 %v3464
    %v4804 = vunpack.c.h.b16 %v3464
    %v4805 = vunpack.c.l.b16 %v3465
    %v4806 = vunpack.c.h.b16 %v3465
    %v4807 = vunpack.c.l.b16 %v3466
    %v4808 = vunpack.c.h.b16 %v3466
    %v4809 = vunpack.c.l.b16 %v3467
    %v4810 = vunpack.c.h.b16 %v3467
    %v4811 = vunpack.c.l.b16 %v3468
    %v4812 = vunpack.c.h.b16 %v3468
    %v4813 = vunpack.c.l.b16 %v3469
    %v4814 = vunpack.c.h.b16 %v3469
    %v4815 = vunpack.c.l.b16 %v3470
    %v4816 = vunpack.c.h.b16 %v3470
    %v4817 = vunpack.c.l.b16 %v3471
    %v4818 = vunpack.c.h.b16 %v3471
    %v4819 = vunpack.c.l.b16 %v3472
    %v4820 = vunpack.c.h.b16 %v3472
    %v4821 = vunpack.c.l.b16 %v3473
    %v4822 = vunpack.c.h.b16 %v3473
    %v4823 = vunpack.c.l.b16 %v3474
    %v4824 = vunpack.c.h.b16 %v3474
    %v4825 = vunpack.c.l.b16 %v3475
    %v4826 = vunpack.c.h.b16 %v3475
    %v4827 = vunpack.c.l.b16 %v3476
    %v4828 = vunpack.c.h.b16 %v3476
    %v4829 = vunpack.c.l.b16 %v3477
    %v4830 = vunpack.c.h.b16 %v3477
    %v4831 = vunpack.c.l.b16 %v3478
    %v4832 = vunpack.c.h.b16 %v3478
    %v4833 = vunpack.c.l.b16 %v3479
    %v4834 = vunpack.c.h.b16 %v3479
    %v4835 = vunpack.c.l.b16 %v3480
    %v4836 = vunpack.c.h.b16 %v3480
    %v4837 = vunpack.c.l.b16 %v3481
    %v4838 = vunpack.c.h.b16 %v3481
    %v4839 = vunpack.c.l.b16 %v3482
    %v4840 = vunpack.c.h.b16 %v3482
    %v4841 = vunpack.c.l.b16 %v3483
    %v4842 = vunpack.c.h.b16 %v3483
    %v4843 = vunpack.c.l.b16 %v3484
    %v4844 = vunpack.c.h.b16 %v3484
    %v4845 = vunpack.c.l.b16 %v3485
    %v4846 = vunpack.c.h.b16 %v3485
    %v4847 = vunpack.c.l.b16 %v3486
    %v4848 = vunpack.c.h.b16 %v3486
    %v4849 = vunpack.c.l.b16 %v3487
    %v4850 = vunpack.c.h.b16 %v3487
    %v4851 = vunpack.c.l.b16 %v3488
    %v4852 = vunpack.c.h.b16 %v3488
    %v4853 = vunpack.c.l.b16 %v3489
    %v4854 = vunpack.c.h.b16 %v3489
    %v4855 = vunpack.c.l.b16 %v3490
    %v4856 = vunpack.c.h.b16 %v3490
    %v4857 = vunpack.c.l.b16 %v3491
    %v4858 = vunpack.c.h.b16 %v3491
    %v4859 = vunpack.c.l.b16 %v3492
    %v4860 = vunpack.c.h.b16 %v3492
    %v4861 = vunpack.c.l.b16 %v3493
    %v4862 = vunpack.c.h.b16 %v3493
    %v4863 = vunpack.c.l.b16 %v3494
    %v4864 = vunpack.c.h.b16 %v3494
    %v4865 = vunpack.c.l.b16 %v3495
    %v4866 = vunpack.c.h.b16 %v3495
    %v4867 = vunpack.c.l.b16 %v3496
    %v4868 = vunpack.c.h.b16 %v3496
    %v4869 = vunpack.c.l.b16 %v3497
    %v4870 = vunpack.c.h.b16 %v3497
    %v4871 = vunpack.c.l.b16 %v3498
    %v4872 = vunpack.c.h.b16 %v3498
    %v4873 = vunpack.c.l.b16 %v3499
    %v4874 = vunpack.c.h.b16 %v3499
    %v4875 = vunpack.c.l.b16 %v3500
    %v4876 = vunpack.c.h.b16 %v3500
    %v4877 = vunpack.c.l.b16 %v3501
    %v4878 = vunpack.c.h.b16 %v3501
    %v4879 = vunpack.c.l.b16 %v3502
    %v4880 = vunpack.c.h.b16 %v3502
    %v4881 = vunpack.c.l.b16 %v3503
    %v4882 = vunpack.c.h.b16 %v3503
    %v4883 = vunpack.c.l.b16 %v3504
    %v4884 = vunpack.c.h.b16 %v3504
    %v4885 = vunpack.c.l.b16 %v3505
    %v4886 = vunpack.c.h.b16 %v3505
    %v4887 = vunpack.c.l.b16 %v3506
    %v4888 = vunpack.c.h.b16 %v3506
    %v4889 = vunpack.c.l.b16 %v3507
    %v4890 = vunpack.c.h.b16 %v3507
    %v4891 = vunpack.c.l.b16 %v3508
    %v4892 = vunpack.c.h.b16 %v3508
    %v4893 = vunpack.c.l.b16 %v3509
    %v4894 = vunpack.c.h.b16 %v3509
    %v4895 = vunpack.c.l.b16 %v3510
    %v4896 = vunpack.c.h.b16 %v3510
    %v4897 = vunpack.c.l.b16 %v3511
    %v4898 = vunpack.c.h.b16 %v3511
    %v4899 = vunpack.c.l.b16 %v3512
    %v4900 = vunpack.c.h.b16 %v3512
    %v4901 = vunpack.c.l.b16 %v3513
    %v4902 = vunpack.c.h.b16 %v3513
    %v4903 = vunpack.c.l.b16 %v3514
    %v4904 = vunpack.c.h.b16 %v3514
    %v4905 = vunpack.c.l.b16 %v3515
    %v4906 = vunpack.c.h.b16 %v3515
    %v4907 = vunpack.c.l.b16 %v3516
    %v4908 = vunpack.c.h.b16 %v3516
    %v4909 = vunpack.c.l.b16 %v3517
    %v4910 = vunpack.c.h.b16 %v3517
    %v4911 = vunpack.c.l.b16 %v3518
    %v4912 = vunpack.c.h.b16 %v3518
    %v4913 = vunpack.c.l.b16 %v3519
    %v4914 = vunpack.c.h.b16 %v3519
    %v4915 = vunpack.c.l.b16 %v3520
    %v4916 = vunpack.c.h.b16 %v3520
    %v4917 = vunpack.c.l.b16 %v3521
    %v4918 = vunpack.c.h.b16 %v3521
    %v4919 = vunpack.c.l.b16 %v3522
    %v4920 = vunpack.c.h.b16 %v3522
    %v4921 = vunpack.c.l.b16 %v3523
    %v4922 = vunpack.c.h.b16 %v3523
    %v4923 = vunpack.c.l.b16 %v3524
    %v4924 = vunpack.c.h.b16 %v3524
    %v4925 = vunpack.c.l.b16 %v3525
    %v4926 = vunpack.c.h.b16 %v3525
    %v4927 = vunpack.c.l.b16 %v3526
    %v4928 = vunpack.c.h.b16 %v3526
    %v4929 = vunpack.c.l.b16 %v3527
    %v4930 = vunpack.c.h.b16 %v3527
    %v4931 = vunpack.c.l.b16 %v3528
    %v4932 = vunpack.c.h.b16 %v3528
    %v4933 = vunpack.c.l.b16 %v3529
    %v4934 = vunpack.c.h.b16 %v3529
    %v4935 = vunpack.c.l.b16 %v3530
    %v4936 = vunpack.c.h.b16 %v3530
    %v4937 = vunpack.c.l.b16 %v3531
    %v4938 = vunpack.c.h.b16 %v3531
    %v4939 = vunpack.c.l.b16 %v3532
    %v4940 = vunpack.c.h.b16 %v3532
    %v4941 = vunpack.c.l.b16 %v3533
    %v4942 = vunpack.c.h.b16 %v3533
    %v4943 = vunpack.c.l.b16 %v3534
    %v4944 = vunpack.c.h.b16 %v3534
    %v4945 = vunpack.c.l.b16 %v3535
    %v4946 = vunpack.c.h.b16 %v3535
    %v4947 = vunpack.c.l.b16 %v3536
    %v4948 = vunpack.c.h.b16 %v3536
    %v4949 = vunpack.c.l.b16 %v3537
    %v4950 = vunpack.c.h.b16 %v3537
    %v4951 = vunpack.c.l.b16 %v3538
    %v4952 = vunpack.c.h.b16 %v3538
    %v4953 = vunpack.c.l.b16 %v3539
    %v4954 = vunpack.c.h.b16 %v3539
    %v4955 = vunpack.c.l.b16 %v3540
    %v4956 = vunpack.c.h.b16 %v3540
    %v4957 = vunpack.c.l.b16 %v3541
    %v4958 = vunpack.c.h.b16 %v3541
    %v4959 = vunpack.c.l.b16 %v3542
    %v4960 = vunpack.c.h.b16 %v3542
    %v4961 = vunpack.c.l.b16 %v3543
    %v4962 = vunpack.c.h.b16 %v3543
    %v4963 = vunpack.c.l.b16 %v3544
    %v4964 = vunpack.c.h.b16 %v3544
    %v4965 = vunpack.c.l.b16 %v3545
    %v4966 = vunpack.c.h.b16 %v3545
    %v4967 = vunpack.c.l.b16 %v3546
    %v4968 = vunpack.c.h.b16 %v3546
    %v4969 = vunpack.c.l.b16 %v3547
    %v4970 = vunpack.c.h.b16 %v3547
    %v4971 = vunpack.c.l.b16 %v3548
    %v4972 = vunpack.c.h.b16 %v3548
    %v4973 = vunpack.c.l.b16 %v3549
    %v4974 = vunpack.c.h.b16 %v3549
    %v4975 = vunpack.c.l.b16 %v3550
    %v4976 = vunpack.c.h.b16 %v3550
    %v4977 = vunpack.c.l.b16 %v3551
    %v4978 = vunpack.c.h.b16 %v3551
    %v4979 = vunpack.c.l.b16 %v3552
    %v4980 = vunpack.c.h.b16 %v3552
    %v4981 = vunpack.c.l.b16 %v3553
    %v4982 = vunpack.c.h.b16 %v3553
    %v4983 = vunpack.c.l.b16 %v3554
    %v4984 = vunpack.c.h.b16 %v3554
    %v4985 = vunpack.c.l.b16 %v3555
    %v4986 = vunpack.c.h.b16 %v3555
    %v4987 = vunpack.c.l.b16 %v3556
    %v4988 = vunpack.c.h.b16 %v3556
    %v4989 = vunpack.c.l.b16 %v3557
    %v4990 = vunpack.c.h.b16 %v3557
    %v4991 = vunpack.c.l.b16 %v3558
    %v4992 = vunpack.c.h.b16 %v3558
    %v4993 = vunpack.c.l.b16 %v3559
    %v4994 = vunpack.c.h.b16 %v3559
    %v4995 = vunpack.c.l.b16 %v3560
    %v4996 = vunpack.c.h.b16 %v3560
    %v4997 = vunpack.c.l.b16 %v3561
    %v4998 = vunpack.c.h.b16 %v3561
    %v4999 = vunpack.c.l.b16 %v3562
    %v5000 = vunpack.c.h.b16 %v3562
    %v5001 = vunpack.c.l.b16 %v3563
    %v5002 = vunpack.c.h.b16 %v3563
    %v5003 = vunpack.c.l.b16 %v3564
    %v5004 = vunpack.c.h.b16 %v3564
    %v5005 = vunpack.c.l.b16 %v3565
    %v5006 = vunpack.c.h.b16 %v3565
    %v5007 = vunpack.c.l.b16 %v3566
    %v5008 = vunpack.c.h.b16 %v3566
    %v5009 = vunpack.c.l.b16 %v3567
    %v5010 = vunpack.c.h.b16 %v3567
    %v5011 = vunpack.c.l.b16 %v3568
    %v5012 = vunpack.c.h.b16 %v3568
    %v5013 = vunpack.c.l.b16 %v3569
    %v5014 = vunpack.c.h.b16 %v3569
    %v5015 = vunpack.c.l.b16 %v3570
    %v5016 = vunpack.c.h.b16 %v3570
    %v5017 = vunpack.c.l.b16 %v3571
    %v5018 = vunpack.c.h.b16 %v3571
    %v5019 = vunpack.c.l.b16 %v3572
    %v5020 = vunpack.c.h.b16 %v3572
    %v5021 = vunpack.c.l.b16 %v3573
    %v5022 = vunpack.c.h.b16 %v3573
    %v5023 = vunpack.c.l.b16 %v3574
    %v5024 = vunpack.c.h.b16 %v3574
    %v5025 = vunpack.c.l.b16 %v3575
    %v5026 = vunpack.c.h.b16 %v3575
    %v5027 = vunpack.c.l.b16 %v3576
    %v5028 = vunpack.c.h.b16 %v3576
    %v5029 = vunpack.c.l.b16 %v3577
    %v5030 = vunpack.c.h.b16 %v3577
    %v5031 = vunpack.c.l.b16 %v3578
    %v5032 = vunpack.c.h.b16 %v3578
    %v5033 = vunpack.c.l.b16 %v3579
    %v5034 = vunpack.c.h.b16 %v3579
    %v5035 = vunpack.c.l.b16 %v3580
    %v5036 = vunpack.c.h.b16 %v3580
    %v5037 = vunpack.c.l.b16 %v3581
    %v5038 = vunpack.c.h.b16 %v3581
    %v5039 = vunpack.c.l.b16 %v3582
    %v5040 = vunpack.c.h.b16 %v3582
    %v5041 = vunpack.c.l.b16 %v3583
    %v5042 = vunpack.c.h.b16 %v3583
    %v5043 = vunpack.c.l.b16 %v3584
    %v5044 = vunpack.c.h.b16 %v3584
    %v5045 = vunpack.c.l.b16 %v3585
    %v5046 = vunpack.c.h.b16 %v3585
    %v5047 = vunpack.c.l.b16 %v3586
    %v5048 = vunpack.c.h.b16 %v3586
    %v5049 = vunpack.c.l.b16 %v3587
    %v5050 = vunpack.c.h.b16 %v3587
    %v5051 = vunpack.c.l.b16 %v3588
    %v5052 = vunpack.c.h.b16 %v3588
    %v5053 = vunpack.c.l.b16 %v3589
    %v5054 = vunpack.c.h.b16 %v3589
    %v5055 = vunpack.c.l.b16 %v3590
    %v5056 = vunpack.c.h.b16 %v3590
    %v5057 = vunpack.c.l.b16 %v3591
    %v5058 = vunpack.c.h.b16 %v3591
    %v5059 = vunpack.c.l.b16 %v3592
    %v5060 = vunpack.c.h.b16 %v3592
    %v5061 = vunpack.c.l.b16 %v3593
    %v5062 = vunpack.c.h.b16 %v3593
    %v5063 = vunpack.c.l.b16 %v3594
    %v5064 = vunpack.c.h.b16 %v3594
    %v5065 = vunpack.c.l.b16 %v3595
    %v5066 = vunpack.c.h.b16 %v3595
    %v5067 = vunpack.c.l.b16 %v3596
    %v5068 = vunpack.c.h.b16 %v3596
    %v5069 = vunpack.c.l.b16 %v3597
    %v5070 = vunpack.c.h.b16 %v3597
    %v5071 = vunpack.c.l.b16 %v3598
    %v5072 = vunpack.c.h.b16 %v3598
    %v5073 = vunpack.c.l.b16 %v3599
    %v5074 = vunpack.c.h.b16 %v3599
    %v5075 = vunpack.c.l.b16 %v3600
    %v5076 = vunpack.c.h.b16 %v3600
    %v5077 = vunpack.c.l.b16 %v3601
    %v5078 = vunpack.c.h.b16 %v3601
    %v5079 = vunpack.c.l.b16 %v3602
    %v5080 = vunpack.c.h.b16 %v3602
    %v5081 = vunpack.c.l.b16 %v3603
    %v5082 = vunpack.c.h.b16 %v3603
    %v5083 = vunpack.c.l.b16 %v3604
    %v5084 = vunpack.c.h.b16 %v3604
    %v5085 = vunpack.c.l.b16 %v3605
    %v5086 = vunpack.c.h.b16 %v3605
    %v5087 = vunpack.c.l.b16 %v3606
    %v5088 = vunpack.c.h.b16 %v3606
    %v5089 = vunpack.c.l.b16 %v3607
    %v5090 = vunpack.c.h.b16 %v3607
    %v5091 = vunpack.c.l.b16 %v3608
    %v5092 = vunpack.c.h.b16 %v3608
    %v5093 = vunpack.c.l.b16 %v3609
    %v5094 = vunpack.c.h.b16 %v3609
    %v5095 = vunpack.c.l.b16 %v3610
    %v5096 = vunpack.c.h.b16 %v3610
    %v5097 = vunpack.c.l.b16 %v3611
    %v5098 = vunpack.c.h.b16 %v3611
    %v5099 = vunpack.c.l.b16 %v3612
    %v5100 = vunpack.c.h.b16 %v3612
    %v5101 = vunpack.c.l.b16 %v3613
    %v5102 = vunpack.c.h.b16 %v3613
    %v5103 = vunpack.c.l.b16 %v3614
    %v5104 = vunpack.c.h.b16 %v3614
    %v5105 = vunpack.c.l.b16 %v3615
    %v5106 = vunpack.c.h.b16 %v3615
    %v5107 = vunpack.c.l.b16 %v3616
    %v5108 = vunpack.c.h.b16 %v3616
    %v5109 = vunpack.c.l.b16 %v3617
    %v5110 = vunpack.c.h.b16 %v3617
    %v5111 = vunpack.c.l.b16 %v3618
    %v5112 = vunpack.c.h.b16 %v3618
    %v5113 = vunpack.c.l.b16 %v3619
    %v5114 = vunpack.c.h.b16 %v3619
    %v5115 = vunpack.c.l.b16 %v3620
    %v5116 = vunpack.c.h.b16 %v3620
    %v5117 = vunpack.c.l.b16 %v3621
    %v5118 = vunpack.c.h.b16 %v3621
    %v5119 = vunpack.c.l.b16 %v3622
    %v5120 = vunpack.c.h.b16 %v3622
    %v5121 = vunpack.c.l.b16 %v3623
    %v5122 = vunpack.c.h.b16 %v3623
    %v5123 = vunpack.c.l.b16 %v3624
    %v5124 = vunpack.c.h.b16 %v3624
    %v5125 = vunpack.c.l.b16 %v3625
    %v5126 = vunpack.c.h.b16 %v3625
    %v5127 = vunpack.c.l.b16 %v3626
    %v5128 = vunpack.c.h.b16 %v3626
    %v5129 = vunpack.c.l.b16 %v3627
    %v5130 = vunpack.c.h.b16 %v3627
    %v5131 = vunpack.c.l.b16 %v3628
    %v5132 = vunpack.c.h.b16 %v3628
    %v5133 = vunpack.c.l.b16 %v3629
    %v5134 = vunpack.c.h.b16 %v3629
    %v5135 = vunpack.c.l.b16 %v3630
    %v5136 = vunpack.c.h.b16 %v3630
    %v5137 = vunpack.c.l.b16 %v3631
    %v5138 = vunpack.c.h.b16 %v3631
    %v5139 = vunpack.c.l.b16 %v3632
    %v5140 = vunpack.c.h.b16 %v3632
    %v5141 = vunpack.c.l.b16 %v3633
    %v5142 = vunpack.c.h.b16 %v3633
    %v5143 = vunpack.c.l.b16 %v3634
    %v5144 = vunpack.c.h.b16 %v3634
    %v5145 = vunpack.c.l.b16 %v3635
    %v5146 = vunpack.c.h.b16 %v3635
    %v5147 = vunpack.c.l.b16 %v3636
    %v5148 = vunpack.c.h.b16 %v3636
    %v5149 = vunpack.c.l.b16 %v3637
    %v5150 = vunpack.c.h.b16 %v3637
    %v5151 = vunpack.c.l.b16 %v3638
    %v5152 = vunpack.c.h.b16 %v3638
    %v5153 = vunpack.c.l.b16 %v3639
    %v5154 = vunpack.c.h.b16 %v3639
    %v5155 = vunpack.c.l.b16 %v3640
    %v5156 = vunpack.c.h.b16 %v3640
    %v5157 = vunpack.c.l.b16 %v3641
    %v5158 = vunpack.c.h.b16 %v3641
    %v5159 = vunpack.c.l.b16 %v3642
    %v5160 = vunpack.c.h.b16 %v3642
    %v5161 = vunpack.c.l.b16 %v3643
    %v5162 = vunpack.c.h.b16 %v3643
    %v5163 = vunpack.c.l.b16 %v3644
    %v5164 = vunpack.c.h.b16 %v3644
    %v5165 = vunpack.c.l.b16 %v3645
    %v5166 = vunpack.c.h.b16 %v3645
    %v5167 = vunpack.c.l.b16 %v3646
    %v5168 = vunpack.c.h.b16 %v3646
    %v5169 = vunpack.c.l.b16 %v3647
    %v5170 = vunpack.c.h.b16 %v3647
    %v5171 = vunpack.c.l.b16 %v3648
    %v5172 = vunpack.c.h.b16 %v3648
    %v5173 = vunpack.c.l.b16 %v3649
    %v5174 = vunpack.c.h.b16 %v3649
    %v5175 = vunpack.c.l.b16 %v3650
    %v5176 = vunpack.c.h.b16 %v3650
    %v5177 = vunpack.c.l.b16 %v3651
    %v5178 = vunpack.c.h.b16 %v3651
    %v5179 = vunpack.c.l.b16 %v3652
    %v5180 = vunpack.c.h.b16 %v3652
    %v5181 = vunpack.c.l.b16 %v3653
    %v5182 = vunpack.c.h.b16 %v3653
    %v5183 = vunpack.c.l.b16 %v3654
    %v5184 = vunpack.c.h.b16 %v3654
    %v5185 = vunpack.c.l.b16 %v3655
    %v5186 = vunpack.c.h.b16 %v3655
    %v5187 = vunpack.c.l.b16 %v3656
    %v5188 = vunpack.c.h.b16 %v3656
    %v5189 = vunpack.c.l.b16 %v3657
    %v5190 = vunpack.c.h.b16 %v3657
    %v5191 = vunpack.c.l.b16 %v3658
    %v5192 = vunpack.c.h.b16 %v3658
    %v5193 = vunpack.c.l.b16 %v3659
    %v5194 = vunpack.c.h.b16 %v3659
    %v5195 = vunpack.c.l.b16 %v3660
    %v5196 = vunpack.c.h.b16 %v3660
    %v5197 = vunpack.c.l.b16 %v3661
    %v5198 = vunpack.c.h.b16 %v3661
    %v5199 = vunpack.c.l.b16 %v3662
    %v5200 = vunpack.c.h.b16 %v3662
    %v5201 = vunpack.c.l.b16 %v3663
    %v5202 = vunpack.c.h.b16 %v3663
    %v5203 = vunpack.c.l.b16 %v3664
    %v5204 = vunpack.c.h.b16 %v3664
    %v5205 = vunpack.c.l.b16 %v3665
    %v5206 = vunpack.c.h.b16 %v3665
    %v5207 = vunpack.c.l.b16 %v3666
    %v5208 = vunpack.c.h.b16 %v3666
    %v5209 = vunpack.c.l.b16 %v3667
    %v5210 = vunpack.c.h.b16 %v3667
    %v5211 = vunpack.c.l.b16 %v3668
    %v5212 = vunpack.c.h.b16 %v3668
    %v5213 = vunpack.c.l.b16 %v3669
    %v5214 = vunpack.c.h.b16 %v3669
    %v5215 = vunpack.c.l.b16 %v3670
    %v5216 = vunpack.c.h.b16 %v3670
    %v5217 = vunpack.c.l.b16 %v3671
    %v5218 = vunpack.c.h.b16 %v3671
    %v5219 = vunpack.c.l.b16 %v3672
    %v5220 = vunpack.c.h.b16 %v3672
    %v5221 = vunpack.c.l.b16 %v3673
    %v5222 = vunpack.c.h.b16 %v3673
    %v5223 = vunpack.c.l.b16 %v3674
    %v5224 = vunpack.c.h.b16 %v3674
    %v5225 = vunpack.c.l.b16 %v3675
    %v5226 = vunpack.c.h.b16 %v3675
    %v5227 = vunpack.c.l.b16 %v3676
    %v5228 = vunpack.c.h.b16 %v3676
    %v5229 = vunpack.c.l.b16 %v3677
    %v5230 = vunpack.c.h.b16 %v3677
    %v5231 = vunpack.c.l.b16 %v3678
    %v5232 = vunpack.c.h.b16 %v3678
    %v5233 = vunpack.c.l.b16 %v3679
    %v5234 = vunpack.c.h.b16 %v3679
    %v5235 = vunpack.c.l.b16 %v3680
    %v5236 = vunpack.c.h.b16 %v3680
    %v5237 = vunpack.c.l.b16 %v3681
    %v5238 = vunpack.c.h.b16 %v3681
    %v5239 = vunpack.c.l.b16 %v3682
    %v5240 = vunpack.c.h.b16 %v3682
    %v5241 = vunpack.c.l.b16 %v3683
    %v5242 = vunpack.c.h.b16 %v3683
    %v5243 = vunpack.c.l.b16 %v3684
    %v5244 = vunpack.c.h.b16 %v3684
    %v5245 = vunpack.c.l.b16 %v3685
    %v5246 = vunpack.c.h.b16 %v3685
    %v5247 = vunpack.c.l.b16 %v3686
    %v5248 = vunpack.c.h.b16 %v3686
    %v5249 = vunpack.c.l.b16 %v3687
    %v5250 = vunpack.c.h.b16 %v3687
    %v5251 = vunpack.c.l.b16 %v3688
    %v5252 = vunpack.c.h.b16 %v3688
    %v5253 = vunpack.c.l.b16 %v3689
    %v5254 = vunpack.c.h.b16 %v3689
    %v5255 = vunpack.c.l.b16 %v3690
    %v5256 = vunpack.c.h.b16 %v3690
    %v5257 = vunpack.c.l.b16 %v3691
    %v5258 = vunpack.c.h.b16 %v3691
    %v5259 = vunpack.c.l.b16 %v3692
    %v5260 = vunpack.c.h.b16 %v3692
    %v5261 = vunpack.c.l.b16 %v3693
    %v5262 = vunpack.c.h.b16 %v3693
    %v5263 = vunpack.c.l.b16 %v3694
    %v5264 = vunpack.c.h.b16 %v3694
    %v5265 = vunpack.c.l.b16 %v3695
    %v5266 = vunpack.c.h.b16 %v3695
    %v5267 = vunpack.c.l.b16 %v3696
    %v5268 = vunpack.c.h.b16 %v3696
    %v5269 = vunpack.c.l.b16 %v3697
    %v5270 = vunpack.c.h.b16 %v3697
    %v5271 = vunpack.c.l.b16 %v3698
    %v5272 = vunpack.c.h.b16 %v3698
    %v5273 = vunpack.c.l.b16 %v3699
    %v5274 = vunpack.c.h.b16 %v3699
    %v5275 = vunpack.c.l.b16 %v3700
    %v5276 = vunpack.c.h.b16 %v3700
    %v5277 = vunpack.c.l.b16 %v3701
    %v5278 = vunpack.c.h.b16 %v3701
    %v5279 = vunpack.c.l.b16 %v3702
    %v5280 = vunpack.c.h.b16 %v3702
    %v5281 = vunpack.c.l.b16 %v3703
    %v5282 = vunpack.c.h.b16 %v3703
    %v5283 = vunpack.c.l.b16 %v3704
    %v5284 = vunpack.c.h.b16 %v3704
    %v5285 = vunpack.c.l.b16 %v3705
    %v5286 = vunpack.c.h.b16 %v3705
    %v5287 = vunpack.c.l.b16 %v3706
    %v5288 = vunpack.c.h.b16 %v3706
    %v5289 = vunpack.c.l.b16 %v3707
    %v5290 = vunpack.c.h.b16 %v3707
    %v5291 = vunpack.c.l.b16 %v3708
    %v5292 = vunpack.c.h.b16 %v3708
    %v5293 = vunpack.c.l.b16 %v3709
    %v5294 = vunpack.c.h.b16 %v3709
    %v5295 = vunpack.c.l.b16 %v3710
    %v5296 = vunpack.c.h.b16 %v3710
    %v5297 = vunpack.c.l.b16 %v3711
    %v5298 = vunpack.c.h.b16 %v3711
    %v5299 = vunpack.c.l.b16 %v3712
    %v5300 = vunpack.c.h.b16 %v3712
    %v5301 = vunpack.c.l.b16 %v3713
    %v5302 = vunpack.c.h.b16 %v3713
    %v5303 = vunpack.c.l.b16 %v3714
    %v5304 = vunpack.c.h.b16 %v3714
    %v5305 = vunpack.c.l.b16 %v3715
    %v5306 = vunpack.c.h.b16 %v3715
    %v5307 = vunpack.c.l.b16 %v3716
    %v5308 = vunpack.c.h.b16 %v3716
    %v5309 = vunpack.c.l.b16 %v3717
    %v5310 = vunpack.c.h.b16 %v3717
    %v5311 = vunpack.c.l.b16 %v3718
    %v5312 = vunpack.c.h.b16 %v3718
    %v5313 = vunpack.c.l.b16 %v3719
    %v5314 = vunpack.c.h.b16 %v3719
    %v5315 = vunpack.c.l.b16 %v3720
    %v5316 = vunpack.c.h.b16 %v3720
    %v5317 = vunpack.c.l.b16 %v3721
    %v5318 = vunpack.c.h.b16 %v3721
    %v5319 = vunpack.c.l.b16 %v3722
    %v5320 = vunpack.c.h.b16 %v3722
    %v5321 = vunpack.c.l.b16 %v3723
    %v5322 = vunpack.c.h.b16 %v3723
    %v5323 = vunpack.c.l.b16 %v3724
    %v5324 = vunpack.c.h.b16 %v3724
    %v5325 = vunpack.c.l.b16 %v3725
    %v5326 = vunpack.c.h.b16 %v3725
    %v5327 = vunpack.c.l.b16 %v3726
    %v5328 = vunpack.c.h.b16 %v3726
    %v5329 = vunpack.c.l.b16 %v3727
    %v5330 = vunpack.c.h.b16 %v3727
    %v5331 = vunpack.c.l.b16 %v3728
    %v5332 = vunpack.c.h.b16 %v3728
    %v5333 = vunpack.c.l.b16 %v3729
    %v5334 = vunpack.c.h.b16 %v3729
    %v5335 = vunpack.c.l.b16 %v3730
    %v5336 = vunpack.c.h.b16 %v3730
    %v5337 = vpack.c.b16 %v4321, %v4313
    %v5338 = vpack.c.b16 %v4322, %v4314
    %v5339 = vpack.c.b16 %v4323, %v4315
    %v5340 = vpack.c.b16 %v4324, %v4316
    %v5341 = vpack.c.b16 %v4325, %v4317
    %v5342 = vpack.c.b16 %v4326, %v4318
    %v5343 = vpack.c.b16 %v4327, %v4319
    %v5344 = vpack.c.b16 %v4328, %v4320
    %v5345 = vpack.c.b16 %v4337, %v4329
    %v5346 = vpack.c.b16 %v4338, %v4330
    %v5347 = vpack.c.b16 %v4339, %v4331
    %v5348 = vpack.c.b16 %v4340, %v4332
    %v5349 = vpack.c.b16 %v4341, %v4333
    %v5350 = vpack.c.b16 %v4342, %v4334
    %v5351 = vpack.c.b16 %v4343, %v4335
    %v5352 = vpack.c.b16 %v4344, %v4336
    %v5353 = vpack.c.b16 %v4353, %v4345
    %v5354 = vpack.c.b16 %v4354, %v4346
    %v5355 = vpack.c.b16 %v4355, %v4347
    %v5356 = vpack.c.b16 %v4356, %v4348
    %v5357 = vpack.c.b16 %v4357, %v4349
    %v5358 = vpack.c.b16 %v4358, %v4350
    %v5359 = vpack.c.b16 %v4359, %v4351
    %v5360 = vpack.c.b16 %v4360, %v4352
    %v5361 = vpack.c.b16 %v4369, %v4361
    %v5362 = vpack.c.b16 %v4370, %v4362
    %v5363 = vpack.c.b16 %v4371, %v4363
    %v5364 = vpack.c.b16 %v4372, %v4364
    %v5365 = vpack.c.b16 %v4373, %v4365
    %v5366 = vpack.c.b16 %v4374, %v4366
    %v5367 = vpack.c.b16 %v4375, %v4367
    %v5368 = vpack.c.b16 %v4376, %v4368
    %v5369 = vpack.c.b16 %v4385, %v4377
    %v5370 = vpack.c.b16 %v4386, %v4378
    %v5371 = vpack.c.b16 %v4387, %v4379
    %v5372 = vpack.c.b16 %v4388, %v4380
    %v5373 = vpack.c.b16 %v4389, %v4381
    %v5374 = vpack.c.b16 %v4390, %v4382
    %v5375 = vpack.c.b16 %v4391, %v4383
    %v5376 = vpack.c.b16 %v4392, %v4384
    %v5377 = vpack.c.b16 %v4401, %v4393
    %v5378 = vpack.c.b16 %v4402, %v4394
    %v5379 = vpack.c.b16 %v4403, %v4395
    %v5380 = vpack.c.b16 %v4404, %v4396
    %v5381 = vpack.c.b16 %v4405, %v4397
    %v5382 = vpack.c.b16 %v4406, %v4398
    %v5383 = vpack.c.b16 %v4407, %v4399
    %v5384 = vpack.c.b16 %v4408, %v4400
    %v5385 = vpack.c.b16 %v4417, %v4409
    %v5386 = vpack.c.b16 %v4418, %v4410
    %v5387 = vpack.c.b16 %v4419, %v4411
    %v5388 = vpack.c.b16 %v4420, %v4412
    %v5389 = vpack.c.b16 %v4421, %v4413
    %v5390 = vpack.c.b16 %v4422, %v4414
    %v5391 = vpack.c.b16 %v4423, %v4415
    %v5392 = vpack.c.b16 %v4424, %v4416
    %v5393 = vpack.c.b16 %v4433, %v4425
    %v5394 = vpack.c.b16 %v4434, %v4426
    %v5395 = vpack.c.b16 %v4435, %v4427
    %v5396 = vpack.c.b16 %v4436, %v4428
    %v5397 = vpack.c.b16 %v4437, %v4429
    %v5398 = vpack.c.b16 %v4438, %v4430
    %v5399 = vpack.c.b16 %v4439, %v4431
    %v5400 = vpack.c.b16 %v4440, %v4432
    %v5401 = vpack.c.b16 %v4449, %v4441
    %v5402 = vpack.c.b16 %v4450, %v4442
    %v5403 = vpack.c.b16 %v4451, %v4443
    %v5404 = vpack.c.b16 %v4452, %v4444
    %v5405 = vpack.c.b16 %v4453, %v4445
    %v5406 = vpack.c.b16 %v4454, %v4446
    %v5407 = vpack.c.b16 %v4455, %v4447
    %v5408 = vpack.c.b16 %v4456, %v4448
    %v5409 = vpack.c.b16 %v4465, %v4457
    %v5410 = vpack.c.b16 %v4466, %v4458
    %v5411 = vpack.c.b16 %v4467, %v4459
    %v5412 = vpack.c.b16 %v4468, %v4460
    %v5413 = vpack.c.b16 %v4469, %v4461
    %v5414 = vpack.c.b16 %v4470, %v4462
    %v5415 = vpack.c.b16 %v4471, %v4463
    %v5416 = vpack.c.b16 %v4472, %v4464
    %v5417 = vpack.c.b16 %v4481, %v4473
    %v5418 = vpack.c.b16 %v4482, %v4474
    %v5419 = vpack.c.b16 %v4483, %v4475
    %v5420 = vpack.c.b16 %v4484, %v4476
    %v5421 = vpack.c.b16 %v4485, %v4477
    %v5422 = vpack.c.b16 %v4486, %v4478
    %v5423 = vpack.c.b16 %v4487, %v4479
    %v5424 = vpack.c.b16 %v4488, %v4480
    %v5425 = vpack.c.b16 %v4497, %v4489
    %v5426 = vpack.c.b16 %v4498, %v4490
    %v5427 = vpack.c.b16 %v4499, %v4491
    %v5428 = vpack.c.b16 %v4500, %v4492
    %v5429 = vpack.c.b16 %v4501, %v4493
    %v5430 = vpack.c.b16 %v4502, %v4494
    %v5431 = vpack.c.b16 %v4503, %v4495
    %v5432 = vpack.c.b16 %v4504, %v4496
    %v5433 = vpack.c.b16 %v4513, %v4505
    %v5434 = vpack.c.b16 %v4514, %v4506
    %v5435 = vpack.c.b16 %v4515, %v4507
    %v5436 = vpack.c.b16 %v4516, %v4508
    %v5437 = vpack.c.b16 %v4517, %v4509
    %v5438 = vpack.c.b16 %v4518, %v4510
    %v5439 = vpack.c.b16 %v4519, %v4511
    %v5440 = vpack.c.b16 %v4520, %v4512
    %v5441 = vpack.c.b16 %v4529, %v4521
    %v5442 = vpack.c.b16 %v4530, %v4522
    %v5443 = vpack.c.b16 %v4531, %v4523
    %v5444 = vpack.c.b16 %v4532, %v4524
    %v5445 = vpack.c.b16 %v4533, %v4525
    %v5446 = vpack.c.b16 %v4534, %v4526
    %v5447 = vpack.c.b16 %v4535, %v4527
    %v5448 = vpack.c.b16 %v4536, %v4528
    %v5449 = vpack.c.b16 %v4545, %v4537
    %v5450 = vpack.c.b16 %v4546, %v4538
    %v5451 = vpack.c.b16 %v4547, %v4539
    %v5452 = vpack.c.b16 %v4548, %v4540
    %v5453 = vpack.c.b16 %v4549, %v4541
    %v5454 = vpack.c.b16 %v4550, %v4542
    %v5455 = vpack.c.b16 %v4551, %v4543
    %v5456 = vpack.c.b16 %v4552, %v4544
    %v5457 = vpack.c.b16 %v4561, %v4553
    %v5458 = vpack.c.b16 %v4562, %v4554
    %v5459 = vpack.c.b16 %v4563, %v4555
    %v5460 = vpack.c.b16 %v4564, %v4556
    %v5461 = vpack.c.b16 %v4565, %v4557
    %v5462 = vpack.c.b16 %v4566, %v4558
    %v5463 = vpack.c.b16 %v4567, %v4559
    %v5464 = vpack.c.b16 %v4568, %v4560
    %v5465 = vpack.c.b16 %v4577, %v4569
    %v5466 = vpack.c.b16 %v4578, %v4570
    %v5467 = vpack.c.b16 %v4579, %v4571
    %v5468 = vpack.c.b16 %v4580, %v4572
    %v5469 = vpack.c.b16 %v4581, %v4573
    %v5470 = vpack.c.b16 %v4582, %v4574
    %v5471 = vpack.c.b16 %v4583, %v4575
    %v5472 = vpack.c.b16 %v4584, %v4576
    %v5473 = vpack.c.b16 %v4593, %v4585
    %v5474 = vpack.c.b16 %v4594, %v4586
    %v5475 = vpack.c.b16 %v4595, %v4587
    %v5476 = vpack.c.b16 %v4596, %v4588
    %v5477 = vpack.c.b16 %v4597, %v4589
    %v5478 = vpack.c.b16 %v4598, %v4590
    %v5479 = vpack.c.b16 %v4599, %v4591
    %v5480 = vpack.c.b16 %v4600, %v4592
    %v5481 = vpack.c.b16 %v4609, %v4601
    %v5482 = vpack.c.b16 %v4610, %v4602
    %v5483 = vpack.c.b16 %v4611, %v4603
    %v5484 = vpack.c.b16 %v4612, %v4604
    %v5485 = vpack.c.b16 %v4613, %v4605
    %v5486 = vpack.c.b16 %v4614, %v4606
    %v5487 = vpack.c.b16 %v4615, %v4607
    %v5488 = vpack.c.b16 %v4616, %v4608
    %v5489 = vpack.c.b16 %v4625, %v4617
    %v5490 = vpack.c.b16 %v4626, %v4618
    %v5491 = vpack.c.b16 %v4627, %v4619
    %v5492 = vpack.c.b16 %v4628, %v4620
    %v5493 = vpack.c.b16 %v4629, %v4621
    %v5494 = vpack.c.b16 %v4630, %v4622
    %v5495 = vpack.c.b16 %v4631, %v4623
    %v5496 = vpack.c.b16 %v4632, %v4624
    %v5497 = vpack.c.b16 %v4641, %v4633
    %v5498 = vpack.c.b16 %v4642, %v4634
    %v5499 = vpack.c.b16 %v4643, %v4635
    %v5500 = vpack.c.b16 %v4644, %v4636
    %v5501 = vpack.c.b16 %v4645, %v4637
    %v5502 = vpack.c.b16 %v4646, %v4638
    %v5503 = vpack.c.b16 %v4647, %v4639
    %v5504 = vpack.c.b16 %v4648, %v4640
    %v5505 = vpack.c.b16 %v4657, %v4649
    %v5506 = vpack.c.b16 %v4658, %v4650
    %v5507 = vpack.c.b16 %v4659, %v4651
    %v5508 = vpack.c.b16 %v4660, %v4652
    %v5509 = vpack.c.b16 %v4661, %v4653
    %v5510 = vpack.c.b16 %v4662, %v4654
    %v5511 = vpack.c.b16 %v4663, %v4655
    %v5512 = vpack.c.b16 %v4664, %v4656
    %v5513 = vpack.c.b16 %v4673, %v4665
    %v5514 = vpack.c.b16 %v4674, %v4666
    %v5515 = vpack.c.b16 %v4675, %v4667
    %v5516 = vpack.c.b16 %v4676, %v4668
    %v5517 = vpack.c.b16 %v4677, %v4669
    %v5518 = vpack.c.b16 %v4678, %v4670
    %v5519 = vpack.c.b16 %v4679, %v4671
    %v5520 = vpack.c.b16 %v4680, %v4672
    %v5521 = vpack.c.b16 %v4689, %v4681
    %v5522 = vpack.c.b16 %v4690, %v4682
    %v5523 = vpack.c.b16 %v4691, %v4683
    %v5524 = vpack.c.b16 %v4692, %v4684
    %v5525 = vpack.c.b16 %v4693, %v4685
    %v5526 = vpack.c.b16 %v4694, %v4686
    %v5527 = vpack.c.b16 %v4695, %v4687
    %v5528 = vpack.c.b16 %v4696, %v4688
    %v5529 = vpack.c.b16 %v4705, %v4697
    %v5530 = vpack.c.b16 %v4706, %v4698
    %v5531 = vpack.c.b16 %v4707, %v4699
    %v5532 = vpack.c.b16 %v4708, %v4700
    %v5533 = vpack.c.b16 %v4709, %v4701
    %v5534 = vpack.c.b16 %v4710, %v4702
    %v5535 = vpack.c.b16 %v4711, %v4703
    %v5536 = vpack.c.b16 %v4712, %v4704
    %v5537 = vpack.c.b16 %v4721, %v4713
    %v5538 = vpack.c.b16 %v4722, %v4714
    %v5539 = vpack.c.b16 %v4723, %v4715
    %v5540 = vpack.c.b16 %v4724, %v4716
    %v5541 = vpack.c.b16 %v4725, %v4717
    %v5542 = vpack.c.b16 %v4726, %v4718
    %v5543 = vpack.c.b16 %v4727, %v4719
    %v5544 = vpack.c.b16 %v4728, %v4720
    %v5545 = vpack.c.b16 %v4737, %v4729
    %v5546 = vpack.c.b16 %v4738, %v4730
    %v5547 = vpack.c.b16 %v4739, %v4731
    %v5548 = vpack.c.b16 %v4740, %v4732
    %v5549 = vpack.c.b16 %v4741, %v4733
    %v5550 = vpack.c.b16 %v4742, %v4734
    %v5551 = vpack.c.b16 %v4743, %v4735
    %v5552 = vpack.c.b16 %v4744, %v4736
    %v5553 = vpack.c.b16 %v4753, %v4745
    %v5554 = vpack.c.b16 %v4754, %v4746
    %v5555 = vpack.c.b16 %v4755, %v4747
    %v5556 = vpack.c.b16 %v4756, %v4748
    %v5557 = vpack.c.b16 %v4757, %v4749
    %v5558 = vpack.c.b16 %v4758, %v4750
    %v5559 = vpack.c.b16 %v4759, %v4751
    %v5560 = vpack.c.b16 %v4760, %v4752
    %v5561 = vpack.c.b16 %v4769, %v4761
    %v5562 = vpack.c.b16 %v4770, %v4762
    %v5563 = vpack.c.b16 %v4771, %v4763
    %v5564 = vpack.c.b16 %v4772, %v4764
    %v5565 = vpack.c.b16 %v4773, %v4765
    %v5566 = vpack.c.b16 %v4774, %v4766
    %v5567 = vpack.c.b16 %v4775, %v4767
    %v5568 = vpack.c.b16 %v4776, %v4768
    %v5569 = vpack.c.b16 %v4785, %v4777
    %v5570 = vpack.c.b16 %v4786, %v4778
    %v5571 = vpack.c.b16 %v4787, %v4779
    %v5572 = vpack.c.b16 %v4788, %v4780
    %v5573 = vpack.c.b16 %v4789, %v4781
    %v5574 = vpack.c.b16 %v4790, %v4782
    %v5575 = vpack.c.b16 %v4791, %v4783
    %v5576 = vpack.c.b16 %v4792, %v4784
    %v5577 = vpack.c.b16 %v4801, %v4793
    %v5578 = vpack.c.b16 %v4802, %v4794
    %v5579 = vpack.c.b16 %v4803, %v4795
    %v5580 = vpack.c.b16 %v4804, %v4796
    %v5581 = vpack.c.b16 %v4805, %v4797
    %v5582 = vpack.c.b16 %v4806, %v4798
    %v5583 = vpack.c.b16 %v4807, %v4799
    %v5584 = vpack.c.b16 %v4808, %v4800
    %v5585 = vpack.c.b16 %v4817, %v4809
    %v5586 = vpack.c.b16 %v4818, %v4810
    %v5587 = vpack.c.b16 %v4819, %v4811
    %v5588 = vpack.c.b16 %v4820, %v4812
    %v5589 = vpack.c.b16 %v4821, %v4813
    %v5590 = vpack.c.b16 %v4822, %v4814
    %v5591 = vpack.c.b16 %v4823, %v4815
    %v5592 = vpack.c.b16 %v4824, %v4816
    %v5593 = vpack.c.b16 %v4833, %v4825
    %v5594 = vpack.c.b16 %v4834, %v4826
    %v5595 = vpack.c.b16 %v4835, %v4827
    %v5596 = vpack.c.b16 %v4836, %v4828
    %v5597 = vpack.c.b16 %v4837, %v4829
    %v5598 = vpack.c.b16 %v4838, %v4830
    %v5599 = vpack.c.b16 %v4839, %v4831
    %v5600 = vpack.c.b16 %v4840, %v4832
    %v5601 = vpack.c.b16 %v4849, %v4841
    %v5602 = vpack.c.b16 %v4850, %v4842
    %v5603 = vpack.c.b16 %v4851, %v4843
    %v5604 = vpack.c.b16 %v4852, %v4844
    %v5605 = vpack.c.b16 %v4853, %v4845
    %v5606 = vpack.c.b16 %v4854, %v4846
    %v5607 = vpack.c.b16 %v4855, %v4847
    %v5608 = vpack.c.b16 %v4856, %v4848
    %v5609 = vpack.c.b16 %v4865, %v4857
    %v5610 = vpack.c.b16 %v4866, %v4858
    %v5611 = vpack.c.b16 %v4867, %v4859
    %v5612 = vpack.c.b16 %v4868, %v4860
    %v5613 = vpack.c.b16 %v4869, %v4861
    %v5614 = vpack.c.b16 %v4870, %v4862
    %v5615 = vpack.c.b16 %v4871, %v4863
    %v5616 = vpack.c.b16 %v4872, %v4864
    %v5617 = vpack.c.b16 %v4881, %v4873
    %v5618 = vpack.c.b16 %v4882, %v4874
    %v5619 = vpack.c.b16 %v4883, %v4875
    %v5620 = vpack.c.b16 %v4884, %v4876
    %v5621 = vpack.c.b16 %v4885, %v4877
    %v5622 = vpack.c.b16 %v4886, %v4878
    %v5623 = vpack.c.b16 %v4887, %v4879
    %v5624 = vpack.c.b16 %v4888, %v4880
    %v5625 = vpack.c.b16 %v4897, %v4889
    %v5626 = vpack.c.b16 %v4898, %v4890
    %v5627 = vpack.c.b16 %v4899, %v4891
    %v5628 = vpack.c.b16 %v4900, %v4892
    %v5629 = vpack.c.b16 %v4901, %v4893
    %v5630 = vpack.c.b16 %v4902, %v4894
    %v5631 = vpack.c.b16 %v4903, %v4895
    %v5632 = vpack.c.b16 %v4904, %v4896
    %v5633 = vpack.c.b16 %v4913, %v4905
    %v5634 = vpack.c.b16 %v4914, %v4906
    %v5635 = vpack.c.b16 %v4915, %v4907
    %v5636 = vpack.c.b16 %v4916, %v4908
    %v5637 = vpack.c.b16 %v4917, %v4909
    %v5638 = vpack.c.b16 %v4918, %v4910
    %v5639 = vpack.c.b16 %v4919, %v4911
    %v5640 = vpack.c.b16 %v4920, %v4912
    %v5641 = vpack.c.b16 %v4929, %v4921
    %v5642 = vpack.c.b16 %v4930, %v4922
    %v5643 = vpack.c.b16 %v4931, %v4923
    %v5644 = vpack.c.b16 %v4932, %v4924
    %v5645 = vpack.c.b16 %v4933, %v4925
    %v5646 = vpack.c.b16 %v4934, %v4926
    %v5647 = vpack.c.b16 %v4935, %v4927
    %v5648 = vpack.c.b16 %v4936, %v4928
    %v5649 = vpack.c.b16 %v4945, %v4937
    %v5650 = vpack.c.b16 %v4946, %v4938
    %v5651 = vpack.c.b16 %v4947, %v4939
    %v5652 = vpack.c.b16 %v4948, %v4940
    %v5653 = vpack.c.b16 %v4949, %v4941
    %v5654 = vpack.c.b16 %v4950, %v4942
    %v5655 = vpack.c.b16 %v4951, %v4943
    %v5656 = vpack.c.b16 %v4952, %v4944
    %v5657 = vpack.c.b16 %v4961, %v4953
    %v5658 = vpack.c.b16 %v4962, %v4954
    %v5659 = vpack.c.b16 %v4963, %v4955
    %v5660 = vpack.c.b16 %v4964, %v4956
    %v5661 = vpack.c.b16 %v4965, %v4957
    %v5662 = vpack.c.b16 %v4966, %v4958
    %v5663 = vpack.c.b16 %v4967, %v4959
    %v5664 = vpack.c.b16 %v4968, %v4960
    %v5665 = vpack.c.b16 %v4977, %v4969
    %v5666 = vpack.c.b16 %v4978, %v4970
    %v5667 = vpack.c.b16 %v4979, %v4971
    %v5668 = vpack.c.b16 %v4980, %v4972
    %v5669 = vpack.c.b16 %v4981, %v4973
    %v5670 = vpack.c.b16 %v4982, %v4974
    %v5671 = vpack.c.b16 %v4983, %v4975
    %v5672 = vpack.c.b16 %v4984, %v4976
    %v5673 = vpack.c.b16 %v4993, %v4985
    %v5674 = vpack.c.b16 %v4994, %v4986
    %v5675 = vpack.c.b16 %v4995, %v4987
    %v5676 = vpack.c.b16 %v4996, %v4988
    %v5677 = vpack.c.b16 %v4997, %v4989
    %v5678 = vpack.c.b16 %v4998, %v4990
    %v5679 = vpack.c.b16 %v4999, %v4991
    %v5680 = vpack.c.b16 %v5000, %v4992
    %v5681 = vpack.c.b16 %v5009, %v5001
    %v5682 = vpack.c.b16 %v5010, %v5002
    %v5683 = vpack.c.b16 %v5011, %v5003
    %v5684 = vpack.c.b16 %v5012, %v5004
    %v5685 = vpack.c.b16 %v5013, %v5005
    %v5686 = vpack.c.b16 %v5014, %v5006
    %v5687 = vpack.c.b16 %v5015, %v5007
    %v5688 = vpack.c.b16 %v5016, %v5008
    %v5689 = vpack.c.b16 %v5025, %v5017
    %v5690 = vpack.c.b16 %v5026, %v5018
    %v5691 = vpack.c.b16 %v5027, %v5019
    %v5692 = vpack.c.b16 %v5028, %v5020
    %v5693 = vpack.c.b16 %v5029, %v5021
    %v5694 = vpack.c.b16 %v5030, %v5022
    %v5695 = vpack.c.b16 %v5031, %v5023
    %v5696 = vpack.c.b16 %v5032, %v5024
    %v5697 = vpack.c.b16 %v5041, %v5033
    %v5698 = vpack.c.b16 %v5042, %v5034
    %v5699 = vpack.c.b16 %v5043, %v5035
    %v5700 = vpack.c.b16 %v5044, %v5036
    %v5701 = vpack.c.b16 %v5045, %v5037
    %v5702 = vpack.c.b16 %v5046, %v5038
    %v5703 = vpack.c.b16 %v5047, %v5039
    %v5704 = vpack.c.b16 %v5048, %v5040
    %v5705 = vpack.c.b16 %v5057, %v5049
    %v5706 = vpack.c.b16 %v5058, %v5050
    %v5707 = vpack.c.b16 %v5059, %v5051
    %v5708 = vpack.c.b16 %v5060, %v5052
    %v5709 = vpack.c.b16 %v5061, %v5053
    %v5710 = vpack.c.b16 %v5062, %v5054
    %v5711 = vpack.c.b16 %v5063, %v5055
    %v5712 = vpack.c.b16 %v5064, %v5056
    %v5713 = vpack.c.b16 %v5073, %v5065
    %v5714 = vpack.c.b16 %v5074, %v5066
    %v5715 = vpack.c.b16 %v5075, %v5067
    %v5716 = vpack.c.b16 %v5076, %v5068
    %v5717 = vpack.c.b16 %v5077, %v5069
    %v5718 = vpack.c.b16 %v5078, %v5070
    %v5719 = vpack.c.b16 %v5079, %v5071
    %v5720 = vpack.c.b16 %v5080, %v5072
    %v5721 = vpack.c.b16 %v5089, %v5081
    %v5722 = vpack.c.b16 %v5090, %v5082
    %v5723 = vpack.c.b16 %v5091, %v5083
    %v5724 = vpack.c.b16 %v5092, %v5084
    %v5725 = vpack.c.b16 %v5093, %v5085
    %v5726 = vpack.c.b16 %v5094, %v5086
    %v5727 = vpack.c.b16 %v5095, %v5087
    %v5728 = vpack.c.b16 %v5096, %v5088
    %v5729 = vpack.c.b16 %v5105, %v5097
    %v5730 = vpack.c.b16 %v5106, %v5098
    %v5731 = vpack.c.b16 %v5107, %v5099
    %v5732 = vpack.c.b16 %v5108, %v5100
    %v5733 = vpack.c.b16 %v5109, %v5101
    %v5734 = vpack.c.b16 %v5110, %v5102
    %v5735 = vpack.c.b16 %v5111, %v5103
    %v5736 = vpack.c.b16 %v5112, %v5104
    %v5737 = vpack.c.b16 %v5121, %v5113
    %v5738 = vpack.c.b16 %v5122, %v5114
    %v5739 = vpack.c.b16 %v5123, %v5115
    %v5740 = vpack.c.b16 %v5124, %v5116
    %v5741 = vpack.c.b16 %v5125, %v5117
    %v5742 = vpack.c.b16 %v5126, %v5118
    %v5743 = vpack.c.b16 %v5127, %v5119
    %v5744 = vpack.c.b16 %v5128, %v5120
    %v5745 = vpack.c.b16 %v5137, %v5129
    %v5746 = vpack.c.b16 %v5138, %v5130
    %v5747 = vpack.c.b16 %v5139, %v5131
    %v5748 = vpack.c.b16 %v5140, %v5132
    %v5749 = vpack.c.b16 %v5141, %v5133
    %v5750 = vpack.c.b16 %v5142, %v5134
    %v5751 = vpack.c.b16 %v5143, %v5135
    %v5752 = vpack.c.b16 %v5144, %v5136
    %v5753 = vpack.c.b16 %v5153, %v5145
    %v5754 = vpack.c.b16 %v5154, %v5146
    %v5755 = vpack.c.b16 %v5155, %v5147
    %v5756 = vpack.c.b16 %v5156, %v5148
    %v5757 = vpack.c.b16 %v5157, %v5149
    %v5758 = vpack.c.b16 %v5158, %v5150
    %v5759 = vpack.c.b16 %v5159, %v5151
    %v5760 = vpack.c.b16 %v5160, %v5152
    %v5761 = vpack.c.b16 %v5169, %v5161
    %v5762 = vpack.c.b16 %v5170, %v5162
    %v5763 = vpack.c.b16 %v5171, %v5163
    %v5764 = vpack.c.b16 %v5172, %v5164
    %v5765 = vpack.c.b16 %v5173, %v5165
    %v5766 = vpack.c.b16 %v5174, %v5166
    %v5767 = vpack.c.b16 %v5175, %v5167
    %v5768 = vpack.c.b16 %v5176, %v5168
    %v5769 = vpack.c.b16 %v5185, %v5177
    %v5770 = vpack.c.b16 %v5186, %v5178
    %v5771 = vpack.c.b16 %v5187, %v5179
    %v5772 = vpack.c.b16 %v5188, %v5180
    %v5773 = vpack.c.b16 %v5189, %v5181
    %v5774 = vpack.c.b16 %v5190, %v5182
    %v5775 = vpack.c.b16 %v5191, %v5183
    %v5776 = vpack.c.b16 %v5192, %v5184
    %v5777 = vpack.c.b16 %v5201, %v5193
    %v5778 = vpack.c.b16 %v5202, %v5194
    %v5779 = vpack.c.b16 %v5203, %v5195
    %v5780 = vpack.c.b16 %v5204, %v5196
    %v5781 = vpack.c.b16 %v5205, %v5197
    %v5782 = vpack.c.b16 %v5206, %v5198
    %v5783 = vpack.c.b16 %v5207, %v5199
    %v5784 = vpack.c.b16 %v5208, %v5200
    %v5785 = vpack.c.b16 %v5217, %v5209
    %v5786 = vpack.c.b16 %v5218, %v5210
    %v5787 = vpack.c.b16 %v5219, %v5211
    %v5788 = vpack.c.b16 %v5220, %v5212
    %v5789 = vpack.c.b16 %v5221, %v5213
    %v5790 = vpack.c.b16 %v5222, %v5214
    %v5791 = vpack.c.b16 %v5223, %v5215
    %v5792 = vpack.c.b16 %v5224, %v5216
    %v5793 = vpack.c.b16 %v5233, %v5225
    %v5794 = vpack.c.b16 %v5234, %v5226
    %v5795 = vpack.c.b16 %v5235, %v5227
    %v5796 = vpack.c.b16 %v5236, %v5228
    %v5797 = vpack.c.b16 %v5237, %v5229
    %v5798 = vpack.c.b16 %v5238, %v5230
    %v5799 = vpack.c.b16 %v5239, %v5231
    %v5800 = vpack.c.b16 %v5240, %v5232
    %v5801 = vpack.c.b16 %v5249, %v5241
    %v5802 = vpack.c.b16 %v5250, %v5242
    %v5803 = vpack.c.b16 %v5251, %v5243
    %v5804 = vpack.c.b16 %v5252, %v5244
    %v5805 = vpack.c.b16 %v5253, %v5245
    %v5806 = vpack.c.b16 %v5254, %v5246
    %v5807 = vpack.c.b16 %v5255, %v5247
    %v5808 = vpack.c.b16 %v5256, %v5248
    %v5809 = vpack.c.b16 %v5265, %v5257
    %v5810 = vpack.c.b16 %v5266, %v5258
    %v5811 = vpack.c.b16 %v5267, %v5259
    %v5812 = vpack.c.b16 %v5268, %v5260
    %v5813 = vpack.c.b16 %v5269, %v5261
    %v5814 = vpack.c.b16 %v5270, %v5262
    %v5815 = vpack.c.b16 %v5271, %v5263
    %v5816 = vpack.c.b16 %v5272, %v5264
    %v5817 = vpack.c.b16 %v5281, %v5273
    %v5818 = vpack.c.b16 %v5282, %v5274
    %v5819 = vpack.c.b16 %v5283, %v5275
    %v5820 = vpack.c.b16 %v5284, %v5276
    %v5821 = vpack.c.b16 %v5285, %v5277
    %v5822 = vpack.c.b16 %v5286, %v5278
    %v5823 = vpack.c.b16 %v5287, %v5279
    %v5824 = vpack.c.b16 %v5288, %v5280
    %v5825 = vpack.c.b16 %v5297, %v5289
    %v5826 = vpack.c.b16 %v5298, %v5290
    %v5827 = vpack.c.b16 %v5299, %v5291
    %v5828 = vpack.c.b16 %v5300, %v5292
    %v5829 = vpack.c.b16 %v5301, %v5293
    %v5830 = vpack.c.b16 %v5302, %v5294
    %v5831 = vpack.c.b16 %v5303, %v5295
    %v5832 = vpack.c.b16 %v5304, %v5296
    %v5833 = vpack.c.b16 %v5313, %v5305
    %v5834 = vpack.c.b16 %v5314, %v5306
    %v5835 = vpack.c.b16 %v5315, %v5307
    %v5836 = vpack.c.b16 %v5316, %v5308
    %v5837 = vpack.c.b16 %v5317, %v5309
    %v5838 = vpack.c.b16 %v5318, %v5310
    %v5839 = vpack.c.b16 %v5319, %v5311
    %v5840 = vpack.c.b16 %v5320, %v5312
    %v5841 = vpack.c.b16 %v5329, %v5321
    %v5842 = vpack.c.b16 %v5330, %v5322
    %v5843 = vpack.c.b16 %v5331, %v5323
    %v5844 = vpack.c.b16 %v5332, %v5324
    %v5845 = vpack.c.b16 %v5333, %v5325
    %v5846 = vpack.c.b16 %v5334, %v5326
    %v5847 = vpack.c.b16 %v5335, %v5327
    %v5848 = vpack.c.b16 %v5336, %v5328
    %6361 = vmatprep.subr.bf16.mxu0 %v5394
    %6362 = vmatpush1.bf16.msra.mxu0 %v5393
    %6363 = vmatprep.subr.bf16.mxu0 %v5386
    %6364 = vmatpush1.bf16.msra.mxu0 %v5385
    %6365 = vmatprep.subr.bf16.mxu0 %v5378
    %6366 = vmatpush1.bf16.msra.mxu0 %v5377
    %6367 = vmatprep.subr.bf16.mxu0 %v5370
    %6368 = vmatpush1.bf16.msra.mxu0 %v5369
    %6369 = vmatprep.subr.bf16.mxu0 %v5362
    %6370 = vmatpush1.bf16.msra.mxu0 %v5361
    %6371 = vmatprep.subr.bf16.mxu0 %v5354
    %6372 = vmatpush1.bf16.msra.mxu0 %v5353
    %6373 = vmatprep.subr.bf16.mxu0 %v5346
    %6374 = vmatpush1.bf16.msra.mxu0 %v5345
    %6375 = vmatprep.subr.bf16.mxu0 %v5338
    %6376 = vmatpush1.bf16.msra.mxu0 %v5337
    %6377 = vmatprep.subr.bf16.mxu0 %v5458
    %6378 = vmatpush2.bf16.msra.mxu0 %v5457
    %6379 = vmatprep.subr.bf16.mxu0 %v5450
    %6380 = vmatpush2.bf16.msra.mxu0 %v5449
    %6381 = vmatprep.subr.bf16.mxu0 %v5442
    %6382 = vmatpush2.bf16.msra.mxu0 %v5441
    %6383 = vmatprep.subr.bf16.mxu0 %v5434
    %6384 = vmatpush2.bf16.msra.mxu0 %v5433
    %6385 = vmatprep.subr.bf16.mxu0 %v5426
    %6386 = vmatpush2.bf16.msra.mxu0 %v5425
    %6387 = vmatprep.subr.bf16.mxu0 %v5418
    %6388 = vmatpush2.bf16.msra.mxu0 %v5417
    %6389 = vmatprep.subr.bf16.mxu0 %v5410
    %6390 = vmatpush2.bf16.msra.mxu0 %v5409
    %6391 = vmatprep.subr.bf16.mxu0 %v5402
    %6392 = vmatpush2.bf16.msra.mxu0 %v5401
    %6393 = vmatprep.mubr.bf16.mxu0 %v3786
    %6394 = vmatmul.mubr.bf16.gmra.mxu0 %v3785
    %v6395 = vpop.f32.mrf.mxu0
    %v6396 = vadd.f32 %v3736, %v6395
    %v6397 = vpop.f32.mrf.mxu0
    %v6398 = vadd.f32 %v3740, %v6397
    %v6399 = vpop.f32.mrf.mxu0
    %v6400 = vpop.f32.mrf.mxu0
    %6401 = vdwg.mxu0
    %6402 = vmatprep.subr.bf16.mxu0 %v5522
    %6403 = vmatpush1.bf16.msra.mxu0 %v5521
    %6404 = vmatprep.subr.bf16.mxu0 %v5514
    %6405 = vmatpush1.bf16.msra.mxu0 %v5513
    %6406 = vmatprep.subr.bf16.mxu0 %v5506
    %6407 = vmatpush1.bf16.msra.mxu0 %v5505
    %6408 = vmatprep.subr.bf16.mxu0 %v5498
    %6409 = vmatpush1.bf16.msra.mxu0 %v5497
    %6410 = vmatprep.subr.bf16.mxu0 %v5490
    %6411 = vmatpush1.bf16.msra.mxu0 %v5489
    %6412 = vmatprep.subr.bf16.mxu0 %v5482
    %6413 = vmatpush1.bf16.msra.mxu0 %v5481
    %6414 = vmatprep.subr.bf16.mxu0 %v5474
    %6415 = vmatpush1.bf16.msra.mxu0 %v5473
    %6416 = vmatprep.subr.bf16.mxu0 %v5466
    %6417 = vmatpush1.bf16.msra.mxu0 %v5465
    %6418 = vmatprep.subr.bf16.mxu0 %v5586
    %6419 = vmatpush2.bf16.msra.mxu0 %v5585
    %6420 = vmatprep.subr.bf16.mxu0 %v5578
    %6421 = vmatpush2.bf16.msra.mxu0 %v5577
    %6422 = vmatprep.subr.bf16.mxu0 %v5570
    %6423 = vmatpush2.bf16.msra.mxu0 %v5569
    %6424 = vmatprep.subr.bf16.mxu0 %v5562
    %6425 = vmatpush2.bf16.msra.mxu0 %v5561
    %6426 = vmatprep.subr.bf16.mxu0 %v5554
    %6427 = vmatpush2.bf16.msra.mxu0 %v5553
    %6428 = vmatprep.subr.bf16.mxu0 %v5546
    %6429 = vmatpush2.bf16.msra.mxu0 %v5545
    %6430 = vmatprep.subr.bf16.mxu0 %v5538
    %6431 = vmatpush2.bf16.msra.mxu0 %v5537
    %6432 = vmatprep.subr.bf16.mxu0 %v5530
    %6433 = vmatpush2.bf16.msra.mxu0 %v5529
    %6434 = vmatprep.mubr.bf16.mxu0 %v3788
    %6435 = vmatmul.mubr.bf16.gmra.mxu0 %v3787
    %v6436 = vpop.f32.mrf.mxu0
    %v6437 = vadd.f32 %v6396, %v6436
    %v6438 = vpop.f32.mrf.mxu0
    %v6439 = vadd.f32 %v6398, %v6438
    %v6440 = vpop.f32.mrf.mxu0
    %v6441 = vpop.f32.mrf.mxu0
    %6442 = vdwg.mxu0
    %6443 = vmatprep.subr.bf16.mxu0 %v5650
    %6444 = vmatpush1.bf16.msra.mxu0 %v5649
    %6445 = vmatprep.subr.bf16.mxu0 %v5642
    %6446 = vmatpush1.bf16.msra.mxu0 %v5641
    %6447 = vmatprep.subr.bf16.mxu0 %v5634
    %6448 = vmatpush1.bf16.msra.mxu0 %v5633
    %6449 = vmatprep.subr.bf16.mxu0 %v5626
    %6450 = vmatpush1.bf16.msra.mxu0 %v5625
    %6451 = vmatprep.subr.bf16.mxu0 %v5618
    %6452 = vmatpush1.bf16.msra.mxu0 %v5617
    %6453 = vmatprep.subr.bf16.mxu0 %v5610
    %6454 = vmatpush1.bf16.msra.mxu0 %v5609
    %6455 = vmatprep.subr.bf16.mxu0 %v5602
    %6456 = vmatpush1.bf16.msra.mxu0 %v5601
    %6457 = vmatprep.subr.bf16.mxu0 %v5594
    %6458 = vmatpush1.bf16.msra.mxu0 %v5593
    %6459 = vmatprep.subr.bf16.mxu0 %v5714
    %6460 = vmatpush2.bf16.msra.mxu0 %v5713
    %6461 = vmatprep.subr.bf16.mxu0 %v5706
    %6462 = vmatpush2.bf16.msra.mxu0 %v5705
    %6463 = vmatprep.subr.bf16.mxu0 %v5698
    %6464 = vmatpush2.bf16.msra.mxu0 %v5697
    %6465 = vmatprep.subr.bf16.mxu0 %v5690
    %6466 = vmatpush2.bf16.msra.mxu0 %v5689
    %6467 = vmatprep.subr.bf16.mxu0 %v5682
    %6468 = vmatpush2.bf16.msra.mxu0 %v5681
    %6469 = vmatprep.subr.bf16.mxu0 %v5674
    %6470 = vmatpush2.bf16.msra.mxu0 %v5673
    %6471 = vmatprep.subr.bf16.mxu0 %v5666
    %6472 = vmatpush2.bf16.msra.mxu0 %v5665
    %6473 = vmatprep.subr.bf16.mxu0 %v5658
    %6474 = vmatpush2.bf16.msra.mxu0 %v5657
    %6475 = vmatprep.mubr.bf16.mxu0 %v3790
    %6476 = vmatmul.mubr.bf16.gmra.mxu0 %v3789
    %v6477 = vpop.f32.mrf.mxu0
    %v6478 = vadd.f32 %v6437, %v6477
    %v6479 = vpop.f32.mrf.mxu0
    %v6480 = vadd.f32 %v6439, %v6479
    %v6481 = vpop.f32.mrf.mxu0
    %v6482 = vpop.f32.mrf.mxu0
    %6483 = vdwg.mxu0
    %6484 = vmatprep.subr.bf16.mxu0 %v5778
    %6485 = vmatpush1.bf16.msra.mxu0 %v5777
    %6486 = vmatprep.subr.bf16.mxu0 %v5770
    %6487 = vmatpush1.bf16.msra.mxu0 %v5769
    %6488 = vmatprep.subr.bf16.mxu0 %v5762
    %6489 = vmatpush1.bf16.msra.mxu0 %v5761
    %6490 = vmatprep.subr.bf16.mxu0 %v5754
    %6491 = vmatpush1.bf16.msra.mxu0 %v5753
    %6492 = vmatprep.subr.bf16.mxu0 %v5746
    %6493 = vmatpush1.bf16.msra.mxu0 %v5745
    %6494 = vmatprep.subr.bf16.mxu0 %v5738
    %6495 = vmatpush1.bf16.msra.mxu0 %v5737
    %6496 = vmatprep.subr.bf16.mxu0 %v5730
    %6497 = vmatpush1.bf16.msra.mxu0 %v5729
    %6498 = vmatprep.subr.bf16.mxu0 %v5722
    %6499 = vmatpush1.bf16.msra.mxu0 %v5721
    %6500 = vmatprep.subr.bf16.mxu0 %v5842
    %6501 = vmatpush2.bf16.msra.mxu0 %v5841
    %6502 = vmatprep.subr.bf16.mxu0 %v5834
    %6503 = vmatpush2.bf16.msra.mxu0 %v5833
    %6504 = vmatprep.subr.bf16.mxu0 %v5826
    %6505 = vmatpush2.bf16.msra.mxu0 %v5825
    %6506 = vmatprep.subr.bf16.mxu0 %v5818
    %6507 = vmatpush2.bf16.msra.mxu0 %v5817
    %6508 = vmatprep.subr.bf16.mxu0 %v5810
    %6509 = vmatpush2.bf16.msra.mxu0 %v5809
    %6510 = vmatprep.subr.bf16.mxu0 %v5802
    %6511 = vmatpush2.bf16.msra.mxu0 %v5801
    %6512 = vmatprep.subr.bf16.mxu0 %v5794
    %6513 = vmatpush2.bf16.msra.mxu0 %v5793
    %6514 = vmatprep.subr.bf16.mxu0 %v5786
    %6515 = vmatpush2.bf16.msra.mxu0 %v5785
    %6516 = vmatprep.mubr.bf16.mxu0 %v3792
    %6517 = vmatmul.mubr.bf16.gmra.mxu0 %v3791
    %v6518 = vpop.f32.mrf.mxu0
    %v6519 = vadd.f32 %v6478, %v6518
    %v6520 = vpop.f32.mrf.mxu0
    %v6521 = vadd.f32 %v6480, %v6520
    %v6522 = vpop.f32.mrf.mxu0
    %v6523 = vpop.f32.mrf.mxu0
    %6524 = vdwg.mxu0
    %6525 = vmatprep.subr.bf16.mxu0 %v5396
    %6526 = vmatpush1.bf16.msra.mxu0 %v5395
    %6527 = vmatprep.subr.bf16.mxu0 %v5388
    %6528 = vmatpush1.bf16.msra.mxu0 %v5387
    %6529 = vmatprep.subr.bf16.mxu0 %v5380
    %6530 = vmatpush1.bf16.msra.mxu0 %v5379
    %6531 = vmatprep.subr.bf16.mxu0 %v5372
    %6532 = vmatpush1.bf16.msra.mxu0 %v5371
    %6533 = vmatprep.subr.bf16.mxu0 %v5364
    %6534 = vmatpush1.bf16.msra.mxu0 %v5363
    %6535 = vmatprep.subr.bf16.mxu0 %v5356
    %6536 = vmatpush1.bf16.msra.mxu0 %v5355
    %6537 = vmatprep.subr.bf16.mxu0 %v5348
    %6538 = vmatpush1.bf16.msra.mxu0 %v5347
    %6539 = vmatprep.subr.bf16.mxu0 %v5340
    %6540 = vmatpush1.bf16.msra.mxu0 %v5339
    %6541 = vmatprep.subr.bf16.mxu0 %v5460
    %6542 = vmatpush2.bf16.msra.mxu0 %v5459
    %6543 = vmatprep.subr.bf16.mxu0 %v5452
    %6544 = vmatpush2.bf16.msra.mxu0 %v5451
    %6545 = vmatprep.subr.bf16.mxu0 %v5444
    %6546 = vmatpush2.bf16.msra.mxu0 %v5443
    %6547 = vmatprep.subr.bf16.mxu0 %v5436
    %6548 = vmatpush2.bf16.msra.mxu0 %v5435
    %6549 = vmatprep.subr.bf16.mxu0 %v5428
    %6550 = vmatpush2.bf16.msra.mxu0 %v5427
    %6551 = vmatprep.subr.bf16.mxu0 %v5420
    %6552 = vmatpush2.bf16.msra.mxu0 %v5419
    %6553 = vmatprep.subr.bf16.mxu0 %v5412
    %6554 = vmatpush2.bf16.msra.mxu0 %v5411
    %6555 = vmatprep.subr.bf16.mxu0 %v5404
    %6556 = vmatpush2.bf16.msra.mxu0 %v5403
    %6557 = vmatprep.mubr.bf16.mxu0 %v3786
    %6558 = vmatmul.mubr.bf16.gmra.mxu0 %v3785
    %v6559 = vpop.f32.mrf.mxu0
    %v6560 = vadd.f32 %v3744, %v6559
    %v6561 = vpop.f32.mrf.mxu0
    %v6562 = vadd.f32 %v3748, %v6561
    %v6563 = vpop.f32.mrf.mxu0
    %v6564 = vpop.f32.mrf.mxu0
    %6565 = vdwg.mxu0
    %6566 = vmatprep.subr.bf16.mxu0 %v5524
    %6567 = vmatpush1.bf16.msra.mxu0 %v5523
    %6568 = vmatprep.subr.bf16.mxu0 %v5516
    %6569 = vmatpush1.bf16.msra.mxu0 %v5515
    %6570 = vmatprep.subr.bf16.mxu0 %v5508
    %6571 = vmatpush1.bf16.msra.mxu0 %v5507
    %6572 = vmatprep.subr.bf16.mxu0 %v5500
    %6573 = vmatpush1.bf16.msra.mxu0 %v5499
    %6574 = vmatprep.subr.bf16.mxu0 %v5492
    %6575 = vmatpush1.bf16.msra.mxu0 %v5491
    %6576 = vmatprep.subr.bf16.mxu0 %v5484
    %6577 = vmatpush1.bf16.msra.mxu0 %v5483
    %6578 = vmatprep.subr.bf16.mxu0 %v5476
    %6579 = vmatpush1.bf16.msra.mxu0 %v5475
    %6580 = vmatprep.subr.bf16.mxu0 %v5468
    %6581 = vmatpush1.bf16.msra.mxu0 %v5467
    %6582 = vmatprep.subr.bf16.mxu0 %v5588
    %6583 = vmatpush2.bf16.msra.mxu0 %v5587
    %6584 = vmatprep.subr.bf16.mxu0 %v5580
    %6585 = vmatpush2.bf16.msra.mxu0 %v5579
    %6586 = vmatprep.subr.bf16.mxu0 %v5572
    %6587 = vmatpush2.bf16.msra.mxu0 %v5571
    %6588 = vmatprep.subr.bf16.mxu0 %v5564
    %6589 = vmatpush2.bf16.msra.mxu0 %v5563
    %6590 = vmatprep.subr.bf16.mxu0 %v5556
    %6591 = vmatpush2.bf16.msra.mxu0 %v5555
    %6592 = vmatprep.subr.bf16.mxu0 %v5548
    %6593 = vmatpush2.bf16.msra.mxu0 %v5547
    %6594 = vmatprep.subr.bf16.mxu0 %v5540
    %6595 = vmatpush2.bf16.msra.mxu0 %v5539
    %6596 = vmatprep.subr.bf16.mxu0 %v5532
    %6597 = vmatpush2.bf16.msra.mxu0 %v5531
    %6598 = vmatprep.mubr.bf16.mxu0 %v3788
    %6599 = vmatmul.mubr.bf16.gmra.mxu0 %v3787
    %v6600 = vpop.f32.mrf.mxu0
    %v6601 = vadd.f32 %v6560, %v6600
    %v6602 = vpop.f32.mrf.mxu0
    %v6603 = vadd.f32 %v6562, %v6602
    %v6604 = vpop.f32.mrf.mxu0
    %v6605 = vpop.f32.mrf.mxu0
    %6606 = vdwg.mxu0
    %6607 = vmatprep.subr.bf16.mxu0 %v5652
    %6608 = vmatpush1.bf16.msra.mxu0 %v5651
    %6609 = vmatprep.subr.bf16.mxu0 %v5644
    %6610 = vmatpush1.bf16.msra.mxu0 %v5643
    %6611 = vmatprep.subr.bf16.mxu0 %v5636
    %6612 = vmatpush1.bf16.msra.mxu0 %v5635
    %6613 = vmatprep.subr.bf16.mxu0 %v5628
    %6614 = vmatpush1.bf16.msra.mxu0 %v5627
    %6615 = vmatprep.subr.bf16.mxu0 %v5620
    %6616 = vmatpush1.bf16.msra.mxu0 %v5619
    %6617 = vmatprep.subr.bf16.mxu0 %v5612
    %6618 = vmatpush1.bf16.msra.mxu0 %v5611
    %6619 = vmatprep.subr.bf16.mxu0 %v5604
    %6620 = vmatpush1.bf16.msra.mxu0 %v5603
    %6621 = vmatprep.subr.bf16.mxu0 %v5596
    %6622 = vmatpush1.bf16.msra.mxu0 %v5595
    %6623 = vmatprep.subr.bf16.mxu0 %v5716
    %6624 = vmatpush2.bf16.msra.mxu0 %v5715
    %6625 = vmatprep.subr.bf16.mxu0 %v5708
    %6626 = vmatpush2.bf16.msra.mxu0 %v5707
    %6627 = vmatprep.subr.bf16.mxu0 %v5700
    %6628 = vmatpush2.bf16.msra.mxu0 %v5699
    %6629 = vmatprep.subr.bf16.mxu0 %v5692
    %6630 = vmatpush2.bf16.msra.mxu0 %v5691
    %6631 = vmatprep.subr.bf16.mxu0 %v5684
    %6632 = vmatpush2.bf16.msra.mxu0 %v5683
    %6633 = vmatprep.subr.bf16.mxu0 %v5676
    %6634 = vmatpush2.bf16.msra.mxu0 %v5675
    %6635 = vmatprep.subr.bf16.mxu0 %v5668
    %6636 = vmatpush2.bf16.msra.mxu0 %v5667
    %6637 = vmatprep.subr.bf16.mxu0 %v5660
    %6638 = vmatpush2.bf16.msra.mxu0 %v5659
    %6639 = vmatprep.mubr.bf16.mxu0 %v3790
    %6640 = vmatmul.mubr.bf16.gmra.mxu0 %v3789
    %v6641 = vpop.f32.mrf.mxu0
    %v6642 = vadd.f32 %v6601, %v6641
    %v6643 = vpop.f32.mrf.mxu0
    %v6644 = vadd.f32 %v6603, %v6643
    %v6645 = vpop.f32.mrf.mxu0
    %v6646 = vpop.f32.mrf.mxu0
    %6647 = vdwg.mxu0
    %6648 = vmatprep.subr.bf16.mxu0 %v5780
    %6649 = vmatpush1.bf16.msra.mxu0 %v5779
    %6650 = vmatprep.subr.bf16.mxu0 %v5772
    %6651 = vmatpush1.bf16.msra.mxu0 %v5771
    %6652 = vmatprep.subr.bf16.mxu0 %v5764
    %6653 = vmatpush1.bf16.msra.mxu0 %v5763
    %6654 = vmatprep.subr.bf16.mxu0 %v5756
    %6655 = vmatpush1.bf16.msra.mxu0 %v5755
    %6656 = vmatprep.subr.bf16.mxu0 %v5748
    %6657 = vmatpush1.bf16.msra.mxu0 %v5747
    %6658 = vmatprep.subr.bf16.mxu0 %v5740
    %6659 = vmatpush1.bf16.msra.mxu0 %v5739
    %6660 = vmatprep.subr.bf16.mxu0 %v5732
    %6661 = vmatpush1.bf16.msra.mxu0 %v5731
    %6662 = vmatprep.subr.bf16.mxu0 %v5724
    %6663 = vmatpush1.bf16.msra.mxu0 %v5723
    %6664 = vmatprep.subr.bf16.mxu0 %v5844
    %6665 = vmatpush2.bf16.msra.mxu0 %v5843
    %6666 = vmatprep.subr.bf16.mxu0 %v5836
    %6667 = vmatpush2.bf16.msra.mxu0 %v5835
    %6668 = vmatprep.subr.bf16.mxu0 %v5828
    %6669 = vmatpush2.bf16.msra.mxu0 %v5827
    %6670 = vmatprep.subr.bf16.mxu0 %v5820
    %6671 = vmatpush2.bf16.msra.mxu0 %v5819
    %6672 = vmatprep.subr.bf16.mxu0 %v5812
    %6673 = vmatpush2.bf16.msra.mxu0 %v5811
    %6674 = vmatprep.subr.bf16.mxu0 %v5804
    %6675 = vmatpush2.bf16.msra.mxu0 %v5803
    %6676 = vmatprep.subr.bf16.mxu0 %v5796
    %6677 = vmatpush2.bf16.msra.mxu0 %v5795
    %6678 = vmatprep.subr.bf16.mxu0 %v5788
    %6679 = vmatpush2.bf16.msra.mxu0 %v5787
    %6680 = vmatprep.mubr.bf16.mxu0 %v3792
    %6681 = vmatmul.mubr.bf16.gmra.mxu0 %v3791
    %v6682 = vpop.f32.mrf.mxu0
    %v6683 = vadd.f32 %v6642, %v6682
    %v6684 = vpop.f32.mrf.mxu0
    %v6685 = vadd.f32 %v6644, %v6684
    %v6686 = vpop.f32.mrf.mxu0
    %v6687 = vpop.f32.mrf.mxu0
    %6688 = vdwg.mxu0
    %6689 = vmatprep.subr.bf16.mxu0 %v5398
    %6690 = vmatpush1.bf16.msra.mxu0 %v5397
    %6691 = vmatprep.subr.bf16.mxu0 %v5390
    %6692 = vmatpush1.bf16.msra.mxu0 %v5389
    %6693 = vmatprep.subr.bf16.mxu0 %v5382
    %6694 = vmatpush1.bf16.msra.mxu0 %v5381
    %6695 = vmatprep.subr.bf16.mxu0 %v5374
    %6696 = vmatpush1.bf16.msra.mxu0 %v5373
    %6697 = vmatprep.subr.bf16.mxu0 %v5366
    %6698 = vmatpush1.bf16.msra.mxu0 %v5365
    %6699 = vmatprep.subr.bf16.mxu0 %v5358
    %6700 = vmatpush1.bf16.msra.mxu0 %v5357
    %6701 = vmatprep.subr.bf16.mxu0 %v5350
    %6702 = vmatpush1.bf16.msra.mxu0 %v5349
    %6703 = vmatprep.subr.bf16.mxu0 %v5342
    %6704 = vmatpush1.bf16.msra.mxu0 %v5341
    %6705 = vmatprep.subr.bf16.mxu0 %v5462
    %6706 = vmatpush2.bf16.msra.mxu0 %v5461
    %6707 = vmatprep.subr.bf16.mxu0 %v5454
    %6708 = vmatpush2.bf16.msra.mxu0 %v5453
    %6709 = vmatprep.subr.bf16.mxu0 %v5446
    %6710 = vmatpush2.bf16.msra.mxu0 %v5445
    %6711 = vmatprep.subr.bf16.mxu0 %v5438
    %6712 = vmatpush2.bf16.msra.mxu0 %v5437
    %6713 = vmatprep.subr.bf16.mxu0 %v5430
    %6714 = vmatpush2.bf16.msra.mxu0 %v5429
    %6715 = vmatprep.subr.bf16.mxu0 %v5422
    %6716 = vmatpush2.bf16.msra.mxu0 %v5421
    %6717 = vmatprep.subr.bf16.mxu0 %v5414
    %6718 = vmatpush2.bf16.msra.mxu0 %v5413
    %6719 = vmatprep.subr.bf16.mxu0 %v5406
    %6720 = vmatpush2.bf16.msra.mxu0 %v5405
    %6721 = vmatprep.mubr.bf16.mxu0 %v3786
    %6722 = vmatmul.mubr.bf16.gmra.mxu0 %v3785
    %v6723 = vpop.f32.mrf.mxu0
    %v6724 = vadd.f32 %v3752, %v6723
    %v6725 = vpop.f32.mrf.mxu0
    %v6726 = vadd.f32 %v3756, %v6725
    %v6727 = vpop.f32.mrf.mxu0
    %v6728 = vpop.f32.mrf.mxu0
    %6729 = vdwg.mxu0
    %6730 = vmatprep.subr.bf16.mxu0 %v5526
    %6731 = vmatpush1.bf16.msra.mxu0 %v5525
    %6732 = vmatprep.subr.bf16.mxu0 %v5518
    %6733 = vmatpush1.bf16.msra.mxu0 %v5517
    %6734 = vmatprep.subr.bf16.mxu0 %v5510
    %6735 = vmatpush1.bf16.msra.mxu0 %v5509
    %6736 = vmatprep.subr.bf16.mxu0 %v5502
    %6737 = vmatpush1.bf16.msra.mxu0 %v5501
    %6738 = vmatprep.subr.bf16.mxu0 %v5494
    %6739 = vmatpush1.bf16.msra.mxu0 %v5493
    %6740 = vmatprep.subr.bf16.mxu0 %v5486
    %6741 = vmatpush1.bf16.msra.mxu0 %v5485
    %6742 = vmatprep.subr.bf16.mxu0 %v5478
    %6743 = vmatpush1.bf16.msra.mxu0 %v5477
    %6744 = vmatprep.subr.bf16.mxu0 %v5470
    %6745 = vmatpush1.bf16.msra.mxu0 %v5469
    %6746 = vmatprep.subr.bf16.mxu0 %v5590
    %6747 = vmatpush2.bf16.msra.mxu0 %v5589
    %6748 = vmatprep.subr.bf16.mxu0 %v5582
    %6749 = vmatpush2.bf16.msra.mxu0 %v5581
    %6750 = vmatprep.subr.bf16.mxu0 %v5574
    %6751 = vmatpush2.bf16.msra.mxu0 %v5573
    %6752 = vmatprep.subr.bf16.mxu0 %v5566
    %6753 = vmatpush2.bf16.msra.mxu0 %v5565
    %6754 = vmatprep.subr.bf16.mxu0 %v5558
    %6755 = vmatpush2.bf16.msra.mxu0 %v5557
    %6756 = vmatprep.subr.bf16.mxu0 %v5550
    %6757 = vmatpush2.bf16.msra.mxu0 %v5549
    %6758 = vmatprep.subr.bf16.mxu0 %v5542
    %6759 = vmatpush2.bf16.msra.mxu0 %v5541
    %6760 = vmatprep.subr.bf16.mxu0 %v5534
    %6761 = vmatpush2.bf16.msra.mxu0 %v5533
    %6762 = vmatprep.mubr.bf16.mxu0 %v3788
    %6763 = vmatmul.mubr.bf16.gmra.mxu0 %v3787
    %v6764 = vpop.f32.mrf.mxu0
    %v6765 = vadd.f32 %v6724, %v6764
    %v6766 = vpop.f32.mrf.mxu0
    %v6767 = vadd.f32 %v6726, %v6766
    %v6768 = vpop.f32.mrf.mxu0
    %v6769 = vpop.f32.mrf.mxu0
    %6770 = vdwg.mxu0
    %6771 = vmatprep.subr.bf16.mxu0 %v5654
    %6772 = vmatpush1.bf16.msra.mxu0 %v5653
    %6773 = vmatprep.subr.bf16.mxu0 %v5646
    %6774 = vmatpush1.bf16.msra.mxu0 %v5645
    %6775 = vmatprep.subr.bf16.mxu0 %v5638
    %6776 = vmatpush1.bf16.msra.mxu0 %v5637
    %6777 = vmatprep.subr.bf16.mxu0 %v5630
    %6778 = vmatpush1.bf16.msra.mxu0 %v5629
    %6779 = vmatprep.subr.bf16.mxu0 %v5622
    %6780 = vmatpush1.bf16.msra.mxu0 %v5621
    %6781 = vmatprep.subr.bf16.mxu0 %v5614
    %6782 = vmatpush1.bf16.msra.mxu0 %v5613
    %6783 = vmatprep.subr.bf16.mxu0 %v5606
    %6784 = vmatpush1.bf16.msra.mxu0 %v5605
    %6785 = vmatprep.subr.bf16.mxu0 %v5598
    %6786 = vmatpush1.bf16.msra.mxu0 %v5597
    %6787 = vmatprep.subr.bf16.mxu0 %v5718
    %6788 = vmatpush2.bf16.msra.mxu0 %v5717
    %6789 = vmatprep.subr.bf16.mxu0 %v5710
    %6790 = vmatpush2.bf16.msra.mxu0 %v5709
    %6791 = vmatprep.subr.bf16.mxu0 %v5702
    %6792 = vmatpush2.bf16.msra.mxu0 %v5701
    %6793 = vmatprep.subr.bf16.mxu0 %v5694
    %6794 = vmatpush2.bf16.msra.mxu0 %v5693
    %6795 = vmatprep.subr.bf16.mxu0 %v5686
    %6796 = vmatpush2.bf16.msra.mxu0 %v5685
    %6797 = vmatprep.subr.bf16.mxu0 %v5678
    %6798 = vmatpush2.bf16.msra.mxu0 %v5677
    %6799 = vmatprep.subr.bf16.mxu0 %v5670
    %6800 = vmatpush2.bf16.msra.mxu0 %v5669
    %6801 = vmatprep.subr.bf16.mxu0 %v5662
    %6802 = vmatpush2.bf16.msra.mxu0 %v5661
    %6803 = vmatprep.mubr.bf16.mxu0 %v3790
    %6804 = vmatmul.mubr.bf16.gmra.mxu0 %v3789
    %v6805 = vpop.f32.mrf.mxu0
    %v6806 = vadd.f32 %v6765, %v6805
    %v6807 = vpop.f32.mrf.mxu0
    %v6808 = vadd.f32 %v6767, %v6807
    %v6809 = vpop.f32.mrf.mxu0
    %v6810 = vpop.f32.mrf.mxu0
    %6811 = vdwg.mxu0
    %6812 = vmatprep.subr.bf16.mxu0 %v5782
    %6813 = vmatpush1.bf16.msra.mxu0 %v5781
    %6814 = vmatprep.subr.bf16.mxu0 %v5774
    %6815 = vmatpush1.bf16.msra.mxu0 %v5773
    %6816 = vmatprep.subr.bf16.mxu0 %v5766
    %6817 = vmatpush1.bf16.msra.mxu0 %v5765
    %6818 = vmatprep.subr.bf16.mxu0 %v5758
    %6819 = vmatpush1.bf16.msra.mxu0 %v5757
    %6820 = vmatprep.subr.bf16.mxu0 %v5750
    %6821 = vmatpush1.bf16.msra.mxu0 %v5749
    %6822 = vmatprep.subr.bf16.mxu0 %v5742
    %6823 = vmatpush1.bf16.msra.mxu0 %v5741
    %6824 = vmatprep.subr.bf16.mxu0 %v5734
    %6825 = vmatpush1.bf16.msra.mxu0 %v5733
    %6826 = vmatprep.subr.bf16.mxu0 %v5726
    %6827 = vmatpush1.bf16.msra.mxu0 %v5725
    %6828 = vmatprep.subr.bf16.mxu0 %v5846
    %6829 = vmatpush2.bf16.msra.mxu0 %v5845
    %6830 = vmatprep.subr.bf16.mxu0 %v5838
    %6831 = vmatpush2.bf16.msra.mxu0 %v5837
    %6832 = vmatprep.subr.bf16.mxu0 %v5830
    %6833 = vmatpush2.bf16.msra.mxu0 %v5829
    %6834 = vmatprep.subr.bf16.mxu0 %v5822
    %6835 = vmatpush2.bf16.msra.mxu0 %v5821
    %6836 = vmatprep.subr.bf16.mxu0 %v5814
    %6837 = vmatpush2.bf16.msra.mxu0 %v5813
    %6838 = vmatprep.subr.bf16.mxu0 %v5806
    %6839 = vmatpush2.bf16.msra.mxu0 %v5805
    %6840 = vmatprep.subr.bf16.mxu0 %v5798
    %6841 = vmatpush2.bf16.msra.mxu0 %v5797
    %6842 = vmatprep.subr.bf16.mxu0 %v5790
    %6843 = vmatpush2.bf16.msra.mxu0 %v5789
    %6844 = vmatprep.mubr.bf16.mxu0 %v3792
    %6845 = vmatmul.mubr.bf16.gmra.mxu0 %v3791
    %v6846 = vpop.f32.mrf.mxu0
    %v6847 = vadd.f32 %v6806, %v6846
    %v6848 = vpop.f32.mrf.mxu0
    %v6849 = vadd.f32 %v6808, %v6848
    %v6850 = vpop.f32.mrf.mxu0
    %v6851 = vpop.f32.mrf.mxu0
    %6852 = vdwg.mxu0
    %6853 = vmatprep.subr.bf16.mxu0 %v5400
    %6854 = vmatpush1.bf16.msra.mxu0 %v5399
    %6855 = vmatprep.subr.bf16.mxu0 %v5392
    %6856 = vmatpush1.bf16.msra.mxu0 %v5391
    %6857 = vmatprep.subr.bf16.mxu0 %v5384
    %6858 = vmatpush1.bf16.msra.mxu0 %v5383
    %6859 = vmatprep.subr.bf16.mxu0 %v5376
    %6860 = vmatpush1.bf16.msra.mxu0 %v5375
    %6861 = vmatprep.subr.bf16.mxu0 %v5368
    %6862 = vmatpush1.bf16.msra.mxu0 %v5367
    %6863 = vmatprep.subr.bf16.mxu0 %v5360
    %6864 = vmatpush1.bf16.msra.mxu0 %v5359
    %6865 = vmatprep.subr.bf16.mxu0 %v5352
    %6866 = vmatpush1.bf16.msra.mxu0 %v5351
    %6867 = vmatprep.subr.bf16.mxu0 %v5344
    %6868 = vmatpush1.bf16.msra.mxu0 %v5343
    %6869 = vmatprep.subr.bf16.mxu0 %v5464
    %6870 = vmatpush2.bf16.msra.mxu0 %v5463
    %6871 = vmatprep.subr.bf16.mxu0 %v5456
    %6872 = vmatpush2.bf16.msra.mxu0 %v5455
    %6873 = vmatprep.subr.bf16.mxu0 %v5448
    %6874 = vmatpush2.bf16.msra.mxu0 %v5447
    %6875 = vmatprep.subr.bf16.mxu0 %v5440
    %6876 = vmatpush2.bf16.msra.mxu0 %v5439
    %6877 = vmatprep.subr.bf16.mxu0 %v5432
    %6878 = vmatpush2.bf16.msra.mxu0 %v5431
    %6879 = vmatprep.subr.bf16.mxu0 %v5424
    %6880 = vmatpush2.bf16.msra.mxu0 %v5423
    %6881 = vmatprep.subr.bf16.mxu0 %v5416
    %6882 = vmatpush2.bf16.msra.mxu0 %v5415
    %6883 = vmatprep.subr.bf16.mxu0 %v5408
    %6884 = vmatpush2.bf16.msra.mxu0 %v5407
    %6885 = vmatprep.mubr.bf16.mxu0 %v3786
    %6886 = vmatmul.mubr.bf16.gmra.mxu0 %v3785
    %v6887 = vpop.f32.mrf.mxu0
    %v6888 = vadd.f32 %v3760, %v6887
    %v6889 = vpop.f32.mrf.mxu0
    %v6890 = vadd.f32 %v3764, %v6889
    %v6891 = vpop.f32.mrf.mxu0
    %v6892 = vpop.f32.mrf.mxu0
    %6893 = vdwg.mxu0
    %6894 = vmatprep.subr.bf16.mxu0 %v5528
    %6895 = vmatpush1.bf16.msra.mxu0 %v5527
    %6896 = vmatprep.subr.bf16.mxu0 %v5520
    %6897 = vmatpush1.bf16.msra.mxu0 %v5519
    %6898 = vmatprep.subr.bf16.mxu0 %v5512
    %6899 = vmatpush1.bf16.msra.mxu0 %v5511
    %6900 = vmatprep.subr.bf16.mxu0 %v5504
    %6901 = vmatpush1.bf16.msra.mxu0 %v5503
    %6902 = vmatprep.subr.bf16.mxu0 %v5496
    %6903 = vmatpush1.bf16.msra.mxu0 %v5495
    %6904 = vmatprep.subr.bf16.mxu0 %v5488
    %6905 = vmatpush1.bf16.msra.mxu0 %v5487
    %6906 = vmatprep.subr.bf16.mxu0 %v5480
    %6907 = vmatpush1.bf16.msra.mxu0 %v5479
    %6908 = vmatprep.subr.bf16.mxu0 %v5472
    %6909 = vmatpush1.bf16.msra.mxu0 %v5471
    %6910 = vmatprep.subr.bf16.mxu0 %v5592
    %6911 = vmatpush2.bf16.msra.mxu0 %v5591
    %6912 = vmatprep.subr.bf16.mxu0 %v5584
    %6913 = vmatpush2.bf16.msra.mxu0 %v5583
    %6914 = vmatprep.subr.bf16.mxu0 %v5576
    %6915 = vmatpush2.bf16.msra.mxu0 %v5575
    %6916 = vmatprep.subr.bf16.mxu0 %v5568
    %6917 = vmatpush2.bf16.msra.mxu0 %v5567
    %6918 = vmatprep.subr.bf16.mxu0 %v5560
    %6919 = vmatpush2.bf16.msra.mxu0 %v5559
    %6920 = vmatprep.subr.bf16.mxu0 %v5552
    %6921 = vmatpush2.bf16.msra.mxu0 %v5551
    %6922 = vmatprep.subr.bf16.mxu0 %v5544
    %6923 = vmatpush2.bf16.msra.mxu0 %v5543
    %6924 = vmatprep.subr.bf16.mxu0 %v5536
    %6925 = vmatpush2.bf16.msra.mxu0 %v5535
    %6926 = vmatprep.mubr.bf16.mxu0 %v3788
    %6927 = vmatmul.mubr.bf16.gmra.mxu0 %v3787
    %v6928 = vpop.f32.mrf.mxu0
    %v6929 = vadd.f32 %v6888, %v6928
    %v6930 = vpop.f32.mrf.mxu0
    %v6931 = vadd.f32 %v6890, %v6930
    %v6932 = vpop.f32.mrf.mxu0
    %v6933 = vpop.f32.mrf.mxu0
    %6934 = vdwg.mxu0
    %6935 = vmatprep.subr.bf16.mxu0 %v5656
    %6936 = vmatpush1.bf16.msra.mxu0 %v5655
    %6937 = vmatprep.subr.bf16.mxu0 %v5648
    %6938 = vmatpush1.bf16.msra.mxu0 %v5647
    %6939 = vmatprep.subr.bf16.mxu0 %v5640
    %6940 = vmatpush1.bf16.msra.mxu0 %v5639
    %6941 = vmatprep.subr.bf16.mxu0 %v5632
    %6942 = vmatpush1.bf16.msra.mxu0 %v5631
    %6943 = vmatprep.subr.bf16.mxu0 %v5624
    %6944 = vmatpush1.bf16.msra.mxu0 %v5623
    %6945 = vmatprep.subr.bf16.mxu0 %v5616
    %6946 = vmatpush1.bf16.msra.mxu0 %v5615
    %6947 = vmatprep.subr.bf16.mxu0 %v5608
    %6948 = vmatpush1.bf16.msra.mxu0 %v5607
    %6949 = vmatprep.subr.bf16.mxu0 %v5600
    %6950 = vmatpush1.bf16.msra.mxu0 %v5599
    %6951 = vmatprep.subr.bf16.mxu0 %v5720
    %6952 = vmatpush2.bf16.msra.mxu0 %v5719
    %6953 = vmatprep.subr.bf16.mxu0 %v5712
    %6954 = vmatpush2.bf16.msra.mxu0 %v5711
    %6955 = vmatprep.subr.bf16.mxu0 %v5704
    %6956 = vmatpush2.bf16.msra.mxu0 %v5703
    %6957 = vmatprep.subr.bf16.mxu0 %v5696
    %6958 = vmatpush2.bf16.msra.mxu0 %v5695
    %6959 = vmatprep.subr.bf16.mxu0 %v5688
    %6960 = vmatpush2.bf16.msra.mxu0 %v5687
    %6961 = vmatprep.subr.bf16.mxu0 %v5680
    %6962 = vmatpush2.bf16.msra.mxu0 %v5679
    %6963 = vmatprep.subr.bf16.mxu0 %v5672
    %6964 = vmatpush2.bf16.msra.mxu0 %v5671
    %6965 = vmatprep.subr.bf16.mxu0 %v5664
    %6966 = vmatpush2.bf16.msra.mxu0 %v5663
    %6967 = vmatprep.mubr.bf16.mxu0 %v3790
    %6968 = vmatmul.mubr.bf16.gmra.mxu0 %v3789
    %v6969 = vpop.f32.mrf.mxu0
    %v6970 = vadd.f32 %v6929, %v6969
    %v6971 = vpop.f32.mrf.mxu0
    %v6972 = vadd.f32 %v6931, %v6971
    %v6973 = vpop.f32.mrf.mxu0
    %v6974 = vpop.f32.mrf.mxu0
    %6975 = vdwg.mxu0
    %6976 = vmatprep.subr.bf16.mxu0 %v5784
    %6977 = vmatpush1.bf16.msra.mxu0 %v5783
    %6978 = vmatprep.subr.bf16.mxu0 %v5776
    %6979 = vmatpush1.bf16.msra.mxu0 %v5775
    %6980 = vmatprep.subr.bf16.mxu0 %v5768
    %6981 = vmatpush1.bf16.msra.mxu0 %v5767
    %6982 = vmatprep.subr.bf16.mxu0 %v5760
    %6983 = vmatpush1.bf16.msra.mxu0 %v5759
    %6984 = vmatprep.subr.bf16.mxu0 %v5752
    %6985 = vmatpush1.bf16.msra.mxu0 %v5751
    %6986 = vmatprep.subr.bf16.mxu0 %v5744
    %6987 = vmatpush1.bf16.msra.mxu0 %v5743
    %6988 = vmatprep.subr.bf16.mxu0 %v5736
    %6989 = vmatpush1.bf16.msra.mxu0 %v5735
    %6990 = vmatprep.subr.bf16.mxu0 %v5728
    %6991 = vmatpush1.bf16.msra.mxu0 %v5727
    %6992 = vmatprep.subr.bf16.mxu0 %v5848
    %6993 = vmatpush2.bf16.msra.mxu0 %v5847
    %6994 = vmatprep.subr.bf16.mxu0 %v5840
    %6995 = vmatpush2.bf16.msra.mxu0 %v5839
    %6996 = vmatprep.subr.bf16.mxu0 %v5832
    %6997 = vmatpush2.bf16.msra.mxu0 %v5831
    %6998 = vmatprep.subr.bf16.mxu0 %v5824
    %6999 = vmatpush2.bf16.msra.mxu0 %v5823
    %7000 = vmatprep.subr.bf16.mxu0 %v5816
    %7001 = vmatpush2.bf16.msra.mxu0 %v5815
    %7002 = vmatprep.subr.bf16.mxu0 %v5808
    %7003 = vmatpush2.bf16.msra.mxu0 %v5807
    %7004 = vmatprep.subr.bf16.mxu0 %v5800
    %7005 = vmatpush2.bf16.msra.mxu0 %v5799
    %7006 = vmatprep.subr.bf16.mxu0 %v5792
    %7007 = vmatpush2.bf16.msra.mxu0 %v5791
    %7008 = vmatprep.mubr.bf16.mxu0 %v3792
    %7009 = vmatmul.mubr.bf16.gmra.mxu0 %v3791
    %v7010 = vpop.f32.mrf.mxu0
    %v7011 = vadd.f32 %v6970, %v7010
    %v7012 = vpop.f32.mrf.mxu0
    %v7013 = vadd.f32 %v6972, %v7012
    %v7014 = vpop.f32.mrf.mxu0
    %v7015 = vpop.f32.mrf.mxu0
    %7016 = vdwg.mxu0
    %v7017 = vmax.f32 %v6519, 0.0
    %v7018 = vmax.f32 %v6521, 0.0
    %v7019 = vmax.f32 %v6683, 0.0
    %v7020 = vmax.f32 %v6685, 0.0
    %v7021 = vmax.f32 %v6847, 0.0
    %v7022 = vmax.f32 %v6849, 0.0
    %v7023 = vmax.f32 %v7011, 0.0
    %v7024 = vmax.f32 %v7013, 0.0
    %v7025 = vpack.c.bf16 %v7017, %v7017
    %v7026 = vpack.c.bf16 %v7018, %v7018
    %v7027 = vpack.c.bf16 %v7019, %v7019
    %v7028 = vpack.c.bf16 %v7020, %v7020
    %v7029 = vpack.c.bf16 %v7021, %v7021
    %v7030 = vpack.c.bf16 %v7022, %v7022
    %v7031 = vpack.c.bf16 %v7023, %v7023
    %v7032 = vpack.c.bf16 %v7024, %v7024
    %v7041 = vunpack.c.l.b16 %v7025
    %v7042 = vunpack.c.l.b16 %v7026
    %v7043 = vunpack.c.l.b16 %v7027
    %v7044 = vunpack.c.l.b16 %v7028
    %v7045 = vunpack.c.l.b16 %v7029
    %v7046 = vunpack.c.l.b16 %v7030
    %v7047 = vunpack.c.l.b16 %v7031
    %v7048 = vunpack.c.l.b16 %v7032
    %v7049 = vpack.c.b16 %v7042, %v7041
    %v7050 = vpack.c.b16 %v7044, %v7043
    %v7051 = vpack.c.b16 %v7046, %v7045
    %v7052 = vpack.c.b16 %v7048, %v7047
    %7057 = vst [vmem:[#allocation3] sm:$0xff] %v7049
    %7058 = vst [vmem:[#allocation3 + $0x8] sm:$0xff] %v7050
    %7059 = vst [vmem:[#allocation3 + $0x10] sm:$0xff] %v7051
    %7060 = vst [vmem:[#allocation3 + $0x18] sm:$0xff] %v7052
    %v7061 = vld [vmem:[#allocation3] sm:$0xff]
    %v7062 = vld [vmem:[#allocation3 + $0x8] sm:$0xff]
    %v7063 = vld [vmem:[#allocation3 + $0x10] sm:$0xff]
    %v7064 = vld [vmem:[#allocation3 + $0x18] sm:$0xff]
    %v7065 = vld [vmem:[#allocation11] sm:$0xf]
    %v7066 = vld [vmem:[#allocation11 + $0x4] sm:$0xf]
    %v7067 = vld [vmem:[#allocation11 + $0x8] sm:$0xf]
    %v7068 = vld [vmem:[#allocation11 + $0xc] sm:$0xf]
    %v7069 = vld [vmem:[#allocation11 + $0x10] sm:$0xf]
    %v7070 = vld [vmem:[#allocation11 + $0x14] sm:$0xf]
    %v7071 = vld [vmem:[#allocation11 + $0x18] sm:$0xf]
    %v7072 = vld [vmem:[#allocation11 + $0x1c] sm:$0xf]
    %v7073 = vld [vmem:[#allocation11 + $0x20] sm:$0xf]
    %v7074 = vld [vmem:[#allocation11 + $0x24] sm:$0xf]
    %v7075 = vld [vmem:[#allocation11 + $0x28] sm:$0xf]
    %v7076 = vld [vmem:[#allocation11 + $0x2c] sm:$0xf]
    %v7077 = vld [vmem:[#allocation11 + $0x30] sm:$0xf]
    %v7078 = vld [vmem:[#allocation11 + $0x34] sm:$0xf]
    %v7079 = vld [vmem:[#allocation11 + $0x38] sm:$0xf]
    %v7080 = vld [vmem:[#allocation11 + $0x3c] sm:$0xf]
    %v7081 = vld [vmem:[#allocation11 + $0x40] sm:$0xf]
    %v7082 = vld [vmem:[#allocation11 + $0x44] sm:$0xf]
    %v7083 = vld [vmem:[#allocation11 + $0x48] sm:$0xf]
    %v7084 = vld [vmem:[#allocation11 + $0x4c] sm:$0xf]
    %v7085 = vld [vmem:[#allocation11 + $0x50] sm:$0xf]
    %v7086 = vld [vmem:[#allocation11 + $0x54] sm:$0xf]
    %v7087 = vld [vmem:[#allocation11 + $0x58] sm:$0xf]
    %v7088 = vld [vmem:[#allocation11 + $0x5c] sm:$0xf]
    %v7089 = vld [vmem:[#allocation11 + $0x60] sm:$0xf]
    %v7090 = vld [vmem:[#allocation11 + $0x64] sm:$0xf]
    %v7091 = vld [vmem:[#allocation11 + $0x68] sm:$0xf]
    %v7092 = vld [vmem:[#allocation11 + $0x6c] sm:$0xf]
    %v7093 = vld [vmem:[#allocation11 + $0x70] sm:$0xf]
    %v7094 = vld [vmem:[#allocation11 + $0x74] sm:$0xf]
    %v7095 = vld [vmem:[#allocation11 + $0x78] sm:$0xf]
    %v7096 = vld [vmem:[#allocation11 + $0x7c] sm:$0xf]
    %v7097 = vld [vmem:[#allocation11 + $0x80] sm:$0xf]
    %v7098 = vld [vmem:[#allocation11 + $0x84] sm:$0xf]
    %v7099 = vld [vmem:[#allocation11 + $0x88] sm:$0xf]
    %v7100 = vld [vmem:[#allocation11 + $0x8c] sm:$0xf]
    %v7101 = vld [vmem:[#allocation11 + $0x90] sm:$0xf]
    %v7102 = vld [vmem:[#allocation11 + $0x94] sm:$0xf]
    %v7103 = vld [vmem:[#allocation11 + $0x98] sm:$0xf]
    %v7104 = vld [vmem:[#allocation11 + $0x9c] sm:$0xf]
    %v7105 = vld [vmem:[#allocation11 + $0xa0] sm:$0xf]
    %v7106 = vld [vmem:[#allocation11 + $0xa4] sm:$0xf]
    %v7107 = vld [vmem:[#allocation11 + $0xa8] sm:$0xf]
    %v7108 = vld [vmem:[#allocation11 + $0xac] sm:$0xf]
    %v7109 = vld [vmem:[#allocation11 + $0xb0] sm:$0xf]
    %v7110 = vld [vmem:[#allocation11 + $0xb4] sm:$0xf]
    %v7111 = vld [vmem:[#allocation11 + $0xb8] sm:$0xf]
    %v7112 = vld [vmem:[#allocation11 + $0xbc] sm:$0xf]
    %v7113 = vld [vmem:[#allocation11 + $0xc0] sm:$0xf]
    %v7114 = vld [vmem:[#allocation11 + $0xc4] sm:$0xf]
    %v7115 = vld [vmem:[#allocation11 + $0xc8] sm:$0xf]
    %v7116 = vld [vmem:[#allocation11 + $0xcc] sm:$0xf]
    %v7117 = vld [vmem:[#allocation11 + $0xd0] sm:$0xf]
    %v7118 = vld [vmem:[#allocation11 + $0xd4] sm:$0xf]
    %v7119 = vld [vmem:[#allocation11 + $0xd8] sm:$0xf]
    %v7120 = vld [vmem:[#allocation11 + $0xdc] sm:$0xf]
    %v7121 = vld [vmem:[#allocation11 + $0xe0] sm:$0xf]
    %v7122 = vld [vmem:[#allocation11 + $0xe4] sm:$0xf]
    %v7123 = vld [vmem:[#allocation11 + $0xe8] sm:$0xf]
    %v7124 = vld [vmem:[#allocation11 + $0xec] sm:$0xf]
    %v7125 = vld [vmem:[#allocation11 + $0xf0] sm:$0xf]
    %v7126 = vld [vmem:[#allocation11 + $0xf4] sm:$0xf]
    %v7127 = vld [vmem:[#allocation11 + $0xf8] sm:$0xf]
    %v7128 = vld [vmem:[#allocation11 + $0xfc] sm:$0xf]
    %v7129 = vld [vmem:[#allocation11 + $0x100] sm:$0xf]
    %v7130 = vld [vmem:[#allocation11 + $0x104] sm:$0xf]
    %v7131 = vld [vmem:[#allocation11 + $0x108] sm:$0xf]
    %v7132 = vld [vmem:[#allocation11 + $0x10c] sm:$0xf]
    %v7133 = vld [vmem:[#allocation11 + $0x110] sm:$0xf]
    %v7134 = vld [vmem:[#allocation11 + $0x114] sm:$0xf]
    %v7135 = vld [vmem:[#allocation11 + $0x118] sm:$0xf]
    %v7136 = vld [vmem:[#allocation11 + $0x11c] sm:$0xf]
    %v7137 = vld [vmem:[#allocation11 + $0x120] sm:$0xf]
    %v7138 = vld [vmem:[#allocation11 + $0x124] sm:$0xf]
    %v7139 = vld [vmem:[#allocation11 + $0x128] sm:$0xf]
    %v7140 = vld [vmem:[#allocation11 + $0x12c] sm:$0xf]
    %v7141 = vld [vmem:[#allocation11 + $0x130] sm:$0xf]
    %v7142 = vld [vmem:[#allocation11 + $0x134] sm:$0xf]
    %v7143 = vld [vmem:[#allocation11 + $0x138] sm:$0xf]
    %v7144 = vld [vmem:[#allocation11 + $0x13c] sm:$0xf]
    %v7145 = vld [vmem:[#allocation11 + $0x140] sm:$0xf]
    %v7146 = vld [vmem:[#allocation11 + $0x144] sm:$0xf]
    %v7147 = vld [vmem:[#allocation11 + $0x148] sm:$0xf]
    %v7148 = vld [vmem:[#allocation11 + $0x14c] sm:$0xf]
    %v7149 = vld [vmem:[#allocation11 + $0x150] sm:$0xf]
    %v7150 = vld [vmem:[#allocation11 + $0x154] sm:$0xf]
    %v7151 = vld [vmem:[#allocation11 + $0x158] sm:$0xf]
    %v7152 = vld [vmem:[#allocation11 + $0x15c] sm:$0xf]
    %v7153 = vld [vmem:[#allocation11 + $0x160] sm:$0xf]
    %v7154 = vld [vmem:[#allocation11 + $0x164] sm:$0xf]
    %v7155 = vld [vmem:[#allocation11 + $0x168] sm:$0xf]
    %v7156 = vld [vmem:[#allocation11 + $0x16c] sm:$0xf]
    %v7157 = vld [vmem:[#allocation11 + $0x170] sm:$0xf]
    %v7158 = vld [vmem:[#allocation11 + $0x174] sm:$0xf]
    %v7159 = vld [vmem:[#allocation11 + $0x178] sm:$0xf]
    %v7160 = vld [vmem:[#allocation11 + $0x17c] sm:$0xf]
    %v7161 = vld [vmem:[#allocation11 + $0x180] sm:$0xf]
    %v7162 = vld [vmem:[#allocation11 + $0x184] sm:$0xf]
    %v7163 = vld [vmem:[#allocation11 + $0x188] sm:$0xf]
    %v7164 = vld [vmem:[#allocation11 + $0x18c] sm:$0xf]
    %v7165 = vld [vmem:[#allocation11 + $0x190] sm:$0xf]
    %v7166 = vld [vmem:[#allocation11 + $0x194] sm:$0xf]
    %v7167 = vld [vmem:[#allocation11 + $0x198] sm:$0xf]
    %v7168 = vld [vmem:[#allocation11 + $0x19c] sm:$0xf]
    %v7169 = vld [vmem:[#allocation11 + $0x1a0] sm:$0xf]
    %v7170 = vld [vmem:[#allocation11 + $0x1a4] sm:$0xf]
    %v7171 = vld [vmem:[#allocation11 + $0x1a8] sm:$0xf]
    %v7172 = vld [vmem:[#allocation11 + $0x1ac] sm:$0xf]
    %v7173 = vld [vmem:[#allocation11 + $0x1b0] sm:$0xf]
    %v7174 = vld [vmem:[#allocation11 + $0x1b4] sm:$0xf]
    %v7175 = vld [vmem:[#allocation11 + $0x1b8] sm:$0xf]
    %v7176 = vld [vmem:[#allocation11 + $0x1bc] sm:$0xf]
    %v7177 = vld [vmem:[#allocation11 + $0x1c0] sm:$0xf]
    %v7178 = vld [vmem:[#allocation11 + $0x1c4] sm:$0xf]
    %v7179 = vld [vmem:[#allocation11 + $0x1c8] sm:$0xf]
    %v7180 = vld [vmem:[#allocation11 + $0x1cc] sm:$0xf]
    %v7181 = vld [vmem:[#allocation11 + $0x1d0] sm:$0xf]
    %v7182 = vld [vmem:[#allocation11 + $0x1d4] sm:$0xf]
    %v7183 = vld [vmem:[#allocation11 + $0x1d8] sm:$0xf]
    %v7184 = vld [vmem:[#allocation11 + $0x1dc] sm:$0xf]
    %v7185 = vld [vmem:[#allocation11 + $0x1e0] sm:$0xf]
    %v7186 = vld [vmem:[#allocation11 + $0x1e4] sm:$0xf]
    %v7187 = vld [vmem:[#allocation11 + $0x1e8] sm:$0xf]
    %v7188 = vld [vmem:[#allocation11 + $0x1ec] sm:$0xf]
    %v7189 = vld [vmem:[#allocation11 + $0x1f0] sm:$0xf]
    %v7190 = vld [vmem:[#allocation11 + $0x1f4] sm:$0xf]
    %v7191 = vld [vmem:[#allocation11 + $0x1f8] sm:$0xf]
    %v7192 = vld [vmem:[#allocation11 + $0x1fc] sm:$0xf]
    %v7193 = vld [vmem:[#allocation12] sm:$0x1]
    %v7195 = vlaneseq
    %v7196 = vshrl.u32 %v7195, 7
    %v7197 = vsub.s32 0, %v7196
    %v7198 = vrot.slane %v7193, %v7197
    %v7204 = vunpack.c.l.b16 %v7061
    %v7205 = vunpack.c.h.b16 %v7061
    %v7206 = vunpack.c.l.b16 %v7062
    %v7207 = vunpack.c.h.b16 %v7062
    %v7208 = vunpack.c.l.b16 %v7063
    %v7209 = vunpack.c.h.b16 %v7063
    %v7210 = vunpack.c.l.b16 %v7064
    %v7211 = vunpack.c.h.b16 %v7064
    %v7212 = vpack.c.b16 %v7204, %v7204
    %v7213 = vpack.c.b16 %v7205, %v7205
    %v7214 = vpack.c.b16 %v7206, %v7206
    %v7215 = vpack.c.b16 %v7207, %v7207
    %v7216 = vpack.c.b16 %v7208, %v7208
    %v7217 = vpack.c.b16 %v7209, %v7209
    %v7218 = vpack.c.b16 %v7210, %v7210
    %v7219 = vpack.c.b16 %v7211, %v7211
    %v7356 = vunpack.c.l.b16 %v7065
    %v7357 = vunpack.c.l.b16 %v7066
    %v7358 = vunpack.c.l.b16 %v7067
    %v7359 = vunpack.c.l.b16 %v7068
    %v7360 = vunpack.c.l.b16 %v7069
    %v7361 = vunpack.c.l.b16 %v7070
    %v7362 = vunpack.c.l.b16 %v7071
    %v7363 = vunpack.c.l.b16 %v7072
    %v7364 = vunpack.c.l.b16 %v7073
    %v7365 = vunpack.c.l.b16 %v7074
    %v7366 = vunpack.c.l.b16 %v7075
    %v7367 = vunpack.c.l.b16 %v7076
    %v7368 = vunpack.c.l.b16 %v7077
    %v7369 = vunpack.c.l.b16 %v7078
    %v7370 = vunpack.c.l.b16 %v7079
    %v7371 = vunpack.c.l.b16 %v7080
    %v7372 = vunpack.c.l.b16 %v7081
    %v7373 = vunpack.c.l.b16 %v7082
    %v7374 = vunpack.c.l.b16 %v7083
    %v7375 = vunpack.c.l.b16 %v7084
    %v7376 = vunpack.c.l.b16 %v7085
    %v7377 = vunpack.c.l.b16 %v7086
    %v7378 = vunpack.c.l.b16 %v7087
    %v7379 = vunpack.c.l.b16 %v7088
    %v7380 = vunpack.c.l.b16 %v7089
    %v7381 = vunpack.c.l.b16 %v7090
    %v7382 = vunpack.c.l.b16 %v7091
    %v7383 = vunpack.c.l.b16 %v7092
    %v7384 = vunpack.c.l.b16 %v7093
    %v7385 = vunpack.c.l.b16 %v7094
    %v7386 = vunpack.c.l.b16 %v7095
    %v7387 = vunpack.c.l.b16 %v7096
    %v7388 = vunpack.c.l.b16 %v7097
    %v7389 = vunpack.c.l.b16 %v7098
    %v7390 = vunpack.c.l.b16 %v7099
    %v7391 = vunpack.c.l.b16 %v7100
    %v7392 = vunpack.c.l.b16 %v7101
    %v7393 = vunpack.c.l.b16 %v7102
    %v7394 = vunpack.c.l.b16 %v7103
    %v7395 = vunpack.c.l.b16 %v7104
    %v7396 = vunpack.c.l.b16 %v7105
    %v7397 = vunpack.c.l.b16 %v7106
    %v7398 = vunpack.c.l.b16 %v7107
    %v7399 = vunpack.c.l.b16 %v7108
    %v7400 = vunpack.c.l.b16 %v7109
    %v7401 = vunpack.c.l.b16 %v7110
    %v7402 = vunpack.c.l.b16 %v7111
    %v7403 = vunpack.c.l.b16 %v7112
    %v7404 = vunpack.c.l.b16 %v7113
    %v7405 = vunpack.c.l.b16 %v7114
    %v7406 = vunpack.c.l.b16 %v7115
    %v7407 = vunpack.c.l.b16 %v7116
    %v7408 = vunpack.c.l.b16 %v7117
    %v7409 = vunpack.c.l.b16 %v7118
    %v7410 = vunpack.c.l.b16 %v7119
    %v7411 = vunpack.c.l.b16 %v7120
    %v7412 = vunpack.c.l.b16 %v7121
    %v7413 = vunpack.c.l.b16 %v7122
    %v7414 = vunpack.c.l.b16 %v7123
    %v7415 = vunpack.c.l.b16 %v7124
    %v7416 = vunpack.c.l.b16 %v7125
    %v7417 = vunpack.c.l.b16 %v7126
    %v7418 = vunpack.c.l.b16 %v7127
    %v7419 = vunpack.c.l.b16 %v7128
    %v7420 = vunpack.c.l.b16 %v7129
    %v7421 = vunpack.c.l.b16 %v7130
    %v7422 = vunpack.c.l.b16 %v7131
    %v7423 = vunpack.c.l.b16 %v7132
    %v7424 = vunpack.c.l.b16 %v7133
    %v7425 = vunpack.c.l.b16 %v7134
    %v7426 = vunpack.c.l.b16 %v7135
    %v7427 = vunpack.c.l.b16 %v7136
    %v7428 = vunpack.c.l.b16 %v7137
    %v7429 = vunpack.c.l.b16 %v7138
    %v7430 = vunpack.c.l.b16 %v7139
    %v7431 = vunpack.c.l.b16 %v7140
    %v7432 = vunpack.c.l.b16 %v7141
    %v7433 = vunpack.c.l.b16 %v7142
    %v7434 = vunpack.c.l.b16 %v7143
    %v7435 = vunpack.c.l.b16 %v7144
    %v7436 = vunpack.c.l.b16 %v7145
    %v7437 = vunpack.c.l.b16 %v7146
    %v7438 = vunpack.c.l.b16 %v7147
    %v7439 = vunpack.c.l.b16 %v7148
    %v7440 = vunpack.c.l.b16 %v7149
    %v7441 = vunpack.c.l.b16 %v7150
    %v7442 = vunpack.c.l.b16 %v7151
    %v7443 = vunpack.c.l.b16 %v7152
    %v7444 = vunpack.c.l.b16 %v7153
    %v7445 = vunpack.c.l.b16 %v7154
    %v7446 = vunpack.c.l.b16 %v7155
    %v7447 = vunpack.c.l.b16 %v7156
    %v7448 = vunpack.c.l.b16 %v7157
    %v7449 = vunpack.c.l.b16 %v7158
    %v7450 = vunpack.c.l.b16 %v7159
    %v7451 = vunpack.c.l.b16 %v7160
    %v7452 = vunpack.c.l.b16 %v7161
    %v7453 = vunpack.c.l.b16 %v7162
    %v7454 = vunpack.c.l.b16 %v7163
    %v7455 = vunpack.c.l.b16 %v7164
    %v7456 = vunpack.c.l.b16 %v7165
    %v7457 = vunpack.c.l.b16 %v7166
    %v7458 = vunpack.c.l.b16 %v7167
    %v7459 = vunpack.c.l.b16 %v7168
    %v7460 = vunpack.c.l.b16 %v7169
    %v7461 = vunpack.c.l.b16 %v7170
    %v7462 = vunpack.c.l.b16 %v7171
    %v7463 = vunpack.c.l.b16 %v7172
    %v7464 = vunpack.c.l.b16 %v7173
    %v7465 = vunpack.c.l.b16 %v7174
    %v7466 = vunpack.c.l.b16 %v7175
    %v7467 = vunpack.c.l.b16 %v7176
    %v7468 = vunpack.c.l.b16 %v7177
    %v7469 = vunpack.c.l.b16 %v7178
    %v7470 = vunpack.c.l.b16 %v7179
    %v7471 = vunpack.c.l.b16 %v7180
    %v7472 = vunpack.c.l.b16 %v7181
    %v7473 = vunpack.c.l.b16 %v7182
    %v7474 = vunpack.c.l.b16 %v7183
    %v7475 = vunpack.c.l.b16 %v7184
    %v7476 = vunpack.c.l.b16 %v7185
    %v7477 = vunpack.c.l.b16 %v7186
    %v7478 = vunpack.c.l.b16 %v7187
    %v7479 = vunpack.c.l.b16 %v7188
    %v7480 = vunpack.c.l.b16 %v7189
    %v7481 = vunpack.c.l.b16 %v7190
    %v7482 = vunpack.c.l.b16 %v7191
    %v7483 = vunpack.c.l.b16 %v7192
    %v7484 = vpack.c.b16 %v7357, %v7356
    %v7485 = vpack.c.b16 %v7359, %v7358
    %v7486 = vpack.c.b16 %v7361, %v7360
    %v7487 = vpack.c.b16 %v7363, %v7362
    %v7488 = vpack.c.b16 %v7365, %v7364
    %v7489 = vpack.c.b16 %v7367, %v7366
    %v7490 = vpack.c.b16 %v7369, %v7368
    %v7491 = vpack.c.b16 %v7371, %v7370
    %v7492 = vpack.c.b16 %v7373, %v7372
    %v7493 = vpack.c.b16 %v7375, %v7374
    %v7494 = vpack.c.b16 %v7377, %v7376
    %v7495 = vpack.c.b16 %v7379, %v7378
    %v7496 = vpack.c.b16 %v7381, %v7380
    %v7497 = vpack.c.b16 %v7383, %v7382
    %v7498 = vpack.c.b16 %v7385, %v7384
    %v7499 = vpack.c.b16 %v7387, %v7386
    %v7500 = vpack.c.b16 %v7389, %v7388
    %v7501 = vpack.c.b16 %v7391, %v7390
    %v7502 = vpack.c.b16 %v7393, %v7392
    %v7503 = vpack.c.b16 %v7395, %v7394
    %v7504 = vpack.c.b16 %v7397, %v7396
    %v7505 = vpack.c.b16 %v7399, %v7398
    %v7506 = vpack.c.b16 %v7401, %v7400
    %v7507 = vpack.c.b16 %v7403, %v7402
    %v7508 = vpack.c.b16 %v7405, %v7404
    %v7509 = vpack.c.b16 %v7407, %v7406
    %v7510 = vpack.c.b16 %v7409, %v7408
    %v7511 = vpack.c.b16 %v7411, %v7410
    %v7512 = vpack.c.b16 %v7413, %v7412
    %v7513 = vpack.c.b16 %v7415, %v7414
    %v7514 = vpack.c.b16 %v7417, %v7416
    %v7515 = vpack.c.b16 %v7419, %v7418
    %v7516 = vpack.c.b16 %v7421, %v7420
    %v7517 = vpack.c.b16 %v7423, %v7422
    %v7518 = vpack.c.b16 %v7425, %v7424
    %v7519 = vpack.c.b16 %v7427, %v7426
    %v7520 = vpack.c.b16 %v7429, %v7428
    %v7521 = vpack.c.b16 %v7431, %v7430
    %v7522 = vpack.c.b16 %v7433, %v7432
    %v7523 = vpack.c.b16 %v7435, %v7434
    %v7524 = vpack.c.b16 %v7437, %v7436
    %v7525 = vpack.c.b16 %v7439, %v7438
    %v7526 = vpack.c.b16 %v7441, %v7440
    %v7527 = vpack.c.b16 %v7443, %v7442
    %v7528 = vpack.c.b16 %v7445, %v7444
    %v7529 = vpack.c.b16 %v7447, %v7446
    %v7530 = vpack.c.b16 %v7449, %v7448
    %v7531 = vpack.c.b16 %v7451, %v7450
    %v7532 = vpack.c.b16 %v7453, %v7452
    %v7533 = vpack.c.b16 %v7455, %v7454
    %v7534 = vpack.c.b16 %v7457, %v7456
    %v7535 = vpack.c.b16 %v7459, %v7458
    %v7536 = vpack.c.b16 %v7461, %v7460
    %v7537 = vpack.c.b16 %v7463, %v7462
    %v7538 = vpack.c.b16 %v7465, %v7464
    %v7539 = vpack.c.b16 %v7467, %v7466
    %v7540 = vpack.c.b16 %v7469, %v7468
    %v7541 = vpack.c.b16 %v7471, %v7470
    %v7542 = vpack.c.b16 %v7473, %v7472
    %v7543 = vpack.c.b16 %v7475, %v7474
    %v7544 = vpack.c.b16 %v7477, %v7476
    %v7545 = vpack.c.b16 %v7479, %v7478
    %v7546 = vpack.c.b16 %v7481, %v7480
    %v7547 = vpack.c.b16 %v7483, %v7482
    %7612 = vmatprep.subr.bf16.mxu0 0
    %7613 = vmatpush1.bf16.msra.mxu0 %v7491
    %7614 = vmatprep.subr.bf16.mxu0 0
    %7615 = vmatpush1.bf16.msra.mxu0 %v7490
    %7616 = vmatprep.subr.bf16.mxu0 0
    %7617 = vmatpush1.bf16.msra.mxu0 %v7489
    %7618 = vmatprep.subr.bf16.mxu0 0
    %7619 = vmatpush1.bf16.msra.mxu0 %v7488
    %7620 = vmatprep.subr.bf16.mxu0 0
    %7621 = vmatpush1.bf16.msra.mxu0 %v7487
    %7622 = vmatprep.subr.bf16.mxu0 0
    %7623 = vmatpush1.bf16.msra.mxu0 %v7486
    %7624 = vmatprep.subr.bf16.mxu0 0
    %7625 = vmatpush1.bf16.msra.mxu0 %v7485
    %7626 = vmatprep.subr.bf16.mxu0 0
    %7627 = vmatpush1.bf16.msra.mxu0 %v7484
    %7628 = vmatprep.subr.bf16.mxu0 0
    %7629 = vmatpush2.bf16.msra.mxu0 %v7499
    %7630 = vmatprep.subr.bf16.mxu0 0
    %7631 = vmatpush2.bf16.msra.mxu0 %v7498
    %7632 = vmatprep.subr.bf16.mxu0 0
    %7633 = vmatpush2.bf16.msra.mxu0 %v7497
    %7634 = vmatprep.subr.bf16.mxu0 0
    %7635 = vmatpush2.bf16.msra.mxu0 %v7496
    %7636 = vmatprep.subr.bf16.mxu0 0
    %7637 = vmatpush2.bf16.msra.mxu0 %v7495
    %7638 = vmatprep.subr.bf16.mxu0 0
    %7639 = vmatpush2.bf16.msra.mxu0 %v7494
    %7640 = vmatprep.subr.bf16.mxu0 0
    %7641 = vmatpush2.bf16.msra.mxu0 %v7493
    %7642 = vmatprep.subr.bf16.mxu0 0
    %7643 = vmatpush2.bf16.msra.mxu0 %v7492
    %7644 = vmatprep.mubr.bf16.mxu0 %v7213
    %7645 = vmatmul.mubr.bf16.gmra.mxu0 %v7212
    %v7646 = vpop.f32.mrf.mxu0
    %v7647 = vadd.f32 %v7198, %v7646
    %v7648 = vpop.f32.mrf.mxu0
    %v7649 = vpop.f32.mrf.mxu0
    %v7650 = vpop.f32.mrf.mxu0
    %7651 = vdwg.mxu0
    %7652 = vmatprep.subr.bf16.mxu0 0
    %7653 = vmatpush1.bf16.msra.mxu0 %v7507
    %7654 = vmatprep.subr.bf16.mxu0 0
    %7655 = vmatpush1.bf16.msra.mxu0 %v7506
    %7656 = vmatprep.subr.bf16.mxu0 0
    %7657 = vmatpush1.bf16.msra.mxu0 %v7505
    %7658 = vmatprep.subr.bf16.mxu0 0
    %7659 = vmatpush1.bf16.msra.mxu0 %v7504
    %7660 = vmatprep.subr.bf16.mxu0 0
    %7661 = vmatpush1.bf16.msra.mxu0 %v7503
    %7662 = vmatprep.subr.bf16.mxu0 0
    %7663 = vmatpush1.bf16.msra.mxu0 %v7502
    %7664 = vmatprep.subr.bf16.mxu0 0
    %7665 = vmatpush1.bf16.msra.mxu0 %v7501
    %7666 = vmatprep.subr.bf16.mxu0 0
    %7667 = vmatpush1.bf16.msra.mxu0 %v7500
    %7668 = vmatprep.subr.bf16.mxu0 0
    %7669 = vmatpush2.bf16.msra.mxu0 %v7515
    %7670 = vmatprep.subr.bf16.mxu0 0
    %7671 = vmatpush2.bf16.msra.mxu0 %v7514
    %7672 = vmatprep.subr.bf16.mxu0 0
    %7673 = vmatpush2.bf16.msra.mxu0 %v7513
    %7674 = vmatprep.subr.bf16.mxu0 0
    %7675 = vmatpush2.bf16.msra.mxu0 %v7512
    %7676 = vmatprep.subr.bf16.mxu0 0
    %7677 = vmatpush2.bf16.msra.mxu0 %v7511
    %7678 = vmatprep.subr.bf16.mxu0 0
    %7679 = vmatpush2.bf16.msra.mxu0 %v7510
    %7680 = vmatprep.subr.bf16.mxu0 0
    %7681 = vmatpush2.bf16.msra.mxu0 %v7509
    %7682 = vmatprep.subr.bf16.mxu0 0
    %7683 = vmatpush2.bf16.msra.mxu0 %v7508
    %7684 = vmatprep.mubr.bf16.mxu0 %v7215
    %7685 = vmatmul.mubr.bf16.gmra.mxu0 %v7214
    %v7686 = vpop.f32.mrf.mxu0
    %v7687 = vadd.f32 %v7647, %v7686
    %v7688 = vpop.f32.mrf.mxu0
    %v7689 = vpop.f32.mrf.mxu0
    %v7690 = vpop.f32.mrf.mxu0
    %7691 = vdwg.mxu0
    %7692 = vmatprep.subr.bf16.mxu0 0
    %7693 = vmatpush1.bf16.msra.mxu0 %v7523
    %7694 = vmatprep.subr.bf16.mxu0 0
    %7695 = vmatpush1.bf16.msra.mxu0 %v7522
    %7696 = vmatprep.subr.bf16.mxu0 0
    %7697 = vmatpush1.bf16.msra.mxu0 %v7521
    %7698 = vmatprep.subr.bf16.mxu0 0
    %7699 = vmatpush1.bf16.msra.mxu0 %v7520
    %7700 = vmatprep.subr.bf16.mxu0 0
    %7701 = vmatpush1.bf16.msra.mxu0 %v7519
    %7702 = vmatprep.subr.bf16.mxu0 0
    %7703 = vmatpush1.bf16.msra.mxu0 %v7518
    %7704 = vmatprep.subr.bf16.mxu0 0
    %7705 = vmatpush1.bf16.msra.mxu0 %v7517
    %7706 = vmatprep.subr.bf16.mxu0 0
    %7707 = vmatpush1.bf16.msra.mxu0 %v7516
    %7708 = vmatprep.subr.bf16.mxu0 0
    %7709 = vmatpush2.bf16.msra.mxu0 %v7531
    %7710 = vmatprep.subr.bf16.mxu0 0
    %7711 = vmatpush2.bf16.msra.mxu0 %v7530
    %7712 = vmatprep.subr.bf16.mxu0 0
    %7713 = vmatpush2.bf16.msra.mxu0 %v7529
    %7714 = vmatprep.subr.bf16.mxu0 0
    %7715 = vmatpush2.bf16.msra.mxu0 %v7528
    %7716 = vmatprep.subr.bf16.mxu0 0
    %7717 = vmatpush2.bf16.msra.mxu0 %v7527
    %7718 = vmatprep.subr.bf16.mxu0 0
    %7719 = vmatpush2.bf16.msra.mxu0 %v7526
    %7720 = vmatprep.subr.bf16.mxu0 0
    %7721 = vmatpush2.bf16.msra.mxu0 %v7525
    %7722 = vmatprep.subr.bf16.mxu0 0
    %7723 = vmatpush2.bf16.msra.mxu0 %v7524
    %7724 = vmatprep.mubr.bf16.mxu0 %v7217
    %7725 = vmatmul.mubr.bf16.gmra.mxu0 %v7216
    %v7726 = vpop.f32.mrf.mxu0
    %v7727 = vadd.f32 %v7687, %v7726
    %v7728 = vpop.f32.mrf.mxu0
    %v7729 = vpop.f32.mrf.mxu0
    %v7730 = vpop.f32.mrf.mxu0
    %7731 = vdwg.mxu0
    %7732 = vmatprep.subr.bf16.mxu0 0
    %7733 = vmatpush1.bf16.msra.mxu0 %v7539
    %7734 = vmatprep.subr.bf16.mxu0 0
    %7735 = vmatpush1.bf16.msra.mxu0 %v7538
    %7736 = vmatprep.subr.bf16.mxu0 0
    %7737 = vmatpush1.bf16.msra.mxu0 %v7537
    %7738 = vmatprep.subr.bf16.mxu0 0
    %7739 = vmatpush1.bf16.msra.mxu0 %v7536
    %7740 = vmatprep.subr.bf16.mxu0 0
    %7741 = vmatpush1.bf16.msra.mxu0 %v7535
    %7742 = vmatprep.subr.bf16.mxu0 0
    %7743 = vmatpush1.bf16.msra.mxu0 %v7534
    %7744 = vmatprep.subr.bf16.mxu0 0
    %7745 = vmatpush1.bf16.msra.mxu0 %v7533
    %7746 = vmatprep.subr.bf16.mxu0 0
    %7747 = vmatpush1.bf16.msra.mxu0 %v7532
    %7748 = vmatprep.subr.bf16.mxu0 0
    %7749 = vmatpush2.bf16.msra.mxu0 %v7547
    %7750 = vmatprep.subr.bf16.mxu0 0
    %7751 = vmatpush2.bf16.msra.mxu0 %v7546
    %7752 = vmatprep.subr.bf16.mxu0 0
    %7753 = vmatpush2.bf16.msra.mxu0 %v7545
    %7754 = vmatprep.subr.bf16.mxu0 0
    %7755 = vmatpush2.bf16.msra.mxu0 %v7544
    %7756 = vmatprep.subr.bf16.mxu0 0
    %7757 = vmatpush2.bf16.msra.mxu0 %v7543
    %7758 = vmatprep.subr.bf16.mxu0 0
    %7759 = vmatpush2.bf16.msra.mxu0 %v7542
    %7760 = vmatprep.subr.bf16.mxu0 0
    %7761 = vmatpush2.bf16.msra.mxu0 %v7541
    %7762 = vmatprep.subr.bf16.mxu0 0
    %7763 = vmatpush2.bf16.msra.mxu0 %v7540
    %7764 = vmatprep.mubr.bf16.mxu0 %v7219
    %7765 = vmatmul.mubr.bf16.gmra.mxu0 %v7218
    %v7766 = vpop.f32.mrf.mxu0
    %v7767 = vadd.f32 %v7727, %v7766
    %v7768 = vpop.f32.mrf.mxu0
    %v7769 = vpop.f32.mrf.mxu0
    %v7770 = vpop.f32.mrf.mxu0
    %7771 = vdwg.mxu0
    %v7772 = vmax.f32 %v7767, 0.0
    %v7773 = vlaneseq
    %v7774 = vand.u32 %v7773, 127
    %vm7775 = vcmp.lt.s32.totalorder %v7774, 10
    %v7776 = vsel %vm7775, %v7772, -1e+30
    %7777 = vmax.xlane.f32.xlu0 %v7776
    %v7778 = vpop.xlane.xlu0 %7777
    %v7779 = vsub.f32 %v7776, %v7778
    %v7780 = vmul.f32 %v7779, 1.442695
    %v7781 = vpow.pop %v7780
    %7782 = vadd.xlane.f32.xlu0 %v7781
    %v7783 = vpop.xlane.xlu0 %7782
    %v7784 = vlog2.pop %v7783
    %v7785 = vmul.f32 %v7784, 0.6931472
    %v7786 = vsub.f32 %v7779, %v7785
    %7787 = vst [vmem:[%s7] sm:$0xff] %v7786
    // Predicated region
    $region54: #{fc_forward.1} parent=1 // pred_check
      _
    $region55: #{fc_forward.1} parent=1 // pred_check_branch
      %7789 = sbr.rel (0) target = $region57
    $region56: #{fc_forward.1} parent=1 // pred_region
      _
    $region57: #{fc_forward.1} parent=1 // pred_fallthru
      _
    // Predicated region
    $region58: #{fc_forward.1} parent=1 // pred_check
      _
    $region59: #{fc_forward.1} parent=1 // pred_check_branch
      %7791 = sbr.rel (0) target = $region61
    $region60: #{fc_forward.1} parent=1 // pred_region
      _
    $region61: #{fc_forward.1} parent=1 // pred_fallthru
      _
    %7792 = vsyncpa [#allocation5], 1
    %7793 = vsyncpa [#allocation7], 1
    %7794 = vsyncpa [#allocation10], 1
    %7795 = vsyncpa [#allocation13], 1

</llo_original>
